<compile_context>
chip_gen: v7x
topology: tpu7x:2x2x1
jax: 0.10.0
libtpu: 0.0.40
codegen_flags: <defaults>
</compile_context>

<pallas_src>
import jax
import jax.numpy as jnp
from jax.experimental import pallas as pl
from jax.experimental.pallas import tpu as pltpu

H = W = 32
FEAT = H * W          # 1024
TN = 512              # linear output tile (lane-dense, multiple of 128)
NT = FEAT // TN       # 2 tiles -> maps onto v7x's 2 TensorCores


# ---------------------------------------------------------------------------
# In-kernel helpers (traced inside the fused kernel body)
# ---------------------------------------------------------------------------
def _tap_masks(shape):
    """Validity masks for the 8 non-center 3x3 taps in flat (B, H*W) layout.

    Built once and shared by both convs (zero 'SAME' padding semantics).
    """
    k = jax.lax.broadcasted_iota(jnp.int32, shape, len(shape) - 1)  # flat idx
    col = k & (W - 1)                                               # j = k % 32
    row_ok = {-1: k >= W, 0: None, 1: k < FEAT - W}                 # i+du in range
    col_ok = {-1: col > 0, 0: None, 1: col < W - 1}                 # j+dv in range
    masks = {}
    for du in (-1, 0, 1):
        for dv in (-1, 0, 1):
            if du == 0 and dv == 0:
                continue
            r, c = row_ok[du], col_ok[dv]
            masks[(du, dv)] = c if r is None else (r if c is None else r & c)
    return masks


def _conv3x3_flat(x, w_ref, b_ref, masks):
    """3x3 zero-padded ('SAME') conv, 1ch->1ch, on flat (B, H*W) f32.

    out[b, 32*i + j] = bias + sum_{du,dv} w[du+1, dv+1] * x[b, 32*(i+du) + (j+dv)]
    with out-of-range source positions contributing zero. Each tap is one XLU
    roll (8 rolls total; the center tap needs neither roll nor mask).
    """
    acc = w_ref[1, 1] * x
    for du in (-1, 0, 1):
        for dv in (-1, 0, 1):
            if du == 0 and dv == 0:
                continue
            s = W * du + dv                                 # flat source offset
            shifted = pltpu.roll(x, (-s) % FEAT, axis=1)    # shifted[k] = x[k+s]
            acc = acc + w_ref[du + 1, dv + 1] * jnp.where(
                masks[(du, dv)], shifted, 0.0)
    return acc + b_ref[0]


# ---------------------------------------------------------------------------
# Fused kernel: conv1 -> conv2 -> x @ W^T + b -> tanh   (one N-tile per step)
# ---------------------------------------------------------------------------
def fused_kernel(x_ref, w1_ref, b1_ref, w2_ref, b2_ref, wlt_ref, bl_ref, o_ref):
    # x_ref:   (B, 1024) f32 VMEM (same block every grid step; conv is cheap
    #          enough to recompute per N-tile, which keeps the grid axis
    #          embarrassingly parallel for the v7x 2-core split)
    # w*/b*:   SMEM conv weights (3,3) and biases (1,)
    # wlt_ref: (1024, TN) tile of the PRE-TRANSPOSED linear weight
    # bl_ref:  (1, TN) tile of the linear bias
    # o_ref:   (B, TN) output tile (lane-dense, unmasked stores)
    x = x_ref[...]
    masks = _tap_masks(x.shape)
    h = _conv3x3_flat(x, w1_ref, b1_ref, masks)
    h = _conv3x3_flat(h, w2_ref, b2_ref, masks)
    y = jnp.dot(h, wlt_ref[...], preferred_element_type=jnp.float32)
    o_ref[...] = jnp.tanh(y + bl_ref[...])


# ---------------------------------------------------------------------------
# Wrapper
# ---------------------------------------------------------------------------
def prepare_params(params):
    """One-time parameter prep: pre-transpose the linear weight, row-ify bias."""
    w1, b1, w2, b2, wl, bl = params
    return (jnp.asarray(w1, jnp.float32), jnp.asarray(b1, jnp.float32),
            jnp.asarray(w2, jnp.float32), jnp.asarray(b2, jnp.float32),
            jnp.asarray(wl, jnp.float32).T,                 # (in, out), done once
            jnp.asarray(bl, jnp.float32).reshape(1, FEAT))


@jax.jit
def game_of_life_forward(x, prepared):
    """x: (B, 1, 32, 32) float32  ->  (B, 1, 32, 32) float32"""
    w1, b1, w2, b2, wl_t, bl_row = prepared
    B = x.shape[0]
    x_flat = x.reshape(B, FEAT).astype(jnp.float32)   # NCHW, C=1 -> flat rows

    smem = pl.BlockSpec(memory_space=pltpu.MemorySpace.SMEM)
    grid_spec = pltpu.PrefetchScalarGridSpec(
        num_scalar_prefetch=0,
        grid=(NT,),
        in_specs=[
            pl.BlockSpec((B, FEAT), lambda j: (0, 0)),    # activations (resident)
            smem, smem, smem, smem,                       # conv w1,b1,w2,b2
            pl.BlockSpec((FEAT, TN), lambda j: (0, j)),   # weight N-tile (2 MiB)
            pl.BlockSpec((1, TN), lambda j: (0, j)),      # bias N-tile
        ],
        out_specs=pl.BlockSpec((B, TN), lambda j: (0, j)),
    )
    out = pl.pallas_call(
        fused_kernel,
        out_shape=jax.ShapeDtypeStruct((B, FEAT), jnp.float32),
        grid_spec=grid_spec,
        compiler_params=pltpu.CompilerParams(
            dimension_semantics=("parallel",)),           # split across TCs on v7x
    )(x_flat, w1, b1, w2, b2, wl_t, bl_row)
    return out.reshape(B, 1, H, W)


# ---------------------------------------------------------------------------
# Pure-JAX reference (correctness check)
# ---------------------------------------------------------------------------
def reference_forward(x, params):
    w1, b1, w2, b2, wl, bl = params

    def conv(z, w, b):
        return jax.lax.conv_general_dilated(
            z, w.reshape(1, 1, 3, 3), window_strides=(1, 1), padding="SAME",
            dimension_numbers=("NCHW", "OIHW", "NCHW")) + b[0]

    h = conv(x, w1, b1)
    h = conv(h, w2, b2)
    flat = h.reshape(h.shape[0], -1)
    out = jnp.tanh(flat @ wl.T + bl)
    return out.reshape(-1, 1, H, W)


def init_params(key):
    k = jax.random.split(key, 6)
    cb = 1.0 / 3.0      # conv bound: 1/sqrt(1*3*3)
    lb = 1.0 / 32.0     # linear bound: 1/sqrt(1024)
    w1 = jax.random.uniform(k[0], (3, 3), jnp.float32, -cb, cb)
    b1 = jax.random.uniform(k[1], (1,), jnp.float32, -cb, cb)
    w2 = jax.random.uniform(k[2], (3, 3), jnp.float32, -cb, cb)
    b2 = jax.random.uniform(k[3], (1,), jnp.float32, -cb, cb)
    wl = jax.random.uniform(k[4], (FEAT, FEAT), jnp.float32, -lb, lb)
    bl = jax.random.uniform(k[5], (FEAT,), jnp.float32, -lb, lb)
    return (w1, b1, w2, b2, wl, bl)


if __name__ == "__main__":
    key = jax.random.PRNGKey(0)
    pkey, xkey = jax.random.split(key)
    params = init_params(pkey)
    prepared = prepare_params(params)       # weight transpose hoisted: done once

    B = 2
    x = jax.random.uniform(xkey, (B, 1, H, W), jnp.float32)  # (2, 1, 32, 32)

    out = jax.block_until_ready(game_of_life_forward(x, prepared))

    ref = reference_forward(x, params)
    assert out.shape == (B, 1, H, W)
    assert jnp.allclose(out, ref, atol=1e-2, rtol=1e-2), "mismatch vs reference"

    print("KERNEL_OK")
</pallas_src>

<mosaic_0001>
module attributes {stable_mosaic.version = 11 : i64} {
  func.func @fused_kernel(%arg0: i32, %arg1: memref<2x1024xf32, #tpu.memory_space<vmem>>, %arg2: memref<3x3xf32, #tpu.memory_space<smem>>, %arg3: memref<1xf32, #tpu.memory_space<smem>>, %arg4: memref<3x3xf32, #tpu.memory_space<smem>>, %arg5: memref<1xf32, #tpu.memory_space<smem>>, %arg6: memref<1024x512xf32, #tpu.memory_space<vmem>>, %arg7: memref<1x512xf32, #tpu.memory_space<vmem>>, %arg8: memref<2x512xf32, #tpu.memory_space<vmem>>) attributes {dimension_semantics = [#tpu.dimension_semantics<parallel>], iteration_bounds = array<i64: 2>, scalar_prefetch = 0 : i64, scratch_operands = 0 : i64, tpu.core_type = #tpu.core_type<tc>, window_params = [{pipeline_mode = #tpu.pipeline_mode<synchronous>, transform_indices = @transform_0, window_bounds = array<i64: 2, 1024>}, {transform_indices = @transform_1, window_bounds = array<i64: 3, 3>}, {transform_indices = @transform_2, window_bounds = array<i64: 1>}, {transform_indices = @transform_3, window_bounds = array<i64: 3, 3>}, {transform_indices = @transform_4, window_bounds = array<i64: 1>}, {transform_indices = @transform_5, window_bounds = array<i64: 1024, 512>}, {transform_indices = @transform_6, window_bounds = array<i64: 1, 512>}, {transform_indices = @transform_7, window_bounds = array<i64: 2, 512>}]} {
    %c0 = arith.constant 0 : index
    %c0_0 = arith.constant 0 : index
    %0 = vector.load %arg1[%c0, %c0_0] : memref<2x1024xf32, #tpu.memory_space<vmem>>, vector<2x1024xf32>
    %1 = tpu.iota {dimensions = array<i32: 1>} : vector<2x1024xi32>
    %c31_i32 = arith.constant 31 : i32
    %2 = vector.broadcast %c31_i32 : i32 to vector<2x1024xi32>
    %3 = arith.andi %1, %2 : vector<2x1024xi32>
    %c32_i32 = arith.constant 32 : i32
    %4 = vector.broadcast %c32_i32 : i32 to vector<2x1024xi32>
    %5 = arith.cmpi sge, %1, %4 : vector<2x1024xi32>
    %c992_i32 = arith.constant 992 : i32
    %6 = vector.broadcast %c992_i32 : i32 to vector<2x1024xi32>
    %7 = arith.cmpi slt, %1, %6 : vector<2x1024xi32>
    %c0_i32 = arith.constant 0 : i32
    %8 = vector.broadcast %c0_i32 : i32 to vector<2x1024xi32>
    %9 = arith.cmpi sgt, %3, %8 : vector<2x1024xi32>
    %c31_i32_1 = arith.constant 31 : i32
    %10 = vector.broadcast %c31_i32_1 : i32 to vector<2x1024xi32>
    %11 = arith.cmpi slt, %3, %10 : vector<2x1024xi32>
    %12 = arith.andi %5, %9 : vector<2x1024xi1>
    %13 = arith.andi %5, %11 : vector<2x1024xi1>
    %14 = arith.andi %7, %9 : vector<2x1024xi1>
    %15 = arith.andi %7, %11 : vector<2x1024xi1>
    %c1 = arith.constant 1 : index
    %c1_2 = arith.constant 1 : index
    %16 = memref.load %arg2[%c1, %c1_2] : memref<3x3xf32, #tpu.memory_space<smem>>
    %17 = vector.broadcast %16 : f32 to vector<2x1024xf32>
    %18 = arith.mulf %17, %0 : vector<2x1024xf32>
    %c33_i32 = arith.constant 33 : i32
    %19 = tpu.dynamic_rotate %0 by %c33_i32 dim 1 : vector<2x1024xf32>, i32 -> vector<2x1024xf32>
    %c0_3 = arith.constant 0 : index
    %c0_4 = arith.constant 0 : index
    %20 = memref.load %arg2[%c0_3, %c0_4] : memref<3x3xf32, #tpu.memory_space<smem>>
    %cst = arith.constant 0.000000e+00 : f32
    %21 = vector.broadcast %cst : f32 to vector<2x1024xf32>
    %22 = arith.select %12, %19, %21 : vector<2x1024xi1>, vector<2x1024xf32>
    %23 = vector.broadcast %20 : f32 to vector<2x1024xf32>
    %24 = arith.mulf %23, %22 : vector<2x1024xf32>
    %25 = arith.addf %18, %24 : vector<2x1024xf32>
    %c32_i32_5 = arith.constant 32 : i32
    %26 = tpu.dynamic_rotate %0 by %c32_i32_5 dim 1 : vector<2x1024xf32>, i32 -> vector<2x1024xf32>
    %c0_6 = arith.constant 0 : index
    %c1_7 = arith.constant 1 : index
    %27 = memref.load %arg2[%c0_6, %c1_7] : memref<3x3xf32, #tpu.memory_space<smem>>
    %cst_8 = arith.constant 0.000000e+00 : f32
    %28 = vector.broadcast %cst_8 : f32 to vector<2x1024xf32>
    %29 = arith.select %5, %26, %28 : vector<2x1024xi1>, vector<2x1024xf32>
    %30 = vector.broadcast %27 : f32 to vector<2x1024xf32>
    %31 = arith.mulf %30, %29 : vector<2x1024xf32>
    %32 = arith.addf %25, %31 : vector<2x1024xf32>
    %c31_i32_9 = arith.constant 31 : i32
    %33 = tpu.dynamic_rotate %0 by %c31_i32_9 dim 1 : vector<2x1024xf32>, i32 -> vector<2x1024xf32>
    %c0_10 = arith.constant 0 : index
    %c2 = arith.constant 2 : index
    %34 = memref.load %arg2[%c0_10, %c2] : memref<3x3xf32, #tpu.memory_space<smem>>
    %cst_11 = arith.constant 0.000000e+00 : f32
    %35 = vector.broadcast %cst_11 : f32 to vector<2x1024xf32>
    %36 = arith.select %13, %33, %35 : vector<2x1024xi1>, vector<2x1024xf32>
    %37 = vector.broadcast %34 : f32 to vector<2x1024xf32>
    %38 = arith.mulf %37, %36 : vector<2x1024xf32>
    %39 = arith.addf %32, %38 : vector<2x1024xf32>
    %c1_i32 = arith.constant 1 : i32
    %40 = tpu.dynamic_rotate %0 by %c1_i32 dim 1 : vector<2x1024xf32>, i32 -> vector<2x1024xf32>
    %c1_12 = arith.constant 1 : index
    %c0_13 = arith.constant 0 : index
    %41 = memref.load %arg2[%c1_12, %c0_13] : memref<3x3xf32, #tpu.memory_space<smem>>
    %cst_14 = arith.constant 0.000000e+00 : f32
    %42 = vector.broadcast %cst_14 : f32 to vector<2x1024xf32>
    %43 = arith.select %9, %40, %42 : vector<2x1024xi1>, vector<2x1024xf32>
    %44 = vector.broadcast %41 : f32 to vector<2x1024xf32>
    %45 = arith.mulf %44, %43 : vector<2x1024xf32>
    %46 = arith.addf %39, %45 : vector<2x1024xf32>
    %c1023_i32 = arith.constant 1023 : i32
    %47 = tpu.dynamic_rotate %0 by %c1023_i32 dim 1 : vector<2x1024xf32>, i32 -> vector<2x1024xf32>
    %c1_15 = arith.constant 1 : index
    %c2_16 = arith.constant 2 : index
    %48 = memref.load %arg2[%c1_15, %c2_16] : memref<3x3xf32, #tpu.memory_space<smem>>
    %cst_17 = arith.constant 0.000000e+00 : f32
    %49 = vector.broadcast %cst_17 : f32 to vector<2x1024xf32>
    %50 = arith.select %11, %47, %49 : vector<2x1024xi1>, vector<2x1024xf32>
    %51 = vector.broadcast %48 : f32 to vector<2x1024xf32>
    %52 = arith.mulf %51, %50 : vector<2x1024xf32>
    %53 = arith.addf %46, %52 : vector<2x1024xf32>
    %c993_i32 = arith.constant 993 : i32
    %54 = tpu.dynamic_rotate %0 by %c993_i32 dim 1 : vector<2x1024xf32>, i32 -> vector<2x1024xf32>
    %c2_18 = arith.constant 2 : index
    %c0_19 = arith.constant 0 : index
    %55 = memref.load %arg2[%c2_18, %c0_19] : memref<3x3xf32, #tpu.memory_space<smem>>
    %cst_20 = arith.constant 0.000000e+00 : f32
    %56 = vector.broadcast %cst_20 : f32 to vector<2x1024xf32>
    %57 = arith.select %14, %54, %56 : vector<2x1024xi1>, vector<2x1024xf32>
    %58 = vector.broadcast %55 : f32 to vector<2x1024xf32>
    %59 = arith.mulf %58, %57 : vector<2x1024xf32>
    %60 = arith.addf %53, %59 : vector<2x1024xf32>
    %c992_i32_21 = arith.constant 992 : i32
    %61 = tpu.dynamic_rotate %0 by %c992_i32_21 dim 1 : vector<2x1024xf32>, i32 -> vector<2x1024xf32>
    %c2_22 = arith.constant 2 : index
    %c1_23 = arith.constant 1 : index
    %62 = memref.load %arg2[%c2_22, %c1_23] : memref<3x3xf32, #tpu.memory_space<smem>>
    %cst_24 = arith.constant 0.000000e+00 : f32
    %63 = vector.broadcast %cst_24 : f32 to vector<2x1024xf32>
    %64 = arith.select %7, %61, %63 : vector<2x1024xi1>, vector<2x1024xf32>
    %65 = vector.broadcast %62 : f32 to vector<2x1024xf32>
    %66 = arith.mulf %65, %64 : vector<2x1024xf32>
    %67 = arith.addf %60, %66 : vector<2x1024xf32>
    %c991_i32 = arith.constant 991 : i32
    %68 = tpu.dynamic_rotate %0 by %c991_i32 dim 1 : vector<2x1024xf32>, i32 -> vector<2x1024xf32>
    %c2_25 = arith.constant 2 : index
    %c2_26 = arith.constant 2 : index
    %69 = memref.load %arg2[%c2_25, %c2_26] : memref<3x3xf32, #tpu.memory_space<smem>>
    %cst_27 = arith.constant 0.000000e+00 : f32
    %70 = vector.broadcast %cst_27 : f32 to vector<2x1024xf32>
    %71 = arith.select %15, %68, %70 : vector<2x1024xi1>, vector<2x1024xf32>
    %72 = vector.broadcast %69 : f32 to vector<2x1024xf32>
    %73 = arith.mulf %72, %71 : vector<2x1024xf32>
    %74 = arith.addf %67, %73 : vector<2x1024xf32>
    %c0_28 = arith.constant 0 : index
    %75 = memref.load %arg3[%c0_28] : memref<1xf32, #tpu.memory_space<smem>>
    %76 = vector.broadcast %75 : f32 to vector<2x1024xf32>
    %77 = arith.addf %74, %76 : vector<2x1024xf32>
    %c1_29 = arith.constant 1 : index
    %c1_30 = arith.constant 1 : index
    %78 = memref.load %arg4[%c1_29, %c1_30] : memref<3x3xf32, #tpu.memory_space<smem>>
    %79 = vector.broadcast %78 : f32 to vector<2x1024xf32>
    %80 = arith.mulf %79, %77 : vector<2x1024xf32>
    %c33_i32_31 = arith.constant 33 : i32
    %81 = tpu.dynamic_rotate %77 by %c33_i32_31 dim 1 : vector<2x1024xf32>, i32 -> vector<2x1024xf32>
    %c0_32 = arith.constant 0 : index
    %c0_33 = arith.constant 0 : index
    %82 = memref.load %arg4[%c0_32, %c0_33] : memref<3x3xf32, #tpu.memory_space<smem>>
    %cst_34 = arith.constant 0.000000e+00 : f32
    %83 = vector.broadcast %cst_34 : f32 to vector<2x1024xf32>
    %84 = arith.select %12, %81, %83 : vector<2x1024xi1>, vector<2x1024xf32>
    %85 = vector.broadcast %82 : f32 to vector<2x1024xf32>
    %86 = arith.mulf %85, %84 : vector<2x1024xf32>
    %87 = arith.addf %80, %86 : vector<2x1024xf32>
    %c32_i32_35 = arith.constant 32 : i32
    %88 = tpu.dynamic_rotate %77 by %c32_i32_35 dim 1 : vector<2x1024xf32>, i32 -> vector<2x1024xf32>
    %c0_36 = arith.constant 0 : index
    %c1_37 = arith.constant 1 : index
    %89 = memref.load %arg4[%c0_36, %c1_37] : memref<3x3xf32, #tpu.memory_space<smem>>
    %cst_38 = arith.constant 0.000000e+00 : f32
    %90 = vector.broadcast %cst_38 : f32 to vector<2x1024xf32>
    %91 = arith.select %5, %88, %90 : vector<2x1024xi1>, vector<2x1024xf32>
    %92 = vector.broadcast %89 : f32 to vector<2x1024xf32>
    %93 = arith.mulf %92, %91 : vector<2x1024xf32>
    %94 = arith.addf %87, %93 : vector<2x1024xf32>
    %c31_i32_39 = arith.constant 31 : i32
    %95 = tpu.dynamic_rotate %77 by %c31_i32_39 dim 1 : vector<2x1024xf32>, i32 -> vector<2x1024xf32>
    %c0_40 = arith.constant 0 : index
    %c2_41 = arith.constant 2 : index
    %96 = memref.load %arg4[%c0_40, %c2_41] : memref<3x3xf32, #tpu.memory_space<smem>>
    %cst_42 = arith.constant 0.000000e+00 : f32
    %97 = vector.broadcast %cst_42 : f32 to vector<2x1024xf32>
    %98 = arith.select %13, %95, %97 : vector<2x1024xi1>, vector<2x1024xf32>
    %99 = vector.broadcast %96 : f32 to vector<2x1024xf32>
    %100 = arith.mulf %99, %98 : vector<2x1024xf32>
    %101 = arith.addf %94, %100 : vector<2x1024xf32>
    %c1_i32_43 = arith.constant 1 : i32
    %102 = tpu.dynamic_rotate %77 by %c1_i32_43 dim 1 : vector<2x1024xf32>, i32 -> vector<2x1024xf32>
    %c1_44 = arith.constant 1 : index
    %c0_45 = arith.constant 0 : index
    %103 = memref.load %arg4[%c1_44, %c0_45] : memref<3x3xf32, #tpu.memory_space<smem>>
    %cst_46 = arith.constant 0.000000e+00 : f32
    %104 = vector.broadcast %cst_46 : f32 to vector<2x1024xf32>
    %105 = arith.select %9, %102, %104 : vector<2x1024xi1>, vector<2x1024xf32>
    %106 = vector.broadcast %103 : f32 to vector<2x1024xf32>
    %107 = arith.mulf %106, %105 : vector<2x1024xf32>
    %108 = arith.addf %101, %107 : vector<2x1024xf32>
    %c1023_i32_47 = arith.constant 1023 : i32
    %109 = tpu.dynamic_rotate %77 by %c1023_i32_47 dim 1 : vector<2x1024xf32>, i32 -> vector<2x1024xf32>
    %c1_48 = arith.constant 1 : index
    %c2_49 = arith.constant 2 : index
    %110 = memref.load %arg4[%c1_48, %c2_49] : memref<3x3xf32, #tpu.memory_space<smem>>
    %cst_50 = arith.constant 0.000000e+00 : f32
    %111 = vector.broadcast %cst_50 : f32 to vector<2x1024xf32>
    %112 = arith.select %11, %109, %111 : vector<2x1024xi1>, vector<2x1024xf32>
    %113 = vector.broadcast %110 : f32 to vector<2x1024xf32>
    %114 = arith.mulf %113, %112 : vector<2x1024xf32>
    %115 = arith.addf %108, %114 : vector<2x1024xf32>
    %c993_i32_51 = arith.constant 993 : i32
    %116 = tpu.dynamic_rotate %77 by %c993_i32_51 dim 1 : vector<2x1024xf32>, i32 -> vector<2x1024xf32>
    %c2_52 = arith.constant 2 : index
    %c0_53 = arith.constant 0 : index
    %117 = memref.load %arg4[%c2_52, %c0_53] : memref<3x3xf32, #tpu.memory_space<smem>>
    %cst_54 = arith.constant 0.000000e+00 : f32
    %118 = vector.broadcast %cst_54 : f32 to vector<2x1024xf32>
    %119 = arith.select %14, %116, %118 : vector<2x1024xi1>, vector<2x1024xf32>
    %120 = vector.broadcast %117 : f32 to vector<2x1024xf32>
    %121 = arith.mulf %120, %119 : vector<2x1024xf32>
    %122 = arith.addf %115, %121 : vector<2x1024xf32>
    %c992_i32_55 = arith.constant 992 : i32
    %123 = tpu.dynamic_rotate %77 by %c992_i32_55 dim 1 : vector<2x1024xf32>, i32 -> vector<2x1024xf32>
    %c2_56 = arith.constant 2 : index
    %c1_57 = arith.constant 1 : index
    %124 = memref.load %arg4[%c2_56, %c1_57] : memref<3x3xf32, #tpu.memory_space<smem>>
    %cst_58 = arith.constant 0.000000e+00 : f32
    %125 = vector.broadcast %cst_58 : f32 to vector<2x1024xf32>
    %126 = arith.select %7, %123, %125 : vector<2x1024xi1>, vector<2x1024xf32>
    %127 = vector.broadcast %124 : f32 to vector<2x1024xf32>
    %128 = arith.mulf %127, %126 : vector<2x1024xf32>
    %129 = arith.addf %122, %128 : vector<2x1024xf32>
    %c991_i32_59 = arith.constant 991 : i32
    %130 = tpu.dynamic_rotate %77 by %c991_i32_59 dim 1 : vector<2x1024xf32>, i32 -> vector<2x1024xf32>
    %c2_60 = arith.constant 2 : index
    %c2_61 = arith.constant 2 : index
    %131 = memref.load %arg4[%c2_60, %c2_61] : memref<3x3xf32, #tpu.memory_space<smem>>
    %cst_62 = arith.constant 0.000000e+00 : f32
    %132 = vector.broadcast %cst_62 : f32 to vector<2x1024xf32>
    %133 = arith.select %15, %130, %132 : vector<2x1024xi1>, vector<2x1024xf32>
    %134 = vector.broadcast %131 : f32 to vector<2x1024xf32>
    %135 = arith.mulf %134, %133 : vector<2x1024xf32>
    %136 = arith.addf %129, %135 : vector<2x1024xf32>
    %c0_63 = arith.constant 0 : index
    %137 = memref.load %arg5[%c0_63] : memref<1xf32, #tpu.memory_space<smem>>
    %138 = vector.broadcast %137 : f32 to vector<2x1024xf32>
    %139 = arith.addf %136, %138 : vector<2x1024xf32>
    %c0_64 = arith.constant 0 : index
    %c0_65 = arith.constant 0 : index
    %140 = vector.load %arg6[%c0_64, %c0_65] : memref<1024x512xf32, #tpu.memory_space<vmem>>, vector<1024x512xf32>
    %cst_66 = arith.constant dense<0.000000e+00> : vector<2x512xf32>
    %141 = tpu.matmul %139, %140, %cst_66 {dimension_numbers = #tpu.dot_dimension_numbers<[1], [0], [0], [1], [0, 0, 1, 1], [], []>} : vector<2x1024xf32>, vector<1024x512xf32>, vector<2x512xf32> -> vector<2x512xf32>
    %c0_67 = arith.constant 0 : index
    %c0_68 = arith.constant 0 : index
    %142 = vector.load %arg7[%c0_67, %c0_68] : memref<1x512xf32, #tpu.memory_space<vmem>>, vector<1x512xf32>
    %143 = vector.broadcast %142 : vector<1x512xf32> to vector<2x512xf32>
    %144 = arith.addf %141, %143 : vector<2x512xf32>
    %145 = math.tanh %144 : vector<2x512xf32>
    %c0_69 = arith.constant 0 : index
    %c0_70 = arith.constant 0 : index
    %146 = vector.load %arg8[%c0_69, %c0_70] : memref<2x512xf32, #tpu.memory_space<vmem>>, vector<2x512xf32>
    tpu.vector_store %arg8[%c0_69, %c0_70], %145 {strides = array<i32>} : memref<2x512xf32, #tpu.memory_space<vmem>>, vector<2x512xf32>,
    return
  }
  func.func @transform_0(%arg0: i32) -> (i32, i32) {
    %c0_i32 = arith.constant 0 : i32
    %c0_i32_0 = arith.constant 0 : i32
    %c0_i32_1 = arith.constant 0 : i32
    return %c0_i32, %c0_i32_0 : i32, i32
  }
  func.func @transform_1(%arg0: i32) -> (i32, i32) {
    %c0_i32 = arith.constant 0 : i32
    %c0_i32_0 = arith.constant 0 : i32
    %c0_i32_1 = arith.constant 0 : i32
    return %c0_i32, %c0_i32_0 : i32, i32
  }
  func.func @transform_2(%arg0: i32) -> i32 {
    %c0_i32 = arith.constant 0 : i32
    %c0_i32_0 = arith.constant 0 : i32
    return %c0_i32 : i32
  }
  func.func @transform_3(%arg0: i32) -> (i32, i32) {
    %c0_i32 = arith.constant 0 : i32
    %c0_i32_0 = arith.constant 0 : i32
    %c0_i32_1 = arith.constant 0 : i32
    return %c0_i32, %c0_i32_0 : i32, i32
  }
  func.func @transform_4(%arg0: i32) -> i32 {
    %c0_i32 = arith.constant 0 : i32
    %c0_i32_0 = arith.constant 0 : i32
    return %c0_i32 : i32
  }
  func.func @transform_5(%arg0: i32) -> (i32, i32) {
    %c0_i32 = arith.constant 0 : i32
    %c0_i32_0 = arith.constant 0 : i32
    return %c0_i32, %arg0 : i32, i32
  }
  func.func @transform_6(%arg0: i32) -> (i32, i32) {
    %c0_i32 = arith.constant 0 : i32
    %c0_i32_0 = arith.constant 0 : i32
    return %c0_i32, %arg0 : i32, i32
  }
  func.func @transform_7(%arg0: i32) -> (i32, i32) {
    %c0_i32 = arith.constant 0 : i32
    %c0_i32_0 = arith.constant 0 : i32
    return %c0_i32, %arg0 : i32, i32
  }
}

</mosaic_0001>

<llo_original>
// kernel: game_of_life_forward.1
$region0: #{game_of_life_forward.1}
  #allocation0 [shape = 'u32[]', space=smem, size = 0x4, offset = 0x4, fixed_abs, tag = 'smem constant byte address 0x4 - core index']
  #allocation1 [shape = 'u32[144,128]{1,0:T(1,128)}', space=vmem, size = 0x12000, scoped, tag = 'internal scratch']
  #allocation2 [shape = 'f32[1]{0:T(128)S(6)}', space=smem, size = 0x200, scoped, tag = 'scoped memory for game_of_life_forward.1']
  #allocation3 [shape = 'f32[1]{0:T(128)S(6)}', space=smem, size = 0x200, scoped, tag = 'scoped memory for game_of_life_forward.1']
  %s0 = inlined_call_operand.vmem [shape: f32[2,1024], index: 0, kind: input, shape index: {}]
  %s1 = inlined_call_operand.hbm [shape: f32[3,3], index: 1, kind: input, shape index: {}]
  %s2 = inlined_call_operand.<no memory space> [shape: f32[1], index: 2, kind: input, shape index: {}]
  %s3 = inlined_call_operand.hbm [shape: f32[3,3], index: 3, kind: input, shape index: {}]
  %s4 = inlined_call_operand.<no memory space> [shape: f32[1], index: 4, kind: input, shape index: {}]
  %s5 = inlined_call_operand.hbm [shape: f32[1024,1024], index: 5, kind: input, shape index: {}]
  %s6 = inlined_call_operand.hbm [shape: f32[1,1024], index: 6, kind: input, shape index: {}]
  %s7 = inlined_call_operand.vmem [shape: f32[2,1024], index: 7, kind: output, shape index: {}]
  %s8 = sld [smem:[#allocation0]]
  $region77: #{game_of_life_forward.1} parent=0
    _
  %s10 = ssub.s32 1, %s8
  %s11 = scalar_select 0, %s10, %s8
  %12 = sst [smem:[#allocation2]] %s2
  %13 = sst [smem:[#allocation3]] %s4
  $region1: #{game_of_life_forward.1} parent=0
    #allocation4 [shape = 'u8[2048]{0}', space=smem, size = 0x800, scoped, tag = 'input window, operand 1, single buffered']
    #allocation5 [shape = 's32[2]{0}', space=sflag, size = 0x8, scoped, tag = 'scoped memory for game_of_life_forward.1']
    #allocation6 [shape = 's32[2]{0}', space=sflag, size = 0x8, scoped, tag = 'scoped memory for game_of_life_forward.1']
    #allocation7 [shape = 'u8[2048]{0}', space=smem, size = 0x800, scoped, tag = 'input window, operand 3, single buffered']
    #allocation8 [shape = 's32[1]{0}', space=sflag, size = 0x4, scoped, tag = 'scoped memory for game_of_life_forward.1']
    #allocation9 [shape = 'u8[4194304]{0}', space=vmem, size = 0x400000, scoped, tag = 'input window, operand 5']
    #allocation10 [shape = 'u8[4096]{0}', space=vmem, size = 0x1000, scoped, tag = 'input window, operand 6']
    #allocation11 [shape = 's32[2]{0}', space=sflag, size = 0x8, scoped, tag = 'scoped memory for game_of_life_forward.1']
    %14 = vsyncpa [#allocation6], 0
    %15 = vsyncpa [#allocation8], 0
    %16 = vsyncpa [#allocation5], 0
    %s17 = scalar_lea.sflag [#allocation5], 1
    %18 = vsyncpa %s17, 0
    %19 = vsyncpa [#allocation11], 0
    %s20 = scalar_lea.sflag [#allocation11], 1
    %21 = vsyncpa %s20, 0
    loop: start=0, step=1, limit=4
    $region2: #{game_of_life_forward.1} parent=1 // loop_pre_header
      _
    $region3: #{game_of_life_forward.1} parent=1 // loop_header
      %s23 = sphi 0, %s27
      %p24 = scmp.ge.s32.totalorder %s23, 4
      %s31 = sphi 0, %s31
      %s33 = sphi 0, %s31
      %s34 = sphi 0, %s33
      %s48 = sphi 0, %s34
      %s52 = sphi 0, %s52
      %s54 = sphi 0, %s52
      %s55 = sphi 0, %s54
      %s69 = sphi 0, %s55
      %s73 = sphi 0, %s73
      %s75 = sphi 0, %s73
      %s76 = sphi 0, %s75
      %s90 = sphi 0, %s76
      %s94 = sphi 0, %s94
      %s96 = sphi 0, %s94
      %s97 = sphi 0, %s96
      %s111 = sphi 0, %s97
      %s115 = sphi 0, %s115
      %s117 = sphi 0, %s115
      %s118 = sphi 0, %s117
      %s132 = sphi 0, %s118
      %s138 = sphi 0, %s140
      %s141 = sphi 0, %s138
      %s142 = sphi 0, %s141
      %s158 = sphi 0, %s142
      %s164 = sphi 0, %s166
      %s167 = sphi 0, %s164
      %s168 = sphi 0, %s167
      %s184 = sphi 0, %s168
      %s190 = sphi 0, %s192
      %s193 = sphi 0, %s190
      %s194 = sphi 0, %s193
      %s210 = sphi 0, %s194
    $region4: #{game_of_life_forward.1} parent=1 // loop_header_branch
      %26 = sbr.rel (%p24) target = $region8
    $region5: #{game_of_life_forward.1} parent=1 // loop_body
      %s28 = ssub.s32 %s23, 1
      %s29 = ssub.s32 %s23, 2
      %s30 = sadd.s32 %s23, 1
      %s32 = sadd.s32 %s31, 1
      %p35 = scmp.eq.s32.totalorder %s23, 1
      %p36 = scmp.ne.s32.totalorder %s31, %s33
      %p37 = scmp.eq.s32.totalorder %s23, 0
      %p38 = por %p36, %p37
      %p39 = scmp.ne.s32.totalorder %s31, %s33
      %p40 = scmp.eq.s32.totalorder %s28, 1
      %p41 = por %p39, %p40
      %p42 = scmp.ne.s32.totalorder %s33, %s34
      %p43 = scmp.eq.s32.totalorder %s28, 0
      %p44 = por %p42, %p43
      %p45 = scmp.ne.s32.totalorder %s33, %s34
      %p46 = scmp.eq.s32.totalorder %s29, 1
      %p47 = por %p45, %p46
      %p49 = scmp.ne.s32.totalorder %s34, %s48
      %p50 = scmp.eq.s32.totalorder %s29, 0
      %p51 = por %p49, %p50
      %s53 = sadd.s32 %s52, 1
      %p56 = scmp.eq.s32.totalorder %s23, 1
      %p57 = scmp.ne.s32.totalorder %s52, %s54
      %p58 = scmp.eq.s32.totalorder %s23, 0
      %p59 = por %p57, %p58
      %p60 = scmp.ne.s32.totalorder %s52, %s54
      %p61 = scmp.eq.s32.totalorder %s28, 1
      %p62 = por %p60, %p61
      %p63 = scmp.ne.s32.totalorder %s54, %s55
      %p64 = scmp.eq.s32.totalorder %s28, 0
      %p65 = por %p63, %p64
      %p66 = scmp.ne.s32.totalorder %s54, %s55
      %p67 = scmp.eq.s32.totalorder %s29, 1
      %p68 = por %p66, %p67
      %p70 = scmp.ne.s32.totalorder %s55, %s69
      %p71 = scmp.eq.s32.totalorder %s29, 0
      %p72 = por %p70, %p71
      %s74 = sadd.s32 %s73, 1
      %p77 = scmp.eq.s32.totalorder %s23, 1
      %p78 = scmp.ne.s32.totalorder %s73, %s75
      %p79 = scmp.eq.s32.totalorder %s23, 0
      %p80 = por %p78, %p79
      %p81 = scmp.ne.s32.totalorder %s73, %s75
      %p82 = scmp.eq.s32.totalorder %s28, 1
      %p83 = por %p81, %p82
      %p84 = scmp.ne.s32.totalorder %s75, %s76
      %p85 = scmp.eq.s32.totalorder %s28, 0
      %p86 = por %p84, %p85
      %p87 = scmp.ne.s32.totalorder %s75, %s76
      %p88 = scmp.eq.s32.totalorder %s29, 1
      %p89 = por %p87, %p88
      %p91 = scmp.ne.s32.totalorder %s76, %s90
      %p92 = scmp.eq.s32.totalorder %s29, 0
      %p93 = por %p91, %p92
      %s95 = sadd.s32 %s94, 1
      %p98 = scmp.eq.s32.totalorder %s23, 1
      %p99 = scmp.ne.s32.totalorder %s94, %s96
      %p100 = scmp.eq.s32.totalorder %s23, 0
      %p101 = por %p99, %p100
      %p102 = scmp.ne.s32.totalorder %s94, %s96
      %p103 = scmp.eq.s32.totalorder %s28, 1
      %p104 = por %p102, %p103
      %p105 = scmp.ne.s32.totalorder %s96, %s97
      %p106 = scmp.eq.s32.totalorder %s28, 0
      %p107 = por %p105, %p106
      %p108 = scmp.ne.s32.totalorder %s96, %s97
      %p109 = scmp.eq.s32.totalorder %s29, 1
      %p110 = por %p108, %p109
      %p112 = scmp.ne.s32.totalorder %s97, %s111
      %p113 = scmp.eq.s32.totalorder %s29, 0
      %p114 = por %p112, %p113
      %s116 = sadd.s32 %s115, 1
      %p119 = scmp.eq.s32.totalorder %s23, 1
      %p120 = scmp.ne.s32.totalorder %s115, %s117
      %p121 = scmp.eq.s32.totalorder %s23, 0
      %p122 = por %p120, %p121
      %p123 = scmp.ne.s32.totalorder %s115, %s117
      %p124 = scmp.eq.s32.totalorder %s28, 1
      %p125 = por %p123, %p124
      %p126 = scmp.ne.s32.totalorder %s117, %s118
      %p127 = scmp.eq.s32.totalorder %s28, 0
      %p128 = por %p126, %p127
      %p129 = scmp.ne.s32.totalorder %s117, %s118
      %p130 = scmp.eq.s32.totalorder %s29, 1
      %p131 = por %p129, %p130
      %p133 = scmp.ne.s32.totalorder %s118, %s132
      %p134 = scmp.eq.s32.totalorder %s29, 0
      %p135 = por %p133, %p134
      %s136 = ssub.s32 %s23, %s30
      %p137 = scmp.eq.s32.totalorder %s136, 0
      %s139 = sadd.s32 %s138, 1
      %s140 = scalar_select %p137, %s138, %s139
      %p143 = pneg %p137
      %p144 = scmp.eq.s32.totalorder %s23, 1
      %p145 = por %p143, %p144
      %p146 = scmp.ne.s32.totalorder %s138, %s141
      %p147 = scmp.eq.s32.totalorder %s23, 0
      %p148 = por %p146, %p147
      %p149 = scmp.ne.s32.totalorder %s138, %s141
      %p150 = scmp.eq.s32.totalorder %s28, 1
      %p151 = por %p149, %p150
      %p152 = scmp.ne.s32.totalorder %s141, %s142
      %p153 = scmp.eq.s32.totalorder %s28, 0
      %p154 = por %p152, %p153
      %p155 = scmp.ne.s32.totalorder %s141, %s142
      %p156 = scmp.eq.s32.totalorder %s29, 1
      %p157 = por %p155, %p156
      %p159 = scmp.ne.s32.totalorder %s142, %s158
      %p160 = scmp.eq.s32.totalorder %s29, 0
      %p161 = por %p159, %p160
      %s162 = ssub.s32 %s23, %s30
      %p163 = scmp.eq.s32.totalorder %s162, 0
      %s165 = sadd.s32 %s164, 1
      %s166 = scalar_select %p163, %s164, %s165
      %p169 = pneg %p163
      %p170 = scmp.eq.s32.totalorder %s23, 1
      %p171 = por %p169, %p170
      %p172 = scmp.ne.s32.totalorder %s164, %s167
      %p173 = scmp.eq.s32.totalorder %s23, 0
      %p174 = por %p172, %p173
      %p175 = scmp.ne.s32.totalorder %s164, %s167
      %p176 = scmp.eq.s32.totalorder %s28, 1
      %p177 = por %p175, %p176
      %p178 = scmp.ne.s32.totalorder %s167, %s168
      %p179 = scmp.eq.s32.totalorder %s28, 0
      %p180 = por %p178, %p179
      %p181 = scmp.ne.s32.totalorder %s167, %s168
      %p182 = scmp.eq.s32.totalorder %s29, 1
      %p183 = por %p181, %p182
      %p185 = scmp.ne.s32.totalorder %s168, %s184
      %p186 = scmp.eq.s32.totalorder %s29, 0
      %p187 = por %p185, %p186
      %s188 = ssub.s32 %s23, %s30
      %p189 = scmp.eq.s32.totalorder %s188, 0
      %s191 = sadd.s32 %s190, 1
      %s192 = scalar_select %p189, %s190, %s191
      %p195 = pneg %p189
      %p196 = scmp.eq.s32.totalorder %s23, 1
      %p197 = por %p195, %p196
      %p198 = scmp.ne.s32.totalorder %s190, %s193
      %p199 = scmp.eq.s32.totalorder %s23, 0
      %p200 = por %p198, %p199
      %p201 = scmp.ne.s32.totalorder %s190, %s193
      %p202 = scmp.eq.s32.totalorder %s28, 1
      %p203 = por %p201, %p202
      %p204 = scmp.ne.s32.totalorder %s193, %s194
      %p205 = scmp.eq.s32.totalorder %s28, 0
      %p206 = por %p204, %p205
      %p207 = scmp.ne.s32.totalorder %s193, %s194
      %p208 = scmp.eq.s32.totalorder %s29, 1
      %p209 = por %p207, %p208
      %p211 = scmp.ne.s32.totalorder %s194, %s210
      %p212 = scmp.eq.s32.totalorder %s29, 0
      %p213 = por %p211, %p212
      %p214 = scmp.le.s32.totalorder 1, %s23
      %p215 = scmp.lt.s32.totalorder %s23, 3
      %p216 = pnand %p214, %p215
      %p217 = pneg %p216
      // Predicated region
      $region9: #{game_of_life_forward.1} parent=5 // pred_check
        _
      $region10: #{game_of_life_forward.1} parent=5 // pred_check_branch
        %219 = sbr.rel (%p216) target = $region12
      $region11: #{game_of_life_forward.1} parent=5 // pred_region
        %s220 = ssub.s32 %s23, 1
        // Predicated region
        $region13: #{game_of_life_forward.1} parent=11 // pred_check
          %p221 = pneg %p44
        $region14: #{game_of_life_forward.1} parent=11 // pred_check_branch
          %223 = sbr.rel (%p221) target = $region16
        $region15: #{game_of_life_forward.1} parent=11 // pred_region
          _
        $region16: #{game_of_life_forward.1} parent=11 // pred_fallthru
          _
        // Predicated region
        $region17: #{game_of_life_forward.1} parent=11 // pred_check
          %p224 = pneg %p65
        $region18: #{game_of_life_forward.1} parent=11 // pred_check_branch
          %226 = sbr.rel (%p224) target = $region20
        $region19: #{game_of_life_forward.1} parent=11 // pred_region
          %s228 = ssub.s32 64, 64
          %229 = vsyncadd [#allocation6], %s228
          %232 = dma.hbm_to_smem %s1, 64, [#allocation4], [#allocation6]
        $region20: #{game_of_life_forward.1} parent=11 // pred_fallthru
          _
        // Predicated region
        $region21: #{game_of_life_forward.1} parent=11 // pred_check
          %p233 = pneg %p86
        $region22: #{game_of_life_forward.1} parent=11 // pred_check_branch
          %235 = sbr.rel (%p233) target = $region24
        $region23: #{game_of_life_forward.1} parent=11 // pred_region
          _
        $region24: #{game_of_life_forward.1} parent=11 // pred_fallthru
          _
        // Predicated region
        $region25: #{game_of_life_forward.1} parent=11 // pred_check
          %p236 = pneg %p107
        $region26: #{game_of_life_forward.1} parent=11 // pred_check_branch
          %238 = sbr.rel (%p236) target = $region28
        $region27: #{game_of_life_forward.1} parent=11 // pred_region
          %s240 = ssub.s32 64, 64
          %241 = vsyncadd [#allocation8], %s240
          %244 = dma.hbm_to_smem %s3, 64, [#allocation7], [#allocation8]
        $region28: #{game_of_life_forward.1} parent=11 // pred_fallthru
          _
        // Predicated region
        $region29: #{game_of_life_forward.1} parent=11 // pred_check
          %p245 = pneg %p128
        $region30: #{game_of_life_forward.1} parent=11 // pred_check_branch
          %247 = sbr.rel (%p245) target = $region32
        $region31: #{game_of_life_forward.1} parent=11 // pred_region
          _
        $region32: #{game_of_life_forward.1} parent=11 // pred_fallthru
          _
      $region12: #{game_of_life_forward.1} parent=5 // pred_fallthru
        _
      %p248 = scmp.lt.s32.totalorder %s23, 2
      // Predicated region
      $region33: #{game_of_life_forward.1} parent=5 // pred_check
        %p249 = pneg %p248
      $region34: #{game_of_life_forward.1} parent=5 // pred_check_branch
        %251 = sbr.rel (%p249) target = $region36
      $region35: #{game_of_life_forward.1} parent=5 // pred_region
        // Predicated region
        $region37: #{game_of_life_forward.1} parent=35 // pred_check
          %p252 = pneg %p148
        $region38: #{game_of_life_forward.1} parent=35 // pred_check_branch
          %254 = sbr.rel (%p252) target = $region40
        $region39: #{game_of_life_forward.1} parent=35 // pred_region
          %s255 = sand.u32 %s138, 1
          %s256 = scalar_lea.sflag [#allocation5], %s255
          %s257 = sand.u32 %s138, 1
          %s258 = smul.addr %s257, 4096
          %s259 = scalar_lea.vmem [#allocation9], %s258
          %s260 = smul.u32 4, %s23
          %s262 = ssub.s32 65536, 65536
          %263 = vsyncadd %s256, %s262
          %s264 = smul.addr %s260, 128
          %s265 = scalar_lea.hbm %s5, %s264
          %s266 = sshll.u32 %s259, 4
          %s267 = int_to_ptr.vmem [resolvable:$true] %s266
          %272 = dma.hbm_to_vmem [thread:$0]  %s265, 65536, %s267, %s256, 1024, 512, 32
        $region40: #{game_of_life_forward.1} parent=35 // pred_fallthru
          _
        // Predicated region
        $region41: #{game_of_life_forward.1} parent=35 // pred_check
          %p273 = pneg %p174
        $region42: #{game_of_life_forward.1} parent=35 // pred_check_branch
          %275 = sbr.rel (%p273) target = $region44
        $region43: #{game_of_life_forward.1} parent=35 // pred_region
          %s276 = sand.u32 %s164, 1
          %s277 = scalar_lea.sflag [#allocation11], %s276
          %s278 = sand.u32 %s164, 1
          %s279 = smul.addr %s278, 4
          %s280 = scalar_lea.vmem [#allocation10], %s279
          %s281 = smul.u32 4, %s23
          %s283 = ssub.s32 64, 64
          %284 = vsyncadd %s277, %s283
          %s285 = smul.addr %s281, 16
          %s286 = scalar_lea.hbm %s6, %s285
          %s288 = sshll.u32 %s280, 4
          %s289 = int_to_ptr.vmem [resolvable:$true] %s288
          %291 = dma.hbm_to_vmem [thread:$0]  %s286, 64, %s289, %s277
        $region44: #{game_of_life_forward.1} parent=35 // pred_fallthru
          _
      $region36: #{game_of_life_forward.1} parent=5 // pred_fallthru
        _
      %p292 = scmp.le.s32.totalorder 1, %s23
      %p293 = scmp.lt.s32.totalorder %s23, 3
      %p294 = pnand %p292, %p293
      %p295 = pneg %p294
      // Predicated region
      $region45: #{game_of_life_forward.1} parent=5 // pred_check
        _
      $region46: #{game_of_life_forward.1} parent=5 // pred_check_branch
        %297 = sbr.rel (%p294) target = $region48
      $region47: #{game_of_life_forward.1} parent=5 // pred_region
        %s298 = ssub.s32 %s23, 1
        // Predicated region
        $region49: #{game_of_life_forward.1} parent=47 // pred_check
          %p299 = pneg %p65
        $region50: #{game_of_life_forward.1} parent=47 // pred_check_branch
          %301 = sbr.rel (%p299) target = $region52
        $region51: #{game_of_life_forward.1} parent=47 // pred_region
          %302 = dma.done [#allocation6], 64
        $region52: #{game_of_life_forward.1} parent=47 // pred_fallthru
          _
        // Predicated region
        $region53: #{game_of_life_forward.1} parent=47 // pred_check
          %p303 = pneg %p107
        $region54: #{game_of_life_forward.1} parent=47 // pred_check_branch
          %305 = sbr.rel (%p303) target = $region56
        $region55: #{game_of_life_forward.1} parent=47 // pred_region
          %306 = dma.done [#allocation8], 64
        $region56: #{game_of_life_forward.1} parent=47 // pred_fallthru
          _
        %s307 = sand.u32 %s141, 1
        %s308 = scalar_lea.sflag [#allocation5], %s307
        %s309 = sand.u32 %s141, 1
        %s310 = smul.addr %s309, 4096
        %s311 = scalar_lea.vmem [#allocation9], %s310
        // Predicated region
        $region57: #{game_of_life_forward.1} parent=47 // pred_check
          %p312 = pneg %p154
        $region58: #{game_of_life_forward.1} parent=47 // pred_check_branch
          %314 = sbr.rel (%p312) target = $region60
        $region59: #{game_of_life_forward.1} parent=47 // pred_region
          %315 = dma.done %s308, 65536
        $region60: #{game_of_life_forward.1} parent=47 // pred_fallthru
          _
        %s316 = sand.u32 %s167, 1
        %s317 = scalar_lea.sflag [#allocation11], %s316
        %s318 = sand.u32 %s167, 1
        %s319 = smul.addr %s318, 4
        %s320 = scalar_lea.vmem [#allocation10], %s319
        // Predicated region
        $region61: #{game_of_life_forward.1} parent=47 // pred_check
          %p321 = pneg %p180
        $region62: #{game_of_life_forward.1} parent=47 // pred_check_branch
          %323 = sbr.rel (%p321) target = $region64
        $region63: #{game_of_life_forward.1} parent=47 // pred_region
          %324 = dma.done %s317, 64
        $region64: #{game_of_life_forward.1} parent=47 // pred_fallthru
          _
        %325 = sfence
        %p326 = pneg %p44
        %p327 = pneg %p41
        %p328 = pneg %p65
        %p329 = pneg %p62
        %p330 = pneg %p86
        %p331 = pneg %p83
        %p332 = pneg %p107
        %p333 = pneg %p104
        %p334 = pneg %p128
        %p335 = pneg %p125
        %s336 = sand.u32 %s141, 1
        %s337 = scalar_lea.sflag [#allocation5], %s336
        %s338 = sand.u32 %s141, 1
        %s339 = smul.addr %s338, 4096
        %s340 = scalar_lea.vmem [#allocation9], %s339
        %p341 = pneg %p154
        %p342 = pneg %p151
        %s343 = sand.u32 %s167, 1
        %s344 = scalar_lea.sflag [#allocation11], %s343
        %s345 = sand.u32 %s167, 1
        %s346 = smul.addr %s345, 4
        %s347 = scalar_lea.vmem [#allocation10], %s346
        %p348 = pneg %p180
        %p349 = pneg %p177
        %p350 = pneg %p206
        %p351 = pneg %p203
        %s352 = smul.u32 4, %s28
        %p353 = scmp.lt.s32.totalorder %s352, 7
        %s354 = scalar_select %p353, %s352, 7
        %s355 = smul.addr %s354, 2
        %s356 = scalar_lea.vmem %s7, %s355
        %s357 = smul.u32 4, %s28
        %s358 = smul.u32 4, %s28
        %s359 = smul.u32 4, %s28
        %p360 = scmp.lt.s32.totalorder %s359, 7
        %s361 = scalar_select %p360, %s359, 7
        %s362 = smul.addr %s361, 2
        %s363 = scalar_lea.vmem %s7, %s362
        %s364 = smul.u32 4, %s28
        %v365 = vld [vmem:[%s0] sm:$0xff]
        %v366 = vld [vmem:[%s0 + $0x8] sm:$0xff]
        %v367 = vlaneseq
        %v368 = vand.u32 %v367, 127
        %v369 = vadd.s32 %v368, 128
        %v370 = vadd.s32 %v368, 256
        %v371 = vadd.s32 %v368, 384
        %v372 = vadd.s32 %v368, 512
        %v373 = vadd.s32 %v368, 640
        %v374 = vadd.s32 %v368, 768
        %v375 = vadd.s32 %v368, 896
        %v376 = vand.u32 %v368, 31
        %v377 = vand.u32 %v369, 31
        %v378 = vand.u32 %v370, 31
        %v379 = vand.u32 %v371, 31
        %v380 = vand.u32 %v372, 31
        %v381 = vand.u32 %v373, 31
        %v382 = vand.u32 %v374, 31
        %v383 = vand.u32 %v375, 31
        %vm384 = vcmp.ge.s32.totalorder %v368, 32
        %vm385 = vcmp.ge.s32.totalorder %v369, 32
        %vm386 = vcmp.ge.s32.totalorder %v370, 32
        %vm387 = vcmp.ge.s32.totalorder %v371, 32
        %vm388 = vcmp.ge.s32.totalorder %v372, 32
        %vm389 = vcmp.ge.s32.totalorder %v373, 32
        %vm390 = vcmp.ge.s32.totalorder %v374, 32
        %vm391 = vcmp.ge.s32.totalorder %v375, 32
        %vm392 = vcmp.lt.s32.totalorder %v368, 992
        %vm393 = vcmp.lt.s32.totalorder %v369, 992
        %vm394 = vcmp.lt.s32.totalorder %v370, 992
        %vm395 = vcmp.lt.s32.totalorder %v371, 992
        %vm396 = vcmp.lt.s32.totalorder %v372, 992
        %vm397 = vcmp.lt.s32.totalorder %v373, 992
        %vm398 = vcmp.lt.s32.totalorder %v374, 992
        %vm399 = vcmp.lt.s32.totalorder %v375, 992
        %vm400 = vcmp.gt.s32.totalorder %v376, 0
        %vm401 = vcmp.gt.s32.totalorder %v377, 0
        %vm402 = vcmp.gt.s32.totalorder %v378, 0
        %vm403 = vcmp.gt.s32.totalorder %v379, 0
        %vm404 = vcmp.gt.s32.totalorder %v380, 0
        %vm405 = vcmp.gt.s32.totalorder %v381, 0
        %vm406 = vcmp.gt.s32.totalorder %v382, 0
        %vm407 = vcmp.gt.s32.totalorder %v383, 0
        %vm408 = vcmp.lt.s32.totalorder %v376, 31
        %vm409 = vcmp.lt.s32.totalorder %v377, 31
        %vm410 = vcmp.lt.s32.totalorder %v378, 31
        %vm411 = vcmp.lt.s32.totalorder %v379, 31
        %vm412 = vcmp.lt.s32.totalorder %v380, 31
        %vm413 = vcmp.lt.s32.totalorder %v381, 31
        %vm414 = vcmp.lt.s32.totalorder %v382, 31
        %vm415 = vcmp.lt.s32.totalorder %v383, 31
        %vm416 = vmand %vm384, %vm400
        %vm417 = vmand %vm385, %vm401
        %vm418 = vmand %vm386, %vm402
        %vm419 = vmand %vm387, %vm403
        %vm420 = vmand %vm388, %vm404
        %vm421 = vmand %vm389, %vm405
        %vm422 = vmand %vm390, %vm406
        %vm423 = vmand %vm391, %vm407
        %vm424 = vmand %vm384, %vm408
        %vm425 = vmand %vm385, %vm409
        %vm426 = vmand %vm386, %vm410
        %vm427 = vmand %vm387, %vm411
        %vm428 = vmand %vm388, %vm412
        %vm429 = vmand %vm389, %vm413
        %vm430 = vmand %vm390, %vm414
        %vm431 = vmand %vm391, %vm415
        %vm432 = vmand %vm392, %vm400
        %vm433 = vmand %vm393, %vm401
        %vm434 = vmand %vm394, %vm402
        %vm435 = vmand %vm395, %vm403
        %vm436 = vmand %vm396, %vm404
        %vm437 = vmand %vm397, %vm405
        %vm438 = vmand %vm398, %vm406
        %vm439 = vmand %vm399, %vm407
        %vm440 = vmand %vm392, %vm408
        %vm441 = vmand %vm393, %vm409
        %vm442 = vmand %vm394, %vm410
        %vm443 = vmand %vm395, %vm411
        %vm444 = vmand %vm396, %vm412
        %vm445 = vmand %vm397, %vm413
        %vm446 = vmand %vm398, %vm414
        %vm447 = vmand %vm399, %vm415
        %s448 = sld [smem:[#allocation4 + $0x81]]
        %v449 = vstv %s448
        %v450 = vmul.f32 %v449, %v365
        %v451 = vmul.f32 %v449, %v366
        %v454 = vcombine.high %v365, %v365
        %v456 = vunpack.c.l.s4 1983009808
        %v457 = vunpack.c.0.s8 %v456
        %v458 = vlaneseq
        %v459 = vshrl.u32 %v458, 7
        %v460 = vsub.s32 %v457, %v459
        %v461 = vrot.slane %v365, %v460
        %v463 = vunpack.c.l.s4 1983009808
        %v464 = vunpack.c.0.s8 %v463
        %v465 = vlaneseq
        %v466 = vshrl.u32 %v465, 7
        %v467 = vsub.s32 %v464, %v466
        %v468 = vrot.slane %v454, %v467
        %v469 = vcombine.high %v461, %v461
        %v470 = vcombine.high %v468, %v468
        %v471 = vcombine.high %v366, %v366
        %v473 = vunpack.c.l.s4 1983009808
        %v474 = vunpack.c.0.s8 %v473
        %v475 = vlaneseq
        %v476 = vshrl.u32 %v475, 7
        %v477 = vsub.s32 %v474, %v476
        %v478 = vrot.slane %v366, %v477
        %v480 = vunpack.c.l.s4 1983009808
        %v481 = vunpack.c.0.s8 %v480
        %v482 = vlaneseq
        %v483 = vshrl.u32 %v482, 7
        %v484 = vsub.s32 %v481, %v483
        %v485 = vrot.slane %v471, %v484
        %v486 = vcombine.high %v478, %v478
        %v487 = vcombine.high %v485, %v485
        %496 = vrot.lane.b32.xlu0 %v461, 33
        %v497 = vpop.permute.xlu0 %496
        %498 = vrot.lane.b32.xlu0 %v469, 33
        %v499 = vpop.permute.xlu0 %498
        %500 = vrot.lane.b32.xlu0 %v468, 33
        %v501 = vpop.permute.xlu0 %500
        %502 = vrot.lane.b32.xlu0 %v470, 33
        %v503 = vpop.permute.xlu0 %502
        %504 = vrot.lane.b32.xlu0 %v478, 33
        %v505 = vpop.permute.xlu0 %504
        %506 = vrot.lane.b32.xlu0 %v486, 33
        %v507 = vpop.permute.xlu0 %506
        %508 = vrot.lane.b32.xlu0 %v485, 33
        %v509 = vpop.permute.xlu0 %508
        %510 = vrot.lane.b32.xlu0 %v487, 33
        %v511 = vpop.permute.xlu0 %510
        %vm512 = vcmp.lt.s32.totalorder %v368, 33
        %v513 = vsel %vm512, %v509, %v511
        %v514 = vsel %vm512, %v507, %v509
        %v515 = vsel %vm512, %v505, %v507
        %v516 = vsel %vm512, %v503, %v505
        %v517 = vsel %vm512, %v501, %v503
        %v518 = vsel %vm512, %v499, %v501
        %v519 = vsel %vm512, %v497, %v499
        %v520 = vsel %vm512, %v511, %v497
        %s521 = sld [smem:[#allocation4]]
        %v522 = vsel %vm416, %v520, 0.0
        %v523 = vsel %vm417, %v519, 0.0
        %v524 = vsel %vm418, %v518, 0.0
        %v525 = vsel %vm419, %v517, 0.0
        %v526 = vsel %vm420, %v516, 0.0
        %v527 = vsel %vm421, %v515, 0.0
        %v528 = vsel %vm422, %v514, 0.0
        %v529 = vsel %vm423, %v513, 0.0
        %v530 = vstv %s521
        %v531 = vmul.f32 %v530, %v522
        %v532 = vmul.f32 %v530, %v523
        %v533 = vmul.f32 %v530, %v524
        %v534 = vmul.f32 %v530, %v525
        %v535 = vmul.f32 %v530, %v526
        %v536 = vmul.f32 %v530, %v527
        %v537 = vmul.f32 %v530, %v528
        %v538 = vmul.f32 %v530, %v529
        %v547 = vcombine.low %v531, %v532
        %v548 = vcombine.low %v533, %v534
        %v550 = vunpack.c.l.s4 1983009808
        %v551 = vunpack.c.0.s8 %v550
        %v552 = vlaneseq
        %v553 = vshrl.u32 %v552, 7
        %v554 = vsub.s32 %v551, %v553
        %v555 = vrot.slane %v547, %v554
        %v557 = vunpack.c.l.s4 1983009808
        %v558 = vunpack.c.0.s8 %v557
        %v559 = vlaneseq
        %v560 = vshrl.u32 %v559, 7
        %v561 = vsub.s32 %v558, %v560
        %v562 = vrot.slane %v548, %v561
        %v563 = vcombine.low %v555, %v562
        %v564 = vcombine.low %v535, %v536
        %v565 = vcombine.low %v537, %v538
        %v567 = vunpack.c.l.s4 1983009808
        %v568 = vunpack.c.0.s8 %v567
        %v569 = vlaneseq
        %v570 = vshrl.u32 %v569, 7
        %v571 = vsub.s32 %v568, %v570
        %v572 = vrot.slane %v564, %v571
        %v574 = vunpack.c.l.s4 1983009808
        %v575 = vunpack.c.0.s8 %v574
        %v576 = vlaneseq
        %v577 = vshrl.u32 %v576, 7
        %v578 = vsub.s32 %v575, %v577
        %v579 = vrot.slane %v565, %v578
        %v580 = vcombine.low %v572, %v579
        %v583 = vadd.f32 %v450, %v563
        %v584 = vadd.f32 %v451, %v580
        %585 = vrot.lane.b32.xlu0 %v461, 32
        %v586 = vpop.permute.xlu0 %585
        %587 = vrot.lane.b32.xlu0 %v469, 32
        %v588 = vpop.permute.xlu0 %587
        %589 = vrot.lane.b32.xlu0 %v468, 32
        %v590 = vpop.permute.xlu0 %589
        %591 = vrot.lane.b32.xlu0 %v470, 32
        %v592 = vpop.permute.xlu0 %591
        %593 = vrot.lane.b32.xlu0 %v478, 32
        %v594 = vpop.permute.xlu0 %593
        %595 = vrot.lane.b32.xlu0 %v486, 32
        %v596 = vpop.permute.xlu0 %595
        %597 = vrot.lane.b32.xlu0 %v485, 32
        %v598 = vpop.permute.xlu0 %597
        %599 = vrot.lane.b32.xlu0 %v487, 32
        %v600 = vpop.permute.xlu0 %599
        %vm601 = vcmp.lt.s32.totalorder %v368, 32
        %v602 = vsel %vm601, %v598, %v600
        %v603 = vsel %vm601, %v596, %v598
        %v604 = vsel %vm601, %v594, %v596
        %v605 = vsel %vm601, %v592, %v594
        %v606 = vsel %vm601, %v590, %v592
        %v607 = vsel %vm601, %v588, %v590
        %v608 = vsel %vm601, %v586, %v588
        %v609 = vsel %vm601, %v600, %v586
        %s610 = sld [smem:[#allocation4 + $0x1]]
        %v611 = vsel %vm384, %v609, 0.0
        %v612 = vsel %vm385, %v608, 0.0
        %v613 = vsel %vm386, %v607, 0.0
        %v614 = vsel %vm387, %v606, 0.0
        %v615 = vsel %vm388, %v605, 0.0
        %v616 = vsel %vm389, %v604, 0.0
        %v617 = vsel %vm390, %v603, 0.0
        %v618 = vsel %vm391, %v602, 0.0
        %v619 = vstv %s610
        %v620 = vmul.f32 %v619, %v611
        %v621 = vmul.f32 %v619, %v612
        %v622 = vmul.f32 %v619, %v613
        %v623 = vmul.f32 %v619, %v614
        %v624 = vmul.f32 %v619, %v615
        %v625 = vmul.f32 %v619, %v616
        %v626 = vmul.f32 %v619, %v617
        %v627 = vmul.f32 %v619, %v618
        %v636 = vcombine.low %v620, %v621
        %v637 = vcombine.low %v622, %v623
        %v639 = vunpack.c.l.s4 1983009808
        %v640 = vunpack.c.0.s8 %v639
        %v641 = vlaneseq
        %v642 = vshrl.u32 %v641, 7
        %v643 = vsub.s32 %v640, %v642
        %v644 = vrot.slane %v636, %v643
        %v646 = vunpack.c.l.s4 1983009808
        %v647 = vunpack.c.0.s8 %v646
        %v648 = vlaneseq
        %v649 = vshrl.u32 %v648, 7
        %v650 = vsub.s32 %v647, %v649
        %v651 = vrot.slane %v637, %v650
        %v652 = vcombine.low %v644, %v651
        %v653 = vcombine.low %v624, %v625
        %v654 = vcombine.low %v626, %v627
        %v656 = vunpack.c.l.s4 1983009808
        %v657 = vunpack.c.0.s8 %v656
        %v658 = vlaneseq
        %v659 = vshrl.u32 %v658, 7
        %v660 = vsub.s32 %v657, %v659
        %v661 = vrot.slane %v653, %v660
        %v663 = vunpack.c.l.s4 1983009808
        %v664 = vunpack.c.0.s8 %v663
        %v665 = vlaneseq
        %v666 = vshrl.u32 %v665, 7
        %v667 = vsub.s32 %v664, %v666
        %v668 = vrot.slane %v654, %v667
        %v669 = vcombine.low %v661, %v668
        %v672 = vadd.f32 %v583, %v652
        %v673 = vadd.f32 %v584, %v669
        %674 = vrot.lane.b32.xlu0 %v461, 31
        %v675 = vpop.permute.xlu0 %674
        %676 = vrot.lane.b32.xlu0 %v469, 31
        %v677 = vpop.permute.xlu0 %676
        %678 = vrot.lane.b32.xlu0 %v468, 31
        %v679 = vpop.permute.xlu0 %678
        %680 = vrot.lane.b32.xlu0 %v470, 31
        %v681 = vpop.permute.xlu0 %680
        %682 = vrot.lane.b32.xlu0 %v478, 31
        %v683 = vpop.permute.xlu0 %682
        %684 = vrot.lane.b32.xlu0 %v486, 31
        %v685 = vpop.permute.xlu0 %684
        %686 = vrot.lane.b32.xlu0 %v485, 31
        %v687 = vpop.permute.xlu0 %686
        %688 = vrot.lane.b32.xlu0 %v487, 31
        %v689 = vpop.permute.xlu0 %688
        %vm690 = vcmp.lt.s32.totalorder %v368, 31
        %v691 = vsel %vm690, %v687, %v689
        %v692 = vsel %vm690, %v685, %v687
        %v693 = vsel %vm690, %v683, %v685
        %v694 = vsel %vm690, %v681, %v683
        %v695 = vsel %vm690, %v679, %v681
        %v696 = vsel %vm690, %v677, %v679
        %v697 = vsel %vm690, %v675, %v677
        %v698 = vsel %vm690, %v689, %v675
        %s699 = sld [smem:[#allocation4 + $0x2]]
        %v700 = vsel %vm424, %v698, 0.0
        %v701 = vsel %vm425, %v697, 0.0
        %v702 = vsel %vm426, %v696, 0.0
        %v703 = vsel %vm427, %v695, 0.0
        %v704 = vsel %vm428, %v694, 0.0
        %v705 = vsel %vm429, %v693, 0.0
        %v706 = vsel %vm430, %v692, 0.0
        %v707 = vsel %vm431, %v691, 0.0
        %v708 = vstv %s699
        %v709 = vmul.f32 %v708, %v700
        %v710 = vmul.f32 %v708, %v701
        %v711 = vmul.f32 %v708, %v702
        %v712 = vmul.f32 %v708, %v703
        %v713 = vmul.f32 %v708, %v704
        %v714 = vmul.f32 %v708, %v705
        %v715 = vmul.f32 %v708, %v706
        %v716 = vmul.f32 %v708, %v707
        %v725 = vcombine.low %v709, %v710
        %v726 = vcombine.low %v711, %v712
        %v728 = vunpack.c.l.s4 1983009808
        %v729 = vunpack.c.0.s8 %v728
        %v730 = vlaneseq
        %v731 = vshrl.u32 %v730, 7
        %v732 = vsub.s32 %v729, %v731
        %v733 = vrot.slane %v725, %v732
        %v735 = vunpack.c.l.s4 1983009808
        %v736 = vunpack.c.0.s8 %v735
        %v737 = vlaneseq
        %v738 = vshrl.u32 %v737, 7
        %v739 = vsub.s32 %v736, %v738
        %v740 = vrot.slane %v726, %v739
        %v741 = vcombine.low %v733, %v740
        %v742 = vcombine.low %v713, %v714
        %v743 = vcombine.low %v715, %v716
        %v745 = vunpack.c.l.s4 1983009808
        %v746 = vunpack.c.0.s8 %v745
        %v747 = vlaneseq
        %v748 = vshrl.u32 %v747, 7
        %v749 = vsub.s32 %v746, %v748
        %v750 = vrot.slane %v742, %v749
        %v752 = vunpack.c.l.s4 1983009808
        %v753 = vunpack.c.0.s8 %v752
        %v754 = vlaneseq
        %v755 = vshrl.u32 %v754, 7
        %v756 = vsub.s32 %v753, %v755
        %v757 = vrot.slane %v743, %v756
        %v758 = vcombine.low %v750, %v757
        %v761 = vadd.f32 %v672, %v741
        %v762 = vadd.f32 %v673, %v758
        %763 = vrot.lane.b32.xlu0 %v461, 1
        %v764 = vpop.permute.xlu0 %763
        %765 = vrot.lane.b32.xlu0 %v469, 1
        %v766 = vpop.permute.xlu0 %765
        %767 = vrot.lane.b32.xlu0 %v468, 1
        %v768 = vpop.permute.xlu0 %767
        %769 = vrot.lane.b32.xlu0 %v470, 1
        %v770 = vpop.permute.xlu0 %769
        %771 = vrot.lane.b32.xlu0 %v478, 1
        %v772 = vpop.permute.xlu0 %771
        %773 = vrot.lane.b32.xlu0 %v486, 1
        %v774 = vpop.permute.xlu0 %773
        %775 = vrot.lane.b32.xlu0 %v485, 1
        %v776 = vpop.permute.xlu0 %775
        %777 = vrot.lane.b32.xlu0 %v487, 1
        %v778 = vpop.permute.xlu0 %777
        %vm779 = vcmp.lt.s32.totalorder %v368, 1
        %v780 = vsel %vm779, %v776, %v778
        %v781 = vsel %vm779, %v774, %v776
        %v782 = vsel %vm779, %v772, %v774
        %v783 = vsel %vm779, %v770, %v772
        %v784 = vsel %vm779, %v768, %v770
        %v785 = vsel %vm779, %v766, %v768
        %v786 = vsel %vm779, %v764, %v766
        %v787 = vsel %vm779, %v778, %v764
        %s788 = sld [smem:[#allocation4 + $0x80]]
        %v789 = vsel %vm400, %v787, 0.0
        %v790 = vsel %vm401, %v786, 0.0
        %v791 = vsel %vm402, %v785, 0.0
        %v792 = vsel %vm403, %v784, 0.0
        %v793 = vsel %vm404, %v783, 0.0
        %v794 = vsel %vm405, %v782, 0.0
        %v795 = vsel %vm406, %v781, 0.0
        %v796 = vsel %vm407, %v780, 0.0
        %v797 = vstv %s788
        %v798 = vmul.f32 %v797, %v789
        %v799 = vmul.f32 %v797, %v790
        %v800 = vmul.f32 %v797, %v791
        %v801 = vmul.f32 %v797, %v792
        %v802 = vmul.f32 %v797, %v793
        %v803 = vmul.f32 %v797, %v794
        %v804 = vmul.f32 %v797, %v795
        %v805 = vmul.f32 %v797, %v796
        %v814 = vcombine.low %v798, %v799
        %v815 = vcombine.low %v800, %v801
        %v817 = vunpack.c.l.s4 1983009808
        %v818 = vunpack.c.0.s8 %v817
        %v819 = vlaneseq
        %v820 = vshrl.u32 %v819, 7
        %v821 = vsub.s32 %v818, %v820
        %v822 = vrot.slane %v814, %v821
        %v824 = vunpack.c.l.s4 1983009808
        %v825 = vunpack.c.0.s8 %v824
        %v826 = vlaneseq
        %v827 = vshrl.u32 %v826, 7
        %v828 = vsub.s32 %v825, %v827
        %v829 = vrot.slane %v815, %v828
        %v830 = vcombine.low %v822, %v829
        %v831 = vcombine.low %v802, %v803
        %v832 = vcombine.low %v804, %v805
        %v834 = vunpack.c.l.s4 1983009808
        %v835 = vunpack.c.0.s8 %v834
        %v836 = vlaneseq
        %v837 = vshrl.u32 %v836, 7
        %v838 = vsub.s32 %v835, %v837
        %v839 = vrot.slane %v831, %v838
        %v841 = vunpack.c.l.s4 1983009808
        %v842 = vunpack.c.0.s8 %v841
        %v843 = vlaneseq
        %v844 = vshrl.u32 %v843, 7
        %v845 = vsub.s32 %v842, %v844
        %v846 = vrot.slane %v832, %v845
        %v847 = vcombine.low %v839, %v846
        %v850 = vadd.f32 %v761, %v830
        %v851 = vadd.f32 %v762, %v847
        %852 = vrot.lane.b32.xlu0 %v461, 127
        %v853 = vpop.permute.xlu0 %852
        %854 = vrot.lane.b32.xlu0 %v469, 127
        %v855 = vpop.permute.xlu0 %854
        %856 = vrot.lane.b32.xlu0 %v468, 127
        %v857 = vpop.permute.xlu0 %856
        %858 = vrot.lane.b32.xlu0 %v470, 127
        %v859 = vpop.permute.xlu0 %858
        %860 = vrot.lane.b32.xlu0 %v478, 127
        %v861 = vpop.permute.xlu0 %860
        %862 = vrot.lane.b32.xlu0 %v486, 127
        %v863 = vpop.permute.xlu0 %862
        %864 = vrot.lane.b32.xlu0 %v485, 127
        %v865 = vpop.permute.xlu0 %864
        %866 = vrot.lane.b32.xlu0 %v487, 127
        %v867 = vpop.permute.xlu0 %866
        %vm868 = vcmp.lt.s32.totalorder %v368, 127
        %v869 = vsel %vm868, %v865, %v867
        %v870 = vsel %vm868, %v863, %v865
        %v871 = vsel %vm868, %v861, %v863
        %v872 = vsel %vm868, %v859, %v861
        %v873 = vsel %vm868, %v857, %v859
        %v874 = vsel %vm868, %v855, %v857
        %v875 = vsel %vm868, %v853, %v855
        %v876 = vsel %vm868, %v867, %v853
        %s877 = sld [smem:[#allocation4 + $0x82]]
        %v878 = vsel %vm408, %v875, 0.0
        %v879 = vsel %vm409, %v874, 0.0
        %v880 = vsel %vm410, %v873, 0.0
        %v881 = vsel %vm411, %v872, 0.0
        %v882 = vsel %vm412, %v871, 0.0
        %v883 = vsel %vm413, %v870, 0.0
        %v884 = vsel %vm414, %v869, 0.0
        %v885 = vsel %vm415, %v876, 0.0
        %v886 = vstv %s877
        %v887 = vmul.f32 %v886, %v878
        %v888 = vmul.f32 %v886, %v879
        %v889 = vmul.f32 %v886, %v880
        %v890 = vmul.f32 %v886, %v881
        %v891 = vmul.f32 %v886, %v882
        %v892 = vmul.f32 %v886, %v883
        %v893 = vmul.f32 %v886, %v884
        %v894 = vmul.f32 %v886, %v885
        %v903 = vcombine.low %v887, %v888
        %v904 = vcombine.low %v889, %v890
        %v906 = vunpack.c.l.s4 1983009808
        %v907 = vunpack.c.0.s8 %v906
        %v908 = vlaneseq
        %v909 = vshrl.u32 %v908, 7
        %v910 = vsub.s32 %v907, %v909
        %v911 = vrot.slane %v903, %v910
        %v913 = vunpack.c.l.s4 1983009808
        %v914 = vunpack.c.0.s8 %v913
        %v915 = vlaneseq
        %v916 = vshrl.u32 %v915, 7
        %v917 = vsub.s32 %v914, %v916
        %v918 = vrot.slane %v904, %v917
        %v919 = vcombine.low %v911, %v918
        %v920 = vcombine.low %v891, %v892
        %v921 = vcombine.low %v893, %v894
        %v923 = vunpack.c.l.s4 1983009808
        %v924 = vunpack.c.0.s8 %v923
        %v925 = vlaneseq
        %v926 = vshrl.u32 %v925, 7
        %v927 = vsub.s32 %v924, %v926
        %v928 = vrot.slane %v920, %v927
        %v930 = vunpack.c.l.s4 1983009808
        %v931 = vunpack.c.0.s8 %v930
        %v932 = vlaneseq
        %v933 = vshrl.u32 %v932, 7
        %v934 = vsub.s32 %v931, %v933
        %v935 = vrot.slane %v921, %v934
        %v936 = vcombine.low %v928, %v935
        %v939 = vadd.f32 %v850, %v919
        %v940 = vadd.f32 %v851, %v936
        %941 = vrot.lane.b32.xlu0 %v461, 97
        %v942 = vpop.permute.xlu0 %941
        %943 = vrot.lane.b32.xlu0 %v469, 97
        %v944 = vpop.permute.xlu0 %943
        %945 = vrot.lane.b32.xlu0 %v468, 97
        %v946 = vpop.permute.xlu0 %945
        %947 = vrot.lane.b32.xlu0 %v470, 97
        %v948 = vpop.permute.xlu0 %947
        %949 = vrot.lane.b32.xlu0 %v478, 97
        %v950 = vpop.permute.xlu0 %949
        %951 = vrot.lane.b32.xlu0 %v486, 97
        %v952 = vpop.permute.xlu0 %951
        %953 = vrot.lane.b32.xlu0 %v485, 97
        %v954 = vpop.permute.xlu0 %953
        %955 = vrot.lane.b32.xlu0 %v487, 97
        %v956 = vpop.permute.xlu0 %955
        %vm957 = vcmp.lt.s32.totalorder %v368, 97
        %v958 = vsel %vm957, %v954, %v956
        %v959 = vsel %vm957, %v952, %v954
        %v960 = vsel %vm957, %v950, %v952
        %v961 = vsel %vm957, %v948, %v950
        %v962 = vsel %vm957, %v946, %v948
        %v963 = vsel %vm957, %v944, %v946
        %v964 = vsel %vm957, %v942, %v944
        %v965 = vsel %vm957, %v956, %v942
        %s966 = sld [smem:[#allocation4 + $0x100]]
        %v967 = vsel %vm432, %v964, 0.0
        %v968 = vsel %vm433, %v963, 0.0
        %v969 = vsel %vm434, %v962, 0.0
        %v970 = vsel %vm435, %v961, 0.0
        %v971 = vsel %vm436, %v960, 0.0
        %v972 = vsel %vm437, %v959, 0.0
        %v973 = vsel %vm438, %v958, 0.0
        %v974 = vsel %vm439, %v965, 0.0
        %v975 = vstv %s966
        %v976 = vmul.f32 %v975, %v967
        %v977 = vmul.f32 %v975, %v968
        %v978 = vmul.f32 %v975, %v969
        %v979 = vmul.f32 %v975, %v970
        %v980 = vmul.f32 %v975, %v971
        %v981 = vmul.f32 %v975, %v972
        %v982 = vmul.f32 %v975, %v973
        %v983 = vmul.f32 %v975, %v974
        %v992 = vcombine.low %v976, %v977
        %v993 = vcombine.low %v978, %v979
        %v995 = vunpack.c.l.s4 1983009808
        %v996 = vunpack.c.0.s8 %v995
        %v997 = vlaneseq
        %v998 = vshrl.u32 %v997, 7
        %v999 = vsub.s32 %v996, %v998
        %v1000 = vrot.slane %v992, %v999
        %v1002 = vunpack.c.l.s4 1983009808
        %v1003 = vunpack.c.0.s8 %v1002
        %v1004 = vlaneseq
        %v1005 = vshrl.u32 %v1004, 7
        %v1006 = vsub.s32 %v1003, %v1005
        %v1007 = vrot.slane %v993, %v1006
        %v1008 = vcombine.low %v1000, %v1007
        %v1009 = vcombine.low %v980, %v981
        %v1010 = vcombine.low %v982, %v983
        %v1012 = vunpack.c.l.s4 1983009808
        %v1013 = vunpack.c.0.s8 %v1012
        %v1014 = vlaneseq
        %v1015 = vshrl.u32 %v1014, 7
        %v1016 = vsub.s32 %v1013, %v1015
        %v1017 = vrot.slane %v1009, %v1016
        %v1019 = vunpack.c.l.s4 1983009808
        %v1020 = vunpack.c.0.s8 %v1019
        %v1021 = vlaneseq
        %v1022 = vshrl.u32 %v1021, 7
        %v1023 = vsub.s32 %v1020, %v1022
        %v1024 = vrot.slane %v1010, %v1023
        %v1025 = vcombine.low %v1017, %v1024
        %v1028 = vadd.f32 %v939, %v1008
        %v1029 = vadd.f32 %v940, %v1025
        %1030 = vrot.lane.b32.xlu0 %v461, 96
        %v1031 = vpop.permute.xlu0 %1030
        %1032 = vrot.lane.b32.xlu0 %v469, 96
        %v1033 = vpop.permute.xlu0 %1032
        %1034 = vrot.lane.b32.xlu0 %v468, 96
        %v1035 = vpop.permute.xlu0 %1034
        %1036 = vrot.lane.b32.xlu0 %v470, 96
        %v1037 = vpop.permute.xlu0 %1036
        %1038 = vrot.lane.b32.xlu0 %v478, 96
        %v1039 = vpop.permute.xlu0 %1038
        %1040 = vrot.lane.b32.xlu0 %v486, 96
        %v1041 = vpop.permute.xlu0 %1040
        %1042 = vrot.lane.b32.xlu0 %v485, 96
        %v1043 = vpop.permute.xlu0 %1042
        %1044 = vrot.lane.b32.xlu0 %v487, 96
        %v1045 = vpop.permute.xlu0 %1044
        %vm1046 = vcmp.lt.s32.totalorder %v368, 96
        %v1047 = vsel %vm1046, %v1043, %v1045
        %v1048 = vsel %vm1046, %v1041, %v1043
        %v1049 = vsel %vm1046, %v1039, %v1041
        %v1050 = vsel %vm1046, %v1037, %v1039
        %v1051 = vsel %vm1046, %v1035, %v1037
        %v1052 = vsel %vm1046, %v1033, %v1035
        %v1053 = vsel %vm1046, %v1031, %v1033
        %v1054 = vsel %vm1046, %v1045, %v1031
        %s1055 = sld [smem:[#allocation4 + $0x101]]
        %v1056 = vsel %vm392, %v1053, 0.0
        %v1057 = vsel %vm393, %v1052, 0.0
        %v1058 = vsel %vm394, %v1051, 0.0
        %v1059 = vsel %vm395, %v1050, 0.0
        %v1060 = vsel %vm396, %v1049, 0.0
        %v1061 = vsel %vm397, %v1048, 0.0
        %v1062 = vsel %vm398, %v1047, 0.0
        %v1063 = vsel %vm399, %v1054, 0.0
        %v1064 = vstv %s1055
        %v1065 = vmul.f32 %v1064, %v1056
        %v1066 = vmul.f32 %v1064, %v1057
        %v1067 = vmul.f32 %v1064, %v1058
        %v1068 = vmul.f32 %v1064, %v1059
        %v1069 = vmul.f32 %v1064, %v1060
        %v1070 = vmul.f32 %v1064, %v1061
        %v1071 = vmul.f32 %v1064, %v1062
        %v1072 = vmul.f32 %v1064, %v1063
        %v1081 = vcombine.low %v1065, %v1066
        %v1082 = vcombine.low %v1067, %v1068
        %v1084 = vunpack.c.l.s4 1983009808
        %v1085 = vunpack.c.0.s8 %v1084
        %v1086 = vlaneseq
        %v1087 = vshrl.u32 %v1086, 7
        %v1088 = vsub.s32 %v1085, %v1087
        %v1089 = vrot.slane %v1081, %v1088
        %v1091 = vunpack.c.l.s4 1983009808
        %v1092 = vunpack.c.0.s8 %v1091
        %v1093 = vlaneseq
        %v1094 = vshrl.u32 %v1093, 7
        %v1095 = vsub.s32 %v1092, %v1094
        %v1096 = vrot.slane %v1082, %v1095
        %v1097 = vcombine.low %v1089, %v1096
        %v1098 = vcombine.low %v1069, %v1070
        %v1099 = vcombine.low %v1071, %v1072
        %v1101 = vunpack.c.l.s4 1983009808
        %v1102 = vunpack.c.0.s8 %v1101
        %v1103 = vlaneseq
        %v1104 = vshrl.u32 %v1103, 7
        %v1105 = vsub.s32 %v1102, %v1104
        %v1106 = vrot.slane %v1098, %v1105
        %v1108 = vunpack.c.l.s4 1983009808
        %v1109 = vunpack.c.0.s8 %v1108
        %v1110 = vlaneseq
        %v1111 = vshrl.u32 %v1110, 7
        %v1112 = vsub.s32 %v1109, %v1111
        %v1113 = vrot.slane %v1099, %v1112
        %v1114 = vcombine.low %v1106, %v1113
        %v1117 = vadd.f32 %v1028, %v1097
        %v1118 = vadd.f32 %v1029, %v1114
        %1119 = vrot.lane.b32.xlu0 %v461, 95
        %v1120 = vpop.permute.xlu0 %1119
        %1121 = vrot.lane.b32.xlu0 %v469, 95
        %v1122 = vpop.permute.xlu0 %1121
        %1123 = vrot.lane.b32.xlu0 %v468, 95
        %v1124 = vpop.permute.xlu0 %1123
        %1125 = vrot.lane.b32.xlu0 %v470, 95
        %v1126 = vpop.permute.xlu0 %1125
        %1127 = vrot.lane.b32.xlu0 %v478, 95
        %v1128 = vpop.permute.xlu0 %1127
        %1129 = vrot.lane.b32.xlu0 %v486, 95
        %v1130 = vpop.permute.xlu0 %1129
        %1131 = vrot.lane.b32.xlu0 %v485, 95
        %v1132 = vpop.permute.xlu0 %1131
        %1133 = vrot.lane.b32.xlu0 %v487, 95
        %v1134 = vpop.permute.xlu0 %1133
        %vm1135 = vcmp.lt.s32.totalorder %v368, 95
        %v1136 = vsel %vm1135, %v1132, %v1134
        %v1137 = vsel %vm1135, %v1130, %v1132
        %v1138 = vsel %vm1135, %v1128, %v1130
        %v1139 = vsel %vm1135, %v1126, %v1128
        %v1140 = vsel %vm1135, %v1124, %v1126
        %v1141 = vsel %vm1135, %v1122, %v1124
        %v1142 = vsel %vm1135, %v1120, %v1122
        %v1143 = vsel %vm1135, %v1134, %v1120
        %s1144 = sld [smem:[#allocation4 + $0x102]]
        %v1145 = vsel %vm440, %v1142, 0.0
        %v1146 = vsel %vm441, %v1141, 0.0
        %v1147 = vsel %vm442, %v1140, 0.0
        %v1148 = vsel %vm443, %v1139, 0.0
        %v1149 = vsel %vm444, %v1138, 0.0
        %v1150 = vsel %vm445, %v1137, 0.0
        %v1151 = vsel %vm446, %v1136, 0.0
        %v1152 = vsel %vm447, %v1143, 0.0
        %v1153 = vstv %s1144
        %v1154 = vmul.f32 %v1153, %v1145
        %v1155 = vmul.f32 %v1153, %v1146
        %v1156 = vmul.f32 %v1153, %v1147
        %v1157 = vmul.f32 %v1153, %v1148
        %v1158 = vmul.f32 %v1153, %v1149
        %v1159 = vmul.f32 %v1153, %v1150
        %v1160 = vmul.f32 %v1153, %v1151
        %v1161 = vmul.f32 %v1153, %v1152
        %v1170 = vcombine.low %v1154, %v1155
        %v1171 = vcombine.low %v1156, %v1157
        %v1173 = vunpack.c.l.s4 1983009808
        %v1174 = vunpack.c.0.s8 %v1173
        %v1175 = vlaneseq
        %v1176 = vshrl.u32 %v1175, 7
        %v1177 = vsub.s32 %v1174, %v1176
        %v1178 = vrot.slane %v1170, %v1177
        %v1180 = vunpack.c.l.s4 1983009808
        %v1181 = vunpack.c.0.s8 %v1180
        %v1182 = vlaneseq
        %v1183 = vshrl.u32 %v1182, 7
        %v1184 = vsub.s32 %v1181, %v1183
        %v1185 = vrot.slane %v1171, %v1184
        %v1186 = vcombine.low %v1178, %v1185
        %v1187 = vcombine.low %v1158, %v1159
        %v1188 = vcombine.low %v1160, %v1161
        %v1190 = vunpack.c.l.s4 1983009808
        %v1191 = vunpack.c.0.s8 %v1190
        %v1192 = vlaneseq
        %v1193 = vshrl.u32 %v1192, 7
        %v1194 = vsub.s32 %v1191, %v1193
        %v1195 = vrot.slane %v1187, %v1194
        %v1197 = vunpack.c.l.s4 1983009808
        %v1198 = vunpack.c.0.s8 %v1197
        %v1199 = vlaneseq
        %v1200 = vshrl.u32 %v1199, 7
        %v1201 = vsub.s32 %v1198, %v1200
        %v1202 = vrot.slane %v1188, %v1201
        %v1203 = vcombine.low %v1195, %v1202
        %v1206 = vadd.f32 %v1117, %v1186
        %v1207 = vadd.f32 %v1118, %v1203
        %s1208 = sld [smem:[#allocation2]]
        %v1209 = vstv %s1208
        %v1210 = vadd.f32 %v1206, %v1209
        %v1211 = vadd.f32 %v1207, %v1209
        %s1212 = sld [smem:[#allocation7 + $0x81]]
        %v1213 = vstv %s1212
        %v1214 = vmul.f32 %v1213, %v1210
        %v1215 = vmul.f32 %v1213, %v1211
        %v1218 = vcombine.high %v1210, %v1210
        %v1220 = vunpack.c.l.s4 1983009808
        %v1221 = vunpack.c.0.s8 %v1220
        %v1222 = vlaneseq
        %v1223 = vshrl.u32 %v1222, 7
        %v1224 = vsub.s32 %v1221, %v1223
        %v1225 = vrot.slane %v1210, %v1224
        %v1227 = vunpack.c.l.s4 1983009808
        %v1228 = vunpack.c.0.s8 %v1227
        %v1229 = vlaneseq
        %v1230 = vshrl.u32 %v1229, 7
        %v1231 = vsub.s32 %v1228, %v1230
        %v1232 = vrot.slane %v1218, %v1231
        %v1233 = vcombine.high %v1225, %v1225
        %v1234 = vcombine.high %v1232, %v1232
        %v1235 = vcombine.high %v1211, %v1211
        %v1237 = vunpack.c.l.s4 1983009808
        %v1238 = vunpack.c.0.s8 %v1237
        %v1239 = vlaneseq
        %v1240 = vshrl.u32 %v1239, 7
        %v1241 = vsub.s32 %v1238, %v1240
        %v1242 = vrot.slane %v1211, %v1241
        %v1244 = vunpack.c.l.s4 1983009808
        %v1245 = vunpack.c.0.s8 %v1244
        %v1246 = vlaneseq
        %v1247 = vshrl.u32 %v1246, 7
        %v1248 = vsub.s32 %v1245, %v1247
        %v1249 = vrot.slane %v1235, %v1248
        %v1250 = vcombine.high %v1242, %v1242
        %v1251 = vcombine.high %v1249, %v1249
        %1260 = vrot.lane.b32.xlu0 %v1225, 33
        %v1261 = vpop.permute.xlu0 %1260
        %1262 = vrot.lane.b32.xlu0 %v1233, 33
        %v1263 = vpop.permute.xlu0 %1262
        %1264 = vrot.lane.b32.xlu0 %v1232, 33
        %v1265 = vpop.permute.xlu0 %1264
        %1266 = vrot.lane.b32.xlu0 %v1234, 33
        %v1267 = vpop.permute.xlu0 %1266
        %1268 = vrot.lane.b32.xlu0 %v1242, 33
        %v1269 = vpop.permute.xlu0 %1268
        %1270 = vrot.lane.b32.xlu0 %v1250, 33
        %v1271 = vpop.permute.xlu0 %1270
        %1272 = vrot.lane.b32.xlu0 %v1249, 33
        %v1273 = vpop.permute.xlu0 %1272
        %1274 = vrot.lane.b32.xlu0 %v1251, 33
        %v1275 = vpop.permute.xlu0 %1274
        %v1276 = vsel %vm512, %v1273, %v1275
        %v1277 = vsel %vm512, %v1271, %v1273
        %v1278 = vsel %vm512, %v1269, %v1271
        %v1279 = vsel %vm512, %v1267, %v1269
        %v1280 = vsel %vm512, %v1265, %v1267
        %v1281 = vsel %vm512, %v1263, %v1265
        %v1282 = vsel %vm512, %v1261, %v1263
        %v1283 = vsel %vm512, %v1275, %v1261
        %s1284 = sld [smem:[#allocation7]]
        %v1285 = vsel %vm416, %v1283, 0.0
        %v1286 = vsel %vm417, %v1282, 0.0
        %v1287 = vsel %vm418, %v1281, 0.0
        %v1288 = vsel %vm419, %v1280, 0.0
        %v1289 = vsel %vm420, %v1279, 0.0
        %v1290 = vsel %vm421, %v1278, 0.0
        %v1291 = vsel %vm422, %v1277, 0.0
        %v1292 = vsel %vm423, %v1276, 0.0
        %v1293 = vstv %s1284
        %v1294 = vmul.f32 %v1293, %v1285
        %v1295 = vmul.f32 %v1293, %v1286
        %v1296 = vmul.f32 %v1293, %v1287
        %v1297 = vmul.f32 %v1293, %v1288
        %v1298 = vmul.f32 %v1293, %v1289
        %v1299 = vmul.f32 %v1293, %v1290
        %v1300 = vmul.f32 %v1293, %v1291
        %v1301 = vmul.f32 %v1293, %v1292
        %v1310 = vcombine.low %v1294, %v1295
        %v1311 = vcombine.low %v1296, %v1297
        %v1313 = vunpack.c.l.s4 1983009808
        %v1314 = vunpack.c.0.s8 %v1313
        %v1315 = vlaneseq
        %v1316 = vshrl.u32 %v1315, 7
        %v1317 = vsub.s32 %v1314, %v1316
        %v1318 = vrot.slane %v1310, %v1317
        %v1320 = vunpack.c.l.s4 1983009808
        %v1321 = vunpack.c.0.s8 %v1320
        %v1322 = vlaneseq
        %v1323 = vshrl.u32 %v1322, 7
        %v1324 = vsub.s32 %v1321, %v1323
        %v1325 = vrot.slane %v1311, %v1324
        %v1326 = vcombine.low %v1318, %v1325
        %v1327 = vcombine.low %v1298, %v1299
        %v1328 = vcombine.low %v1300, %v1301
        %v1330 = vunpack.c.l.s4 1983009808
        %v1331 = vunpack.c.0.s8 %v1330
        %v1332 = vlaneseq
        %v1333 = vshrl.u32 %v1332, 7
        %v1334 = vsub.s32 %v1331, %v1333
        %v1335 = vrot.slane %v1327, %v1334
        %v1337 = vunpack.c.l.s4 1983009808
        %v1338 = vunpack.c.0.s8 %v1337
        %v1339 = vlaneseq
        %v1340 = vshrl.u32 %v1339, 7
        %v1341 = vsub.s32 %v1338, %v1340
        %v1342 = vrot.slane %v1328, %v1341
        %v1343 = vcombine.low %v1335, %v1342
        %v1346 = vadd.f32 %v1214, %v1326
        %v1347 = vadd.f32 %v1215, %v1343
        %1348 = vrot.lane.b32.xlu0 %v1225, 32
        %v1349 = vpop.permute.xlu0 %1348
        %1350 = vrot.lane.b32.xlu0 %v1233, 32
        %v1351 = vpop.permute.xlu0 %1350
        %1352 = vrot.lane.b32.xlu0 %v1232, 32
        %v1353 = vpop.permute.xlu0 %1352
        %1354 = vrot.lane.b32.xlu0 %v1234, 32
        %v1355 = vpop.permute.xlu0 %1354
        %1356 = vrot.lane.b32.xlu0 %v1242, 32
        %v1357 = vpop.permute.xlu0 %1356
        %1358 = vrot.lane.b32.xlu0 %v1250, 32
        %v1359 = vpop.permute.xlu0 %1358
        %1360 = vrot.lane.b32.xlu0 %v1249, 32
        %v1361 = vpop.permute.xlu0 %1360
        %1362 = vrot.lane.b32.xlu0 %v1251, 32
        %v1363 = vpop.permute.xlu0 %1362
        %v1364 = vsel %vm601, %v1361, %v1363
        %v1365 = vsel %vm601, %v1359, %v1361
        %v1366 = vsel %vm601, %v1357, %v1359
        %v1367 = vsel %vm601, %v1355, %v1357
        %v1368 = vsel %vm601, %v1353, %v1355
        %v1369 = vsel %vm601, %v1351, %v1353
        %v1370 = vsel %vm601, %v1349, %v1351
        %v1371 = vsel %vm601, %v1363, %v1349
        %s1372 = sld [smem:[#allocation7 + $0x1]]
        %v1373 = vsel %vm384, %v1371, 0.0
        %v1374 = vsel %vm385, %v1370, 0.0
        %v1375 = vsel %vm386, %v1369, 0.0
        %v1376 = vsel %vm387, %v1368, 0.0
        %v1377 = vsel %vm388, %v1367, 0.0
        %v1378 = vsel %vm389, %v1366, 0.0
        %v1379 = vsel %vm390, %v1365, 0.0
        %v1380 = vsel %vm391, %v1364, 0.0
        %v1381 = vstv %s1372
        %v1382 = vmul.f32 %v1381, %v1373
        %v1383 = vmul.f32 %v1381, %v1374
        %v1384 = vmul.f32 %v1381, %v1375
        %v1385 = vmul.f32 %v1381, %v1376
        %v1386 = vmul.f32 %v1381, %v1377
        %v1387 = vmul.f32 %v1381, %v1378
        %v1388 = vmul.f32 %v1381, %v1379
        %v1389 = vmul.f32 %v1381, %v1380
        %v1398 = vcombine.low %v1382, %v1383
        %v1399 = vcombine.low %v1384, %v1385
        %v1401 = vunpack.c.l.s4 1983009808
        %v1402 = vunpack.c.0.s8 %v1401
        %v1403 = vlaneseq
        %v1404 = vshrl.u32 %v1403, 7
        %v1405 = vsub.s32 %v1402, %v1404
        %v1406 = vrot.slane %v1398, %v1405
        %v1408 = vunpack.c.l.s4 1983009808
        %v1409 = vunpack.c.0.s8 %v1408
        %v1410 = vlaneseq
        %v1411 = vshrl.u32 %v1410, 7
        %v1412 = vsub.s32 %v1409, %v1411
        %v1413 = vrot.slane %v1399, %v1412
        %v1414 = vcombine.low %v1406, %v1413
        %v1415 = vcombine.low %v1386, %v1387
        %v1416 = vcombine.low %v1388, %v1389
        %v1418 = vunpack.c.l.s4 1983009808
        %v1419 = vunpack.c.0.s8 %v1418
        %v1420 = vlaneseq
        %v1421 = vshrl.u32 %v1420, 7
        %v1422 = vsub.s32 %v1419, %v1421
        %v1423 = vrot.slane %v1415, %v1422
        %v1425 = vunpack.c.l.s4 1983009808
        %v1426 = vunpack.c.0.s8 %v1425
        %v1427 = vlaneseq
        %v1428 = vshrl.u32 %v1427, 7
        %v1429 = vsub.s32 %v1426, %v1428
        %v1430 = vrot.slane %v1416, %v1429
        %v1431 = vcombine.low %v1423, %v1430
        %v1434 = vadd.f32 %v1346, %v1414
        %v1435 = vadd.f32 %v1347, %v1431
        %1436 = vrot.lane.b32.xlu0 %v1225, 31
        %v1437 = vpop.permute.xlu0 %1436
        %1438 = vrot.lane.b32.xlu0 %v1233, 31
        %v1439 = vpop.permute.xlu0 %1438
        %1440 = vrot.lane.b32.xlu0 %v1232, 31
        %v1441 = vpop.permute.xlu0 %1440
        %1442 = vrot.lane.b32.xlu0 %v1234, 31
        %v1443 = vpop.permute.xlu0 %1442
        %1444 = vrot.lane.b32.xlu0 %v1242, 31
        %v1445 = vpop.permute.xlu0 %1444
        %1446 = vrot.lane.b32.xlu0 %v1250, 31
        %v1447 = vpop.permute.xlu0 %1446
        %1448 = vrot.lane.b32.xlu0 %v1249, 31
        %v1449 = vpop.permute.xlu0 %1448
        %1450 = vrot.lane.b32.xlu0 %v1251, 31
        %v1451 = vpop.permute.xlu0 %1450
        %v1452 = vsel %vm690, %v1449, %v1451
        %v1453 = vsel %vm690, %v1447, %v1449
        %v1454 = vsel %vm690, %v1445, %v1447
        %v1455 = vsel %vm690, %v1443, %v1445
        %v1456 = vsel %vm690, %v1441, %v1443
        %v1457 = vsel %vm690, %v1439, %v1441
        %v1458 = vsel %vm690, %v1437, %v1439
        %v1459 = vsel %vm690, %v1451, %v1437
        %s1460 = sld [smem:[#allocation7 + $0x2]]
        %v1461 = vsel %vm424, %v1459, 0.0
        %v1462 = vsel %vm425, %v1458, 0.0
        %v1463 = vsel %vm426, %v1457, 0.0
        %v1464 = vsel %vm427, %v1456, 0.0
        %v1465 = vsel %vm428, %v1455, 0.0
        %v1466 = vsel %vm429, %v1454, 0.0
        %v1467 = vsel %vm430, %v1453, 0.0
        %v1468 = vsel %vm431, %v1452, 0.0
        %v1469 = vstv %s1460
        %v1470 = vmul.f32 %v1469, %v1461
        %v1471 = vmul.f32 %v1469, %v1462
        %v1472 = vmul.f32 %v1469, %v1463
        %v1473 = vmul.f32 %v1469, %v1464
        %v1474 = vmul.f32 %v1469, %v1465
        %v1475 = vmul.f32 %v1469, %v1466
        %v1476 = vmul.f32 %v1469, %v1467
        %v1477 = vmul.f32 %v1469, %v1468
        %v1486 = vcombine.low %v1470, %v1471
        %v1487 = vcombine.low %v1472, %v1473
        %v1489 = vunpack.c.l.s4 1983009808
        %v1490 = vunpack.c.0.s8 %v1489
        %v1491 = vlaneseq
        %v1492 = vshrl.u32 %v1491, 7
        %v1493 = vsub.s32 %v1490, %v1492
        %v1494 = vrot.slane %v1486, %v1493
        %v1496 = vunpack.c.l.s4 1983009808
        %v1497 = vunpack.c.0.s8 %v1496
        %v1498 = vlaneseq
        %v1499 = vshrl.u32 %v1498, 7
        %v1500 = vsub.s32 %v1497, %v1499
        %v1501 = vrot.slane %v1487, %v1500
        %v1502 = vcombine.low %v1494, %v1501
        %v1503 = vcombine.low %v1474, %v1475
        %v1504 = vcombine.low %v1476, %v1477
        %v1506 = vunpack.c.l.s4 1983009808
        %v1507 = vunpack.c.0.s8 %v1506
        %v1508 = vlaneseq
        %v1509 = vshrl.u32 %v1508, 7
        %v1510 = vsub.s32 %v1507, %v1509
        %v1511 = vrot.slane %v1503, %v1510
        %v1513 = vunpack.c.l.s4 1983009808
        %v1514 = vunpack.c.0.s8 %v1513
        %v1515 = vlaneseq
        %v1516 = vshrl.u32 %v1515, 7
        %v1517 = vsub.s32 %v1514, %v1516
        %v1518 = vrot.slane %v1504, %v1517
        %v1519 = vcombine.low %v1511, %v1518
        %v1522 = vadd.f32 %v1434, %v1502
        %v1523 = vadd.f32 %v1435, %v1519
        %1524 = vrot.lane.b32.xlu0 %v1225, 1
        %v1525 = vpop.permute.xlu0 %1524
        %1526 = vrot.lane.b32.xlu0 %v1233, 1
        %v1527 = vpop.permute.xlu0 %1526
        %1528 = vrot.lane.b32.xlu0 %v1232, 1
        %v1529 = vpop.permute.xlu0 %1528
        %1530 = vrot.lane.b32.xlu0 %v1234, 1
        %v1531 = vpop.permute.xlu0 %1530
        %1532 = vrot.lane.b32.xlu0 %v1242, 1
        %v1533 = vpop.permute.xlu0 %1532
        %1534 = vrot.lane.b32.xlu0 %v1250, 1
        %v1535 = vpop.permute.xlu0 %1534
        %1536 = vrot.lane.b32.xlu0 %v1249, 1
        %v1537 = vpop.permute.xlu0 %1536
        %1538 = vrot.lane.b32.xlu0 %v1251, 1
        %v1539 = vpop.permute.xlu0 %1538
        %v1540 = vsel %vm779, %v1537, %v1539
        %v1541 = vsel %vm779, %v1535, %v1537
        %v1542 = vsel %vm779, %v1533, %v1535
        %v1543 = vsel %vm779, %v1531, %v1533
        %v1544 = vsel %vm779, %v1529, %v1531
        %v1545 = vsel %vm779, %v1527, %v1529
        %v1546 = vsel %vm779, %v1525, %v1527
        %v1547 = vsel %vm779, %v1539, %v1525
        %s1548 = sld [smem:[#allocation7 + $0x80]]
        %v1549 = vsel %vm400, %v1547, 0.0
        %v1550 = vsel %vm401, %v1546, 0.0
        %v1551 = vsel %vm402, %v1545, 0.0
        %v1552 = vsel %vm403, %v1544, 0.0
        %v1553 = vsel %vm404, %v1543, 0.0
        %v1554 = vsel %vm405, %v1542, 0.0
        %v1555 = vsel %vm406, %v1541, 0.0
        %v1556 = vsel %vm407, %v1540, 0.0
        %v1557 = vstv %s1548
        %v1558 = vmul.f32 %v1557, %v1549
        %v1559 = vmul.f32 %v1557, %v1550
        %v1560 = vmul.f32 %v1557, %v1551
        %v1561 = vmul.f32 %v1557, %v1552
        %v1562 = vmul.f32 %v1557, %v1553
        %v1563 = vmul.f32 %v1557, %v1554
        %v1564 = vmul.f32 %v1557, %v1555
        %v1565 = vmul.f32 %v1557, %v1556
        %v1574 = vcombine.low %v1558, %v1559
        %v1575 = vcombine.low %v1560, %v1561
        %v1577 = vunpack.c.l.s4 1983009808
        %v1578 = vunpack.c.0.s8 %v1577
        %v1579 = vlaneseq
        %v1580 = vshrl.u32 %v1579, 7
        %v1581 = vsub.s32 %v1578, %v1580
        %v1582 = vrot.slane %v1574, %v1581
        %v1584 = vunpack.c.l.s4 1983009808
        %v1585 = vunpack.c.0.s8 %v1584
        %v1586 = vlaneseq
        %v1587 = vshrl.u32 %v1586, 7
        %v1588 = vsub.s32 %v1585, %v1587
        %v1589 = vrot.slane %v1575, %v1588
        %v1590 = vcombine.low %v1582, %v1589
        %v1591 = vcombine.low %v1562, %v1563
        %v1592 = vcombine.low %v1564, %v1565
        %v1594 = vunpack.c.l.s4 1983009808
        %v1595 = vunpack.c.0.s8 %v1594
        %v1596 = vlaneseq
        %v1597 = vshrl.u32 %v1596, 7
        %v1598 = vsub.s32 %v1595, %v1597
        %v1599 = vrot.slane %v1591, %v1598
        %v1601 = vunpack.c.l.s4 1983009808
        %v1602 = vunpack.c.0.s8 %v1601
        %v1603 = vlaneseq
        %v1604 = vshrl.u32 %v1603, 7
        %v1605 = vsub.s32 %v1602, %v1604
        %v1606 = vrot.slane %v1592, %v1605
        %v1607 = vcombine.low %v1599, %v1606
        %v1610 = vadd.f32 %v1522, %v1590
        %v1611 = vadd.f32 %v1523, %v1607
        %1612 = vrot.lane.b32.xlu0 %v1225, 127
        %v1613 = vpop.permute.xlu0 %1612
        %1614 = vrot.lane.b32.xlu0 %v1233, 127
        %v1615 = vpop.permute.xlu0 %1614
        %1616 = vrot.lane.b32.xlu0 %v1232, 127
        %v1617 = vpop.permute.xlu0 %1616
        %1618 = vrot.lane.b32.xlu0 %v1234, 127
        %v1619 = vpop.permute.xlu0 %1618
        %1620 = vrot.lane.b32.xlu0 %v1242, 127
        %v1621 = vpop.permute.xlu0 %1620
        %1622 = vrot.lane.b32.xlu0 %v1250, 127
        %v1623 = vpop.permute.xlu0 %1622
        %1624 = vrot.lane.b32.xlu0 %v1249, 127
        %v1625 = vpop.permute.xlu0 %1624
        %1626 = vrot.lane.b32.xlu0 %v1251, 127
        %v1627 = vpop.permute.xlu0 %1626
        %v1628 = vsel %vm868, %v1625, %v1627
        %v1629 = vsel %vm868, %v1623, %v1625
        %v1630 = vsel %vm868, %v1621, %v1623
        %v1631 = vsel %vm868, %v1619, %v1621
        %v1632 = vsel %vm868, %v1617, %v1619
        %v1633 = vsel %vm868, %v1615, %v1617
        %v1634 = vsel %vm868, %v1613, %v1615
        %v1635 = vsel %vm868, %v1627, %v1613
        %s1636 = sld [smem:[#allocation7 + $0x82]]
        %v1637 = vsel %vm408, %v1634, 0.0
        %v1638 = vsel %vm409, %v1633, 0.0
        %v1639 = vsel %vm410, %v1632, 0.0
        %v1640 = vsel %vm411, %v1631, 0.0
        %v1641 = vsel %vm412, %v1630, 0.0
        %v1642 = vsel %vm413, %v1629, 0.0
        %v1643 = vsel %vm414, %v1628, 0.0
        %v1644 = vsel %vm415, %v1635, 0.0
        %v1645 = vstv %s1636
        %v1646 = vmul.f32 %v1645, %v1637
        %v1647 = vmul.f32 %v1645, %v1638
        %v1648 = vmul.f32 %v1645, %v1639
        %v1649 = vmul.f32 %v1645, %v1640
        %v1650 = vmul.f32 %v1645, %v1641
        %v1651 = vmul.f32 %v1645, %v1642
        %v1652 = vmul.f32 %v1645, %v1643
        %v1653 = vmul.f32 %v1645, %v1644
        %v1662 = vcombine.low %v1646, %v1647
        %v1663 = vcombine.low %v1648, %v1649
        %v1665 = vunpack.c.l.s4 1983009808
        %v1666 = vunpack.c.0.s8 %v1665
        %v1667 = vlaneseq
        %v1668 = vshrl.u32 %v1667, 7
        %v1669 = vsub.s32 %v1666, %v1668
        %v1670 = vrot.slane %v1662, %v1669
        %v1672 = vunpack.c.l.s4 1983009808
        %v1673 = vunpack.c.0.s8 %v1672
        %v1674 = vlaneseq
        %v1675 = vshrl.u32 %v1674, 7
        %v1676 = vsub.s32 %v1673, %v1675
        %v1677 = vrot.slane %v1663, %v1676
        %v1678 = vcombine.low %v1670, %v1677
        %v1679 = vcombine.low %v1650, %v1651
        %v1680 = vcombine.low %v1652, %v1653
        %v1682 = vunpack.c.l.s4 1983009808
        %v1683 = vunpack.c.0.s8 %v1682
        %v1684 = vlaneseq
        %v1685 = vshrl.u32 %v1684, 7
        %v1686 = vsub.s32 %v1683, %v1685
        %v1687 = vrot.slane %v1679, %v1686
        %v1689 = vunpack.c.l.s4 1983009808
        %v1690 = vunpack.c.0.s8 %v1689
        %v1691 = vlaneseq
        %v1692 = vshrl.u32 %v1691, 7
        %v1693 = vsub.s32 %v1690, %v1692
        %v1694 = vrot.slane %v1680, %v1693
        %v1695 = vcombine.low %v1687, %v1694
        %v1698 = vadd.f32 %v1610, %v1678
        %v1699 = vadd.f32 %v1611, %v1695
        %1700 = vrot.lane.b32.xlu0 %v1225, 97
        %v1701 = vpop.permute.xlu0 %1700
        %1702 = vrot.lane.b32.xlu0 %v1233, 97
        %v1703 = vpop.permute.xlu0 %1702
        %1704 = vrot.lane.b32.xlu0 %v1232, 97
        %v1705 = vpop.permute.xlu0 %1704
        %1706 = vrot.lane.b32.xlu0 %v1234, 97
        %v1707 = vpop.permute.xlu0 %1706
        %1708 = vrot.lane.b32.xlu0 %v1242, 97
        %v1709 = vpop.permute.xlu0 %1708
        %1710 = vrot.lane.b32.xlu0 %v1250, 97
        %v1711 = vpop.permute.xlu0 %1710
        %1712 = vrot.lane.b32.xlu0 %v1249, 97
        %v1713 = vpop.permute.xlu0 %1712
        %1714 = vrot.lane.b32.xlu0 %v1251, 97
        %v1715 = vpop.permute.xlu0 %1714
        %v1716 = vsel %vm957, %v1713, %v1715
        %v1717 = vsel %vm957, %v1711, %v1713
        %v1718 = vsel %vm957, %v1709, %v1711
        %v1719 = vsel %vm957, %v1707, %v1709
        %v1720 = vsel %vm957, %v1705, %v1707
        %v1721 = vsel %vm957, %v1703, %v1705
        %v1722 = vsel %vm957, %v1701, %v1703
        %v1723 = vsel %vm957, %v1715, %v1701
        %s1724 = sld [smem:[#allocation7 + $0x100]]
        %v1725 = vsel %vm432, %v1722, 0.0
        %v1726 = vsel %vm433, %v1721, 0.0
        %v1727 = vsel %vm434, %v1720, 0.0
        %v1728 = vsel %vm435, %v1719, 0.0
        %v1729 = vsel %vm436, %v1718, 0.0
        %v1730 = vsel %vm437, %v1717, 0.0
        %v1731 = vsel %vm438, %v1716, 0.0
        %v1732 = vsel %vm439, %v1723, 0.0
        %v1733 = vstv %s1724
        %v1734 = vmul.f32 %v1733, %v1725
        %v1735 = vmul.f32 %v1733, %v1726
        %v1736 = vmul.f32 %v1733, %v1727
        %v1737 = vmul.f32 %v1733, %v1728
        %v1738 = vmul.f32 %v1733, %v1729
        %v1739 = vmul.f32 %v1733, %v1730
        %v1740 = vmul.f32 %v1733, %v1731
        %v1741 = vmul.f32 %v1733, %v1732
        %v1750 = vcombine.low %v1734, %v1735
        %v1751 = vcombine.low %v1736, %v1737
        %v1753 = vunpack.c.l.s4 1983009808
        %v1754 = vunpack.c.0.s8 %v1753
        %v1755 = vlaneseq
        %v1756 = vshrl.u32 %v1755, 7
        %v1757 = vsub.s32 %v1754, %v1756
        %v1758 = vrot.slane %v1750, %v1757
        %v1760 = vunpack.c.l.s4 1983009808
        %v1761 = vunpack.c.0.s8 %v1760
        %v1762 = vlaneseq
        %v1763 = vshrl.u32 %v1762, 7
        %v1764 = vsub.s32 %v1761, %v1763
        %v1765 = vrot.slane %v1751, %v1764
        %v1766 = vcombine.low %v1758, %v1765
        %v1767 = vcombine.low %v1738, %v1739
        %v1768 = vcombine.low %v1740, %v1741
        %v1770 = vunpack.c.l.s4 1983009808
        %v1771 = vunpack.c.0.s8 %v1770
        %v1772 = vlaneseq
        %v1773 = vshrl.u32 %v1772, 7
        %v1774 = vsub.s32 %v1771, %v1773
        %v1775 = vrot.slane %v1767, %v1774
        %v1777 = vunpack.c.l.s4 1983009808
        %v1778 = vunpack.c.0.s8 %v1777
        %v1779 = vlaneseq
        %v1780 = vshrl.u32 %v1779, 7
        %v1781 = vsub.s32 %v1778, %v1780
        %v1782 = vrot.slane %v1768, %v1781
        %v1783 = vcombine.low %v1775, %v1782
        %v1786 = vadd.f32 %v1698, %v1766
        %v1787 = vadd.f32 %v1699, %v1783
        %1788 = vrot.lane.b32.xlu0 %v1225, 96
        %v1789 = vpop.permute.xlu0 %1788
        %1790 = vrot.lane.b32.xlu0 %v1233, 96
        %v1791 = vpop.permute.xlu0 %1790
        %1792 = vrot.lane.b32.xlu0 %v1232, 96
        %v1793 = vpop.permute.xlu0 %1792
        %1794 = vrot.lane.b32.xlu0 %v1234, 96
        %v1795 = vpop.permute.xlu0 %1794
        %1796 = vrot.lane.b32.xlu0 %v1242, 96
        %v1797 = vpop.permute.xlu0 %1796
        %1798 = vrot.lane.b32.xlu0 %v1250, 96
        %v1799 = vpop.permute.xlu0 %1798
        %1800 = vrot.lane.b32.xlu0 %v1249, 96
        %v1801 = vpop.permute.xlu0 %1800
        %1802 = vrot.lane.b32.xlu0 %v1251, 96
        %v1803 = vpop.permute.xlu0 %1802
        %v1804 = vsel %vm1046, %v1801, %v1803
        %v1805 = vsel %vm1046, %v1799, %v1801
        %v1806 = vsel %vm1046, %v1797, %v1799
        %v1807 = vsel %vm1046, %v1795, %v1797
        %v1808 = vsel %vm1046, %v1793, %v1795
        %v1809 = vsel %vm1046, %v1791, %v1793
        %v1810 = vsel %vm1046, %v1789, %v1791
        %v1811 = vsel %vm1046, %v1803, %v1789
        %s1812 = sld [smem:[#allocation7 + $0x101]]
        %v1813 = vsel %vm392, %v1810, 0.0
        %v1814 = vsel %vm393, %v1809, 0.0
        %v1815 = vsel %vm394, %v1808, 0.0
        %v1816 = vsel %vm395, %v1807, 0.0
        %v1817 = vsel %vm396, %v1806, 0.0
        %v1818 = vsel %vm397, %v1805, 0.0
        %v1819 = vsel %vm398, %v1804, 0.0
        %v1820 = vsel %vm399, %v1811, 0.0
        %v1821 = vstv %s1812
        %v1822 = vmul.f32 %v1821, %v1813
        %v1823 = vmul.f32 %v1821, %v1814
        %v1824 = vmul.f32 %v1821, %v1815
        %v1825 = vmul.f32 %v1821, %v1816
        %v1826 = vmul.f32 %v1821, %v1817
        %v1827 = vmul.f32 %v1821, %v1818
        %v1828 = vmul.f32 %v1821, %v1819
        %v1829 = vmul.f32 %v1821, %v1820
        %v1838 = vcombine.low %v1822, %v1823
        %v1839 = vcombine.low %v1824, %v1825
        %v1841 = vunpack.c.l.s4 1983009808
        %v1842 = vunpack.c.0.s8 %v1841
        %v1843 = vlaneseq
        %v1844 = vshrl.u32 %v1843, 7
        %v1845 = vsub.s32 %v1842, %v1844
        %v1846 = vrot.slane %v1838, %v1845
        %v1848 = vunpack.c.l.s4 1983009808
        %v1849 = vunpack.c.0.s8 %v1848
        %v1850 = vlaneseq
        %v1851 = vshrl.u32 %v1850, 7
        %v1852 = vsub.s32 %v1849, %v1851
        %v1853 = vrot.slane %v1839, %v1852
        %v1854 = vcombine.low %v1846, %v1853
        %v1855 = vcombine.low %v1826, %v1827
        %v1856 = vcombine.low %v1828, %v1829
        %v1858 = vunpack.c.l.s4 1983009808
        %v1859 = vunpack.c.0.s8 %v1858
        %v1860 = vlaneseq
        %v1861 = vshrl.u32 %v1860, 7
        %v1862 = vsub.s32 %v1859, %v1861
        %v1863 = vrot.slane %v1855, %v1862
        %v1865 = vunpack.c.l.s4 1983009808
        %v1866 = vunpack.c.0.s8 %v1865
        %v1867 = vlaneseq
        %v1868 = vshrl.u32 %v1867, 7
        %v1869 = vsub.s32 %v1866, %v1868
        %v1870 = vrot.slane %v1856, %v1869
        %v1871 = vcombine.low %v1863, %v1870
        %v1874 = vadd.f32 %v1786, %v1854
        %v1875 = vadd.f32 %v1787, %v1871
        %1876 = vrot.lane.b32.xlu0 %v1225, 95
        %v1877 = vpop.permute.xlu0 %1876
        %1878 = vrot.lane.b32.xlu0 %v1233, 95
        %v1879 = vpop.permute.xlu0 %1878
        %1880 = vrot.lane.b32.xlu0 %v1232, 95
        %v1881 = vpop.permute.xlu0 %1880
        %1882 = vrot.lane.b32.xlu0 %v1234, 95
        %v1883 = vpop.permute.xlu0 %1882
        %1884 = vrot.lane.b32.xlu0 %v1242, 95
        %v1885 = vpop.permute.xlu0 %1884
        %1886 = vrot.lane.b32.xlu0 %v1250, 95
        %v1887 = vpop.permute.xlu0 %1886
        %1888 = vrot.lane.b32.xlu0 %v1249, 95
        %v1889 = vpop.permute.xlu0 %1888
        %1890 = vrot.lane.b32.xlu0 %v1251, 95
        %v1891 = vpop.permute.xlu0 %1890
        %v1892 = vsel %vm1135, %v1889, %v1891
        %v1893 = vsel %vm1135, %v1887, %v1889
        %v1894 = vsel %vm1135, %v1885, %v1887
        %v1895 = vsel %vm1135, %v1883, %v1885
        %v1896 = vsel %vm1135, %v1881, %v1883
        %v1897 = vsel %vm1135, %v1879, %v1881
        %v1898 = vsel %vm1135, %v1877, %v1879
        %v1899 = vsel %vm1135, %v1891, %v1877
        %s1900 = sld [smem:[#allocation7 + $0x102]]
        %v1901 = vsel %vm440, %v1898, 0.0
        %v1902 = vsel %vm441, %v1897, 0.0
        %v1903 = vsel %vm442, %v1896, 0.0
        %v1904 = vsel %vm443, %v1895, 0.0
        %v1905 = vsel %vm444, %v1894, 0.0
        %v1906 = vsel %vm445, %v1893, 0.0
        %v1907 = vsel %vm446, %v1892, 0.0
        %v1908 = vsel %vm447, %v1899, 0.0
        %v1909 = vstv %s1900
        %v1910 = vmul.f32 %v1909, %v1901
        %v1911 = vmul.f32 %v1909, %v1902
        %v1912 = vmul.f32 %v1909, %v1903
        %v1913 = vmul.f32 %v1909, %v1904
        %v1914 = vmul.f32 %v1909, %v1905
        %v1915 = vmul.f32 %v1909, %v1906
        %v1916 = vmul.f32 %v1909, %v1907
        %v1917 = vmul.f32 %v1909, %v1908
        %v1926 = vcombine.low %v1910, %v1911
        %v1927 = vcombine.low %v1912, %v1913
        %v1929 = vunpack.c.l.s4 1983009808
        %v1930 = vunpack.c.0.s8 %v1929
        %v1931 = vlaneseq
        %v1932 = vshrl.u32 %v1931, 7
        %v1933 = vsub.s32 %v1930, %v1932
        %v1934 = vrot.slane %v1926, %v1933
        %v1936 = vunpack.c.l.s4 1983009808
        %v1937 = vunpack.c.0.s8 %v1936
        %v1938 = vlaneseq
        %v1939 = vshrl.u32 %v1938, 7
        %v1940 = vsub.s32 %v1937, %v1939
        %v1941 = vrot.slane %v1927, %v1940
        %v1942 = vcombine.low %v1934, %v1941
        %v1943 = vcombine.low %v1914, %v1915
        %v1944 = vcombine.low %v1916, %v1917
        %v1946 = vunpack.c.l.s4 1983009808
        %v1947 = vunpack.c.0.s8 %v1946
        %v1948 = vlaneseq
        %v1949 = vshrl.u32 %v1948, 7
        %v1950 = vsub.s32 %v1947, %v1949
        %v1951 = vrot.slane %v1943, %v1950
        %v1953 = vunpack.c.l.s4 1983009808
        %v1954 = vunpack.c.0.s8 %v1953
        %v1955 = vlaneseq
        %v1956 = vshrl.u32 %v1955, 7
        %v1957 = vsub.s32 %v1954, %v1956
        %v1958 = vrot.slane %v1944, %v1957
        %v1959 = vcombine.low %v1951, %v1958
        %v1962 = vadd.f32 %v1874, %v1942
        %v1963 = vadd.f32 %v1875, %v1959
        %s1964 = sld [smem:[#allocation3]]
        %v1965 = vstv %s1964
        %v1966 = vadd.f32 %v1962, %v1965
        %v1967 = vadd.f32 %v1963, %v1965
        %v1968 = vld [vmem:[%s311] sm:$0xff]
        %v1969 = vld [vmem:[%s311 + $0x8] sm:$0xff]
        %v1970 = vld [vmem:[%s311 + $0x10] sm:$0xff]
        %v1971 = vld [vmem:[%s311 + $0x18] sm:$0xff]
        %v1972 = vld [vmem:[%s311 + $0x20] sm:$0xff]
        %v1973 = vld [vmem:[%s311 + $0x28] sm:$0xff]
        %v1974 = vld [vmem:[%s311 + $0x30] sm:$0xff]
        %v1975 = vld [vmem:[%s311 + $0x38] sm:$0xff]
        %v1976 = vld [vmem:[%s311 + $0x40] sm:$0xff]
        %v1977 = vld [vmem:[%s311 + $0x48] sm:$0xff]
        %v1978 = vld [vmem:[%s311 + $0x50] sm:$0xff]
        %v1979 = vld [vmem:[%s311 + $0x58] sm:$0xff]
        %v1980 = vld [vmem:[%s311 + $0x60] sm:$0xff]
        %v1981 = vld [vmem:[%s311 + $0x68] sm:$0xff]
        %v1982 = vld [vmem:[%s311 + $0x70] sm:$0xff]
        %v1983 = vld [vmem:[%s311 + $0x78] sm:$0xff]
        %v1984 = vld [vmem:[%s311 + $0x80] sm:$0xff]
        %v1985 = vld [vmem:[%s311 + $0x88] sm:$0xff]
        %v1986 = vld [vmem:[%s311 + $0x90] sm:$0xff]
        %v1987 = vld [vmem:[%s311 + $0x98] sm:$0xff]
        %v1988 = vld [vmem:[%s311 + $0xa0] sm:$0xff]
        %v1989 = vld [vmem:[%s311 + $0xa8] sm:$0xff]
        %v1990 = vld [vmem:[%s311 + $0xb0] sm:$0xff]
        %v1991 = vld [vmem:[%s311 + $0xb8] sm:$0xff]
        %v1992 = vld [vmem:[%s311 + $0xc0] sm:$0xff]
        %v1993 = vld [vmem:[%s311 + $0xc8] sm:$0xff]
        %v1994 = vld [vmem:[%s311 + $0xd0] sm:$0xff]
        %v1995 = vld [vmem:[%s311 + $0xd8] sm:$0xff]
        %v1996 = vld [vmem:[%s311 + $0xe0] sm:$0xff]
        %v1997 = vld [vmem:[%s311 + $0xe8] sm:$0xff]
        %v1998 = vld [vmem:[%s311 + $0xf0] sm:$0xff]
        %v1999 = vld [vmem:[%s311 + $0xf8] sm:$0xff]
        %v2000 = vld [vmem:[%s311 + $0x100] sm:$0xff]
        %v2001 = vld [vmem:[%s311 + $0x108] sm:$0xff]
        %v2002 = vld [vmem:[%s311 + $0x110] sm:$0xff]
        %v2003 = vld [vmem:[%s311 + $0x118] sm:$0xff]
        %v2004 = vld [vmem:[%s311 + $0x120] sm:$0xff]
        %v2005 = vld [vmem:[%s311 + $0x128] sm:$0xff]
        %v2006 = vld [vmem:[%s311 + $0x130] sm:$0xff]
        %v2007 = vld [vmem:[%s311 + $0x138] sm:$0xff]
        %v2008 = vld [vmem:[%s311 + $0x140] sm:$0xff]
        %v2009 = vld [vmem:[%s311 + $0x148] sm:$0xff]
        %v2010 = vld [vmem:[%s311 + $0x150] sm:$0xff]
        %v2011 = vld [vmem:[%s311 + $0x158] sm:$0xff]
        %v2012 = vld [vmem:[%s311 + $0x160] sm:$0xff]
        %v2013 = vld [vmem:[%s311 + $0x168] sm:$0xff]
        %v2014 = vld [vmem:[%s311 + $0x170] sm:$0xff]
        %v2015 = vld [vmem:[%s311 + $0x178] sm:$0xff]
        %v2016 = vld [vmem:[%s311 + $0x180] sm:$0xff]
        %v2017 = vld [vmem:[%s311 + $0x188] sm:$0xff]
        %v2018 = vld [vmem:[%s311 + $0x190] sm:$0xff]
        %v2019 = vld [vmem:[%s311 + $0x198] sm:$0xff]
        %v2020 = vld [vmem:[%s311 + $0x1a0] sm:$0xff]
        %v2021 = vld [vmem:[%s311 + $0x1a8] sm:$0xff]
        %v2022 = vld [vmem:[%s311 + $0x1b0] sm:$0xff]
        %v2023 = vld [vmem:[%s311 + $0x1b8] sm:$0xff]
        %v2024 = vld [vmem:[%s311 + $0x1c0] sm:$0xff]
        %v2025 = vld [vmem:[%s311 + $0x1c8] sm:$0xff]
        %v2026 = vld [vmem:[%s311 + $0x1d0] sm:$0xff]
        %v2027 = vld [vmem:[%s311 + $0x1d8] sm:$0xff]
        %v2028 = vld [vmem:[%s311 + $0x1e0] sm:$0xff]
        %v2029 = vld [vmem:[%s311 + $0x1e8] sm:$0xff]
        %v2030 = vld [vmem:[%s311 + $0x1f0] sm:$0xff]
        %v2031 = vld [vmem:[%s311 + $0x1f8] sm:$0xff]
        %v2032 = vld [vmem:[%s311 + $0x200] sm:$0xff]
        %v2033 = vld [vmem:[%s311 + $0x208] sm:$0xff]
        %v2034 = vld [vmem:[%s311 + $0x210] sm:$0xff]
        %v2035 = vld [vmem:[%s311 + $0x218] sm:$0xff]
        %v2036 = vld [vmem:[%s311 + $0x220] sm:$0xff]
        %v2037 = vld [vmem:[%s311 + $0x228] sm:$0xff]
        %v2038 = vld [vmem:[%s311 + $0x230] sm:$0xff]
        %v2039 = vld [vmem:[%s311 + $0x238] sm:$0xff]
        %v2040 = vld [vmem:[%s311 + $0x240] sm:$0xff]
        %v2041 = vld [vmem:[%s311 + $0x248] sm:$0xff]
        %v2042 = vld [vmem:[%s311 + $0x250] sm:$0xff]
        %v2043 = vld [vmem:[%s311 + $0x258] sm:$0xff]
        %v2044 = vld [vmem:[%s311 + $0x260] sm:$0xff]
        %v2045 = vld [vmem:[%s311 + $0x268] sm:$0xff]
        %v2046 = vld [vmem:[%s311 + $0x270] sm:$0xff]
        %v2047 = vld [vmem:[%s311 + $0x278] sm:$0xff]
        %v2048 = vld [vmem:[%s311 + $0x280] sm:$0xff]
        %v2049 = vld [vmem:[%s311 + $0x288] sm:$0xff]
        %v2050 = vld [vmem:[%s311 + $0x290] sm:$0xff]
        %v2051 = vld [vmem:[%s311 + $0x298] sm:$0xff]
        %v2052 = vld [vmem:[%s311 + $0x2a0] sm:$0xff]
        %v2053 = vld [vmem:[%s311 + $0x2a8] sm:$0xff]
        %v2054 = vld [vmem:[%s311 + $0x2b0] sm:$0xff]
        %v2055 = vld [vmem:[%s311 + $0x2b8] sm:$0xff]
        %v2056 = vld [vmem:[%s311 + $0x2c0] sm:$0xff]
        %v2057 = vld [vmem:[%s311 + $0x2c8] sm:$0xff]
        %v2058 = vld [vmem:[%s311 + $0x2d0] sm:$0xff]
        %v2059 = vld [vmem:[%s311 + $0x2d8] sm:$0xff]
        %v2060 = vld [vmem:[%s311 + $0x2e0] sm:$0xff]
        %v2061 = vld [vmem:[%s311 + $0x2e8] sm:$0xff]
        %v2062 = vld [vmem:[%s311 + $0x2f0] sm:$0xff]
        %v2063 = vld [vmem:[%s311 + $0x2f8] sm:$0xff]
        %v2064 = vld [vmem:[%s311 + $0x300] sm:$0xff]
        %v2065 = vld [vmem:[%s311 + $0x308] sm:$0xff]
        %v2066 = vld [vmem:[%s311 + $0x310] sm:$0xff]
        %v2067 = vld [vmem:[%s311 + $0x318] sm:$0xff]
        %v2068 = vld [vmem:[%s311 + $0x320] sm:$0xff]
        %v2069 = vld [vmem:[%s311 + $0x328] sm:$0xff]
        %v2070 = vld [vmem:[%s311 + $0x330] sm:$0xff]
        %v2071 = vld [vmem:[%s311 + $0x338] sm:$0xff]
        %v2072 = vld [vmem:[%s311 + $0x340] sm:$0xff]
        %v2073 = vld [vmem:[%s311 + $0x348] sm:$0xff]
        %v2074 = vld [vmem:[%s311 + $0x350] sm:$0xff]
        %v2075 = vld [vmem:[%s311 + $0x358] sm:$0xff]
        %v2076 = vld [vmem:[%s311 + $0x360] sm:$0xff]
        %v2077 = vld [vmem:[%s311 + $0x368] sm:$0xff]
        %v2078 = vld [vmem:[%s311 + $0x370] sm:$0xff]
        %v2079 = vld [vmem:[%s311 + $0x378] sm:$0xff]
        %v2080 = vld [vmem:[%s311 + $0x380] sm:$0xff]
        %v2081 = vld [vmem:[%s311 + $0x388] sm:$0xff]
        %v2082 = vld [vmem:[%s311 + $0x390] sm:$0xff]
        %v2083 = vld [vmem:[%s311 + $0x398] sm:$0xff]
        %v2084 = vld [vmem:[%s311 + $0x3a0] sm:$0xff]
        %v2085 = vld [vmem:[%s311 + $0x3a8] sm:$0xff]
        %v2086 = vld [vmem:[%s311 + $0x3b0] sm:$0xff]
        %v2087 = vld [vmem:[%s311 + $0x3b8] sm:$0xff]
        %v2088 = vld [vmem:[%s311 + $0x3c0] sm:$0xff]
        %v2089 = vld [vmem:[%s311 + $0x3c8] sm:$0xff]
        %v2090 = vld [vmem:[%s311 + $0x3d0] sm:$0xff]
        %v2091 = vld [vmem:[%s311 + $0x3d8] sm:$0xff]
        %v2092 = vld [vmem:[%s311 + $0x3e0] sm:$0xff]
        %v2093 = vld [vmem:[%s311 + $0x3e8] sm:$0xff]
        %v2094 = vld [vmem:[%s311 + $0x3f0] sm:$0xff]
        %v2095 = vld [vmem:[%s311 + $0x3f8] sm:$0xff]
        %v2096 = vld [vmem:[%s311 + $0x400] sm:$0xff]
        %v2097 = vld [vmem:[%s311 + $0x408] sm:$0xff]
        %v2098 = vld [vmem:[%s311 + $0x410] sm:$0xff]
        %v2099 = vld [vmem:[%s311 + $0x418] sm:$0xff]
        %v2100 = vld [vmem:[%s311 + $0x420] sm:$0xff]
        %v2101 = vld [vmem:[%s311 + $0x428] sm:$0xff]
        %v2102 = vld [vmem:[%s311 + $0x430] sm:$0xff]
        %v2103 = vld [vmem:[%s311 + $0x438] sm:$0xff]
        %v2104 = vld [vmem:[%s311 + $0x440] sm:$0xff]
        %v2105 = vld [vmem:[%s311 + $0x448] sm:$0xff]
        %v2106 = vld [vmem:[%s311 + $0x450] sm:$0xff]
        %v2107 = vld [vmem:[%s311 + $0x458] sm:$0xff]
        %v2108 = vld [vmem:[%s311 + $0x460] sm:$0xff]
        %v2109 = vld [vmem:[%s311 + $0x468] sm:$0xff]
        %v2110 = vld [vmem:[%s311 + $0x470] sm:$0xff]
        %v2111 = vld [vmem:[%s311 + $0x478] sm:$0xff]
        %v2112 = vld [vmem:[%s311 + $0x480] sm:$0xff]
        %v2113 = vld [vmem:[%s311 + $0x488] sm:$0xff]
        %v2114 = vld [vmem:[%s311 + $0x490] sm:$0xff]
        %v2115 = vld [vmem:[%s311 + $0x498] sm:$0xff]
        %v2116 = vld [vmem:[%s311 + $0x4a0] sm:$0xff]
        %v2117 = vld [vmem:[%s311 + $0x4a8] sm:$0xff]
        %v2118 = vld [vmem:[%s311 + $0x4b0] sm:$0xff]
        %v2119 = vld [vmem:[%s311 + $0x4b8] sm:$0xff]
        %v2120 = vld [vmem:[%s311 + $0x4c0] sm:$0xff]
        %v2121 = vld [vmem:[%s311 + $0x4c8] sm:$0xff]
        %v2122 = vld [vmem:[%s311 + $0x4d0] sm:$0xff]
        %v2123 = vld [vmem:[%s311 + $0x4d8] sm:$0xff]
        %v2124 = vld [vmem:[%s311 + $0x4e0] sm:$0xff]
        %v2125 = vld [vmem:[%s311 + $0x4e8] sm:$0xff]
        %v2126 = vld [vmem:[%s311 + $0x4f0] sm:$0xff]
        %v2127 = vld [vmem:[%s311 + $0x4f8] sm:$0xff]
        %v2128 = vld [vmem:[%s311 + $0x500] sm:$0xff]
        %v2129 = vld [vmem:[%s311 + $0x508] sm:$0xff]
        %v2130 = vld [vmem:[%s311 + $0x510] sm:$0xff]
        %v2131 = vld [vmem:[%s311 + $0x518] sm:$0xff]
        %v2132 = vld [vmem:[%s311 + $0x520] sm:$0xff]
        %v2133 = vld [vmem:[%s311 + $0x528] sm:$0xff]
        %v2134 = vld [vmem:[%s311 + $0x530] sm:$0xff]
        %v2135 = vld [vmem:[%s311 + $0x538] sm:$0xff]
        %v2136 = vld [vmem:[%s311 + $0x540] sm:$0xff]
        %v2137 = vld [vmem:[%s311 + $0x548] sm:$0xff]
        %v2138 = vld [vmem:[%s311 + $0x550] sm:$0xff]
        %v2139 = vld [vmem:[%s311 + $0x558] sm:$0xff]
        %v2140 = vld [vmem:[%s311 + $0x560] sm:$0xff]
        %v2141 = vld [vmem:[%s311 + $0x568] sm:$0xff]
        %v2142 = vld [vmem:[%s311 + $0x570] sm:$0xff]
        %v2143 = vld [vmem:[%s311 + $0x578] sm:$0xff]
        %v2144 = vld [vmem:[%s311 + $0x580] sm:$0xff]
        %v2145 = vld [vmem:[%s311 + $0x588] sm:$0xff]
        %v2146 = vld [vmem:[%s311 + $0x590] sm:$0xff]
        %v2147 = vld [vmem:[%s311 + $0x598] sm:$0xff]
        %v2148 = vld [vmem:[%s311 + $0x5a0] sm:$0xff]
        %v2149 = vld [vmem:[%s311 + $0x5a8] sm:$0xff]
        %v2150 = vld [vmem:[%s311 + $0x5b0] sm:$0xff]
        %v2151 = vld [vmem:[%s311 + $0x5b8] sm:$0xff]
        %v2152 = vld [vmem:[%s311 + $0x5c0] sm:$0xff]
        %v2153 = vld [vmem:[%s311 + $0x5c8] sm:$0xff]
        %v2154 = vld [vmem:[%s311 + $0x5d0] sm:$0xff]
        %v2155 = vld [vmem:[%s311 + $0x5d8] sm:$0xff]
        %v2156 = vld [vmem:[%s311 + $0x5e0] sm:$0xff]
        %v2157 = vld [vmem:[%s311 + $0x5e8] sm:$0xff]
        %v2158 = vld [vmem:[%s311 + $0x5f0] sm:$0xff]
        %v2159 = vld [vmem:[%s311 + $0x5f8] sm:$0xff]
        %v2160 = vld [vmem:[%s311 + $0x600] sm:$0xff]
        %v2161 = vld [vmem:[%s311 + $0x608] sm:$0xff]
        %v2162 = vld [vmem:[%s311 + $0x610] sm:$0xff]
        %v2163 = vld [vmem:[%s311 + $0x618] sm:$0xff]
        %v2164 = vld [vmem:[%s311 + $0x620] sm:$0xff]
        %v2165 = vld [vmem:[%s311 + $0x628] sm:$0xff]
        %v2166 = vld [vmem:[%s311 + $0x630] sm:$0xff]
        %v2167 = vld [vmem:[%s311 + $0x638] sm:$0xff]
        %v2168 = vld [vmem:[%s311 + $0x640] sm:$0xff]
        %v2169 = vld [vmem:[%s311 + $0x648] sm:$0xff]
        %v2170 = vld [vmem:[%s311 + $0x650] sm:$0xff]
        %v2171 = vld [vmem:[%s311 + $0x658] sm:$0xff]
        %v2172 = vld [vmem:[%s311 + $0x660] sm:$0xff]
        %v2173 = vld [vmem:[%s311 + $0x668] sm:$0xff]
        %v2174 = vld [vmem:[%s311 + $0x670] sm:$0xff]
        %v2175 = vld [vmem:[%s311 + $0x678] sm:$0xff]
        %v2176 = vld [vmem:[%s311 + $0x680] sm:$0xff]
        %v2177 = vld [vmem:[%s311 + $0x688] sm:$0xff]
        %v2178 = vld [vmem:[%s311 + $0x690] sm:$0xff]
        %v2179 = vld [vmem:[%s311 + $0x698] sm:$0xff]
        %v2180 = vld [vmem:[%s311 + $0x6a0] sm:$0xff]
        %v2181 = vld [vmem:[%s311 + $0x6a8] sm:$0xff]
        %v2182 = vld [vmem:[%s311 + $0x6b0] sm:$0xff]
        %v2183 = vld [vmem:[%s311 + $0x6b8] sm:$0xff]
        %v2184 = vld [vmem:[%s311 + $0x6c0] sm:$0xff]
        %v2185 = vld [vmem:[%s311 + $0x6c8] sm:$0xff]
        %v2186 = vld [vmem:[%s311 + $0x6d0] sm:$0xff]
        %v2187 = vld [vmem:[%s311 + $0x6d8] sm:$0xff]
        %v2188 = vld [vmem:[%s311 + $0x6e0] sm:$0xff]
        %v2189 = vld [vmem:[%s311 + $0x6e8] sm:$0xff]
        %v2190 = vld [vmem:[%s311 + $0x6f0] sm:$0xff]
        %v2191 = vld [vmem:[%s311 + $0x6f8] sm:$0xff]
        %v2192 = vld [vmem:[%s311 + $0x700] sm:$0xff]
        %v2193 = vld [vmem:[%s311 + $0x708] sm:$0xff]
        %v2194 = vld [vmem:[%s311 + $0x710] sm:$0xff]
        %v2195 = vld [vmem:[%s311 + $0x718] sm:$0xff]
        %v2196 = vld [vmem:[%s311 + $0x720] sm:$0xff]
        %v2197 = vld [vmem:[%s311 + $0x728] sm:$0xff]
        %v2198 = vld [vmem:[%s311 + $0x730] sm:$0xff]
        %v2199 = vld [vmem:[%s311 + $0x738] sm:$0xff]
        %v2200 = vld [vmem:[%s311 + $0x740] sm:$0xff]
        %v2201 = vld [vmem:[%s311 + $0x748] sm:$0xff]
        %v2202 = vld [vmem:[%s311 + $0x750] sm:$0xff]
        %v2203 = vld [vmem:[%s311 + $0x758] sm:$0xff]
        %v2204 = vld [vmem:[%s311 + $0x760] sm:$0xff]
        %v2205 = vld [vmem:[%s311 + $0x768] sm:$0xff]
        %v2206 = vld [vmem:[%s311 + $0x770] sm:$0xff]
        %v2207 = vld [vmem:[%s311 + $0x778] sm:$0xff]
        %v2208 = vld [vmem:[%s311 + $0x780] sm:$0xff]
        %v2209 = vld [vmem:[%s311 + $0x788] sm:$0xff]
        %v2210 = vld [vmem:[%s311 + $0x790] sm:$0xff]
        %v2211 = vld [vmem:[%s311 + $0x798] sm:$0xff]
        %v2212 = vld [vmem:[%s311 + $0x7a0] sm:$0xff]
        %v2213 = vld [vmem:[%s311 + $0x7a8] sm:$0xff]
        %v2214 = vld [vmem:[%s311 + $0x7b0] sm:$0xff]
        %v2215 = vld [vmem:[%s311 + $0x7b8] sm:$0xff]
        %v2216 = vld [vmem:[%s311 + $0x7c0] sm:$0xff]
        %v2217 = vld [vmem:[%s311 + $0x7c8] sm:$0xff]
        %v2218 = vld [vmem:[%s311 + $0x7d0] sm:$0xff]
        %v2219 = vld [vmem:[%s311 + $0x7d8] sm:$0xff]
        %v2220 = vld [vmem:[%s311 + $0x7e0] sm:$0xff]
        %v2221 = vld [vmem:[%s311 + $0x7e8] sm:$0xff]
        %v2222 = vld [vmem:[%s311 + $0x7f0] sm:$0xff]
        %v2223 = vld [vmem:[%s311 + $0x7f8] sm:$0xff]
        %v2224 = vld [vmem:[%s311 + $0x800] sm:$0xff]
        %v2225 = vld [vmem:[%s311 + $0x808] sm:$0xff]
        %v2226 = vld [vmem:[%s311 + $0x810] sm:$0xff]
        %v2227 = vld [vmem:[%s311 + $0x818] sm:$0xff]
        %v2228 = vld [vmem:[%s311 + $0x820] sm:$0xff]
        %v2229 = vld [vmem:[%s311 + $0x828] sm:$0xff]
        %v2230 = vld [vmem:[%s311 + $0x830] sm:$0xff]
        %v2231 = vld [vmem:[%s311 + $0x838] sm:$0xff]
        %v2232 = vld [vmem:[%s311 + $0x840] sm:$0xff]
        %v2233 = vld [vmem:[%s311 + $0x848] sm:$0xff]
        %v2234 = vld [vmem:[%s311 + $0x850] sm:$0xff]
        %v2235 = vld [vmem:[%s311 + $0x858] sm:$0xff]
        %v2236 = vld [vmem:[%s311 + $0x860] sm:$0xff]
        %v2237 = vld [vmem:[%s311 + $0x868] sm:$0xff]
        %v2238 = vld [vmem:[%s311 + $0x870] sm:$0xff]
        %v2239 = vld [vmem:[%s311 + $0x878] sm:$0xff]
        %v2240 = vld [vmem:[%s311 + $0x880] sm:$0xff]
        %v2241 = vld [vmem:[%s311 + $0x888] sm:$0xff]
        %v2242 = vld [vmem:[%s311 + $0x890] sm:$0xff]
        %v2243 = vld [vmem:[%s311 + $0x898] sm:$0xff]
        %v2244 = vld [vmem:[%s311 + $0x8a0] sm:$0xff]
        %v2245 = vld [vmem:[%s311 + $0x8a8] sm:$0xff]
        %v2246 = vld [vmem:[%s311 + $0x8b0] sm:$0xff]
        %v2247 = vld [vmem:[%s311 + $0x8b8] sm:$0xff]
        %v2248 = vld [vmem:[%s311 + $0x8c0] sm:$0xff]
        %v2249 = vld [vmem:[%s311 + $0x8c8] sm:$0xff]
        %v2250 = vld [vmem:[%s311 + $0x8d0] sm:$0xff]
        %v2251 = vld [vmem:[%s311 + $0x8d8] sm:$0xff]
        %v2252 = vld [vmem:[%s311 + $0x8e0] sm:$0xff]
        %v2253 = vld [vmem:[%s311 + $0x8e8] sm:$0xff]
        %v2254 = vld [vmem:[%s311 + $0x8f0] sm:$0xff]
        %v2255 = vld [vmem:[%s311 + $0x8f8] sm:$0xff]
        %v2256 = vld [vmem:[%s311 + $0x900] sm:$0xff]
        %v2257 = vld [vmem:[%s311 + $0x908] sm:$0xff]
        %v2258 = vld [vmem:[%s311 + $0x910] sm:$0xff]
        %v2259 = vld [vmem:[%s311 + $0x918] sm:$0xff]
        %v2260 = vld [vmem:[%s311 + $0x920] sm:$0xff]
        %v2261 = vld [vmem:[%s311 + $0x928] sm:$0xff]
        %v2262 = vld [vmem:[%s311 + $0x930] sm:$0xff]
        %v2263 = vld [vmem:[%s311 + $0x938] sm:$0xff]
        %v2264 = vld [vmem:[%s311 + $0x940] sm:$0xff]
        %v2265 = vld [vmem:[%s311 + $0x948] sm:$0xff]
        %v2266 = vld [vmem:[%s311 + $0x950] sm:$0xff]
        %v2267 = vld [vmem:[%s311 + $0x958] sm:$0xff]
        %v2268 = vld [vmem:[%s311 + $0x960] sm:$0xff]
        %v2269 = vld [vmem:[%s311 + $0x968] sm:$0xff]
        %v2270 = vld [vmem:[%s311 + $0x970] sm:$0xff]
        %v2271 = vld [vmem:[%s311 + $0x978] sm:$0xff]
        %v2272 = vld [vmem:[%s311 + $0x980] sm:$0xff]
        %v2273 = vld [vmem:[%s311 + $0x988] sm:$0xff]
        %v2274 = vld [vmem:[%s311 + $0x990] sm:$0xff]
        %v2275 = vld [vmem:[%s311 + $0x998] sm:$0xff]
        %v2276 = vld [vmem:[%s311 + $0x9a0] sm:$0xff]
        %v2277 = vld [vmem:[%s311 + $0x9a8] sm:$0xff]
        %v2278 = vld [vmem:[%s311 + $0x9b0] sm:$0xff]
        %v2279 = vld [vmem:[%s311 + $0x9b8] sm:$0xff]
        %v2280 = vld [vmem:[%s311 + $0x9c0] sm:$0xff]
        %v2281 = vld [vmem:[%s311 + $0x9c8] sm:$0xff]
        %v2282 = vld [vmem:[%s311 + $0x9d0] sm:$0xff]
        %v2283 = vld [vmem:[%s311 + $0x9d8] sm:$0xff]
        %v2284 = vld [vmem:[%s311 + $0x9e0] sm:$0xff]
        %v2285 = vld [vmem:[%s311 + $0x9e8] sm:$0xff]
        %v2286 = vld [vmem:[%s311 + $0x9f0] sm:$0xff]
        %v2287 = vld [vmem:[%s311 + $0x9f8] sm:$0xff]
        %v2288 = vld [vmem:[%s311 + $0xa00] sm:$0xff]
        %v2289 = vld [vmem:[%s311 + $0xa08] sm:$0xff]
        %v2290 = vld [vmem:[%s311 + $0xa10] sm:$0xff]
        %v2291 = vld [vmem:[%s311 + $0xa18] sm:$0xff]
        %v2292 = vld [vmem:[%s311 + $0xa20] sm:$0xff]
        %v2293 = vld [vmem:[%s311 + $0xa28] sm:$0xff]
        %v2294 = vld [vmem:[%s311 + $0xa30] sm:$0xff]
        %v2295 = vld [vmem:[%s311 + $0xa38] sm:$0xff]
        %v2296 = vld [vmem:[%s311 + $0xa40] sm:$0xff]
        %v2297 = vld [vmem:[%s311 + $0xa48] sm:$0xff]
        %v2298 = vld [vmem:[%s311 + $0xa50] sm:$0xff]
        %v2299 = vld [vmem:[%s311 + $0xa58] sm:$0xff]
        %v2300 = vld [vmem:[%s311 + $0xa60] sm:$0xff]
        %v2301 = vld [vmem:[%s311 + $0xa68] sm:$0xff]
        %v2302 = vld [vmem:[%s311 + $0xa70] sm:$0xff]
        %v2303 = vld [vmem:[%s311 + $0xa78] sm:$0xff]
        %v2304 = vld [vmem:[%s311 + $0xa80] sm:$0xff]
        %v2305 = vld [vmem:[%s311 + $0xa88] sm:$0xff]
        %v2306 = vld [vmem:[%s311 + $0xa90] sm:$0xff]
        %v2307 = vld [vmem:[%s311 + $0xa98] sm:$0xff]
        %v2308 = vld [vmem:[%s311 + $0xaa0] sm:$0xff]
        %v2309 = vld [vmem:[%s311 + $0xaa8] sm:$0xff]
        %v2310 = vld [vmem:[%s311 + $0xab0] sm:$0xff]
        %v2311 = vld [vmem:[%s311 + $0xab8] sm:$0xff]
        %v2312 = vld [vmem:[%s311 + $0xac0] sm:$0xff]
        %v2313 = vld [vmem:[%s311 + $0xac8] sm:$0xff]
        %v2314 = vld [vmem:[%s311 + $0xad0] sm:$0xff]
        %v2315 = vld [vmem:[%s311 + $0xad8] sm:$0xff]
        %v2316 = vld [vmem:[%s311 + $0xae0] sm:$0xff]
        %v2317 = vld [vmem:[%s311 + $0xae8] sm:$0xff]
        %v2318 = vld [vmem:[%s311 + $0xaf0] sm:$0xff]
        %v2319 = vld [vmem:[%s311 + $0xaf8] sm:$0xff]
        %v2320 = vld [vmem:[%s311 + $0xb00] sm:$0xff]
        %v2321 = vld [vmem:[%s311 + $0xb08] sm:$0xff]
        %v2322 = vld [vmem:[%s311 + $0xb10] sm:$0xff]
        %v2323 = vld [vmem:[%s311 + $0xb18] sm:$0xff]
        %v2324 = vld [vmem:[%s311 + $0xb20] sm:$0xff]
        %v2325 = vld [vmem:[%s311 + $0xb28] sm:$0xff]
        %v2326 = vld [vmem:[%s311 + $0xb30] sm:$0xff]
        %v2327 = vld [vmem:[%s311 + $0xb38] sm:$0xff]
        %v2328 = vld [vmem:[%s311 + $0xb40] sm:$0xff]
        %v2329 = vld [vmem:[%s311 + $0xb48] sm:$0xff]
        %v2330 = vld [vmem:[%s311 + $0xb50] sm:$0xff]
        %v2331 = vld [vmem:[%s311 + $0xb58] sm:$0xff]
        %v2332 = vld [vmem:[%s311 + $0xb60] sm:$0xff]
        %v2333 = vld [vmem:[%s311 + $0xb68] sm:$0xff]
        %v2334 = vld [vmem:[%s311 + $0xb70] sm:$0xff]
        %v2335 = vld [vmem:[%s311 + $0xb78] sm:$0xff]
        %v2336 = vld [vmem:[%s311 + $0xb80] sm:$0xff]
        %v2337 = vld [vmem:[%s311 + $0xb88] sm:$0xff]
        %v2338 = vld [vmem:[%s311 + $0xb90] sm:$0xff]
        %v2339 = vld [vmem:[%s311 + $0xb98] sm:$0xff]
        %v2340 = vld [vmem:[%s311 + $0xba0] sm:$0xff]
        %v2341 = vld [vmem:[%s311 + $0xba8] sm:$0xff]
        %v2342 = vld [vmem:[%s311 + $0xbb0] sm:$0xff]
        %v2343 = vld [vmem:[%s311 + $0xbb8] sm:$0xff]
        %v2344 = vld [vmem:[%s311 + $0xbc0] sm:$0xff]
        %v2345 = vld [vmem:[%s311 + $0xbc8] sm:$0xff]
        %v2346 = vld [vmem:[%s311 + $0xbd0] sm:$0xff]
        %v2347 = vld [vmem:[%s311 + $0xbd8] sm:$0xff]
        %v2348 = vld [vmem:[%s311 + $0xbe0] sm:$0xff]
        %v2349 = vld [vmem:[%s311 + $0xbe8] sm:$0xff]
        %v2350 = vld [vmem:[%s311 + $0xbf0] sm:$0xff]
        %v2351 = vld [vmem:[%s311 + $0xbf8] sm:$0xff]
        %v2352 = vld [vmem:[%s311 + $0xc00] sm:$0xff]
        %v2353 = vld [vmem:[%s311 + $0xc08] sm:$0xff]
        %v2354 = vld [vmem:[%s311 + $0xc10] sm:$0xff]
        %v2355 = vld [vmem:[%s311 + $0xc18] sm:$0xff]
        %v2356 = vld [vmem:[%s311 + $0xc20] sm:$0xff]
        %v2357 = vld [vmem:[%s311 + $0xc28] sm:$0xff]
        %v2358 = vld [vmem:[%s311 + $0xc30] sm:$0xff]
        %v2359 = vld [vmem:[%s311 + $0xc38] sm:$0xff]
        %v2360 = vld [vmem:[%s311 + $0xc40] sm:$0xff]
        %v2361 = vld [vmem:[%s311 + $0xc48] sm:$0xff]
        %v2362 = vld [vmem:[%s311 + $0xc50] sm:$0xff]
        %v2363 = vld [vmem:[%s311 + $0xc58] sm:$0xff]
        %v2364 = vld [vmem:[%s311 + $0xc60] sm:$0xff]
        %v2365 = vld [vmem:[%s311 + $0xc68] sm:$0xff]
        %v2366 = vld [vmem:[%s311 + $0xc70] sm:$0xff]
        %v2367 = vld [vmem:[%s311 + $0xc78] sm:$0xff]
        %v2368 = vld [vmem:[%s311 + $0xc80] sm:$0xff]
        %v2369 = vld [vmem:[%s311 + $0xc88] sm:$0xff]
        %v2370 = vld [vmem:[%s311 + $0xc90] sm:$0xff]
        %v2371 = vld [vmem:[%s311 + $0xc98] sm:$0xff]
        %v2372 = vld [vmem:[%s311 + $0xca0] sm:$0xff]
        %v2373 = vld [vmem:[%s311 + $0xca8] sm:$0xff]
        %v2374 = vld [vmem:[%s311 + $0xcb0] sm:$0xff]
        %v2375 = vld [vmem:[%s311 + $0xcb8] sm:$0xff]
        %v2376 = vld [vmem:[%s311 + $0xcc0] sm:$0xff]
        %v2377 = vld [vmem:[%s311 + $0xcc8] sm:$0xff]
        %v2378 = vld [vmem:[%s311 + $0xcd0] sm:$0xff]
        %v2379 = vld [vmem:[%s311 + $0xcd8] sm:$0xff]
        %v2380 = vld [vmem:[%s311 + $0xce0] sm:$0xff]
        %v2381 = vld [vmem:[%s311 + $0xce8] sm:$0xff]
        %v2382 = vld [vmem:[%s311 + $0xcf0] sm:$0xff]
        %v2383 = vld [vmem:[%s311 + $0xcf8] sm:$0xff]
        %v2384 = vld [vmem:[%s311 + $0xd00] sm:$0xff]
        %v2385 = vld [vmem:[%s311 + $0xd08] sm:$0xff]
        %v2386 = vld [vmem:[%s311 + $0xd10] sm:$0xff]
        %v2387 = vld [vmem:[%s311 + $0xd18] sm:$0xff]
        %v2388 = vld [vmem:[%s311 + $0xd20] sm:$0xff]
        %v2389 = vld [vmem:[%s311 + $0xd28] sm:$0xff]
        %v2390 = vld [vmem:[%s311 + $0xd30] sm:$0xff]
        %v2391 = vld [vmem:[%s311 + $0xd38] sm:$0xff]
        %v2392 = vld [vmem:[%s311 + $0xd40] sm:$0xff]
        %v2393 = vld [vmem:[%s311 + $0xd48] sm:$0xff]
        %v2394 = vld [vmem:[%s311 + $0xd50] sm:$0xff]
        %v2395 = vld [vmem:[%s311 + $0xd58] sm:$0xff]
        %v2396 = vld [vmem:[%s311 + $0xd60] sm:$0xff]
        %v2397 = vld [vmem:[%s311 + $0xd68] sm:$0xff]
        %v2398 = vld [vmem:[%s311 + $0xd70] sm:$0xff]
        %v2399 = vld [vmem:[%s311 + $0xd78] sm:$0xff]
        %v2400 = vld [vmem:[%s311 + $0xd80] sm:$0xff]
        %v2401 = vld [vmem:[%s311 + $0xd88] sm:$0xff]
        %v2402 = vld [vmem:[%s311 + $0xd90] sm:$0xff]
        %v2403 = vld [vmem:[%s311 + $0xd98] sm:$0xff]
        %v2404 = vld [vmem:[%s311 + $0xda0] sm:$0xff]
        %v2405 = vld [vmem:[%s311 + $0xda8] sm:$0xff]
        %v2406 = vld [vmem:[%s311 + $0xdb0] sm:$0xff]
        %v2407 = vld [vmem:[%s311 + $0xdb8] sm:$0xff]
        %v2408 = vld [vmem:[%s311 + $0xdc0] sm:$0xff]
        %v2409 = vld [vmem:[%s311 + $0xdc8] sm:$0xff]
        %v2410 = vld [vmem:[%s311 + $0xdd0] sm:$0xff]
        %v2411 = vld [vmem:[%s311 + $0xdd8] sm:$0xff]
        %v2412 = vld [vmem:[%s311 + $0xde0] sm:$0xff]
        %v2413 = vld [vmem:[%s311 + $0xde8] sm:$0xff]
        %v2414 = vld [vmem:[%s311 + $0xdf0] sm:$0xff]
        %v2415 = vld [vmem:[%s311 + $0xdf8] sm:$0xff]
        %v2416 = vld [vmem:[%s311 + $0xe00] sm:$0xff]
        %v2417 = vld [vmem:[%s311 + $0xe08] sm:$0xff]
        %v2418 = vld [vmem:[%s311 + $0xe10] sm:$0xff]
        %v2419 = vld [vmem:[%s311 + $0xe18] sm:$0xff]
        %v2420 = vld [vmem:[%s311 + $0xe20] sm:$0xff]
        %v2421 = vld [vmem:[%s311 + $0xe28] sm:$0xff]
        %v2422 = vld [vmem:[%s311 + $0xe30] sm:$0xff]
        %v2423 = vld [vmem:[%s311 + $0xe38] sm:$0xff]
        %v2424 = vld [vmem:[%s311 + $0xe40] sm:$0xff]
        %v2425 = vld [vmem:[%s311 + $0xe48] sm:$0xff]
        %v2426 = vld [vmem:[%s311 + $0xe50] sm:$0xff]
        %v2427 = vld [vmem:[%s311 + $0xe58] sm:$0xff]
        %v2428 = vld [vmem:[%s311 + $0xe60] sm:$0xff]
        %v2429 = vld [vmem:[%s311 + $0xe68] sm:$0xff]
        %v2430 = vld [vmem:[%s311 + $0xe70] sm:$0xff]
        %v2431 = vld [vmem:[%s311 + $0xe78] sm:$0xff]
        %v2432 = vld [vmem:[%s311 + $0xe80] sm:$0xff]
        %v2433 = vld [vmem:[%s311 + $0xe88] sm:$0xff]
        %v2434 = vld [vmem:[%s311 + $0xe90] sm:$0xff]
        %v2435 = vld [vmem:[%s311 + $0xe98] sm:$0xff]
        %v2436 = vld [vmem:[%s311 + $0xea0] sm:$0xff]
        %v2437 = vld [vmem:[%s311 + $0xea8] sm:$0xff]
        %v2438 = vld [vmem:[%s311 + $0xeb0] sm:$0xff]
        %v2439 = vld [vmem:[%s311 + $0xeb8] sm:$0xff]
        %v2440 = vld [vmem:[%s311 + $0xec0] sm:$0xff]
        %v2441 = vld [vmem:[%s311 + $0xec8] sm:$0xff]
        %v2442 = vld [vmem:[%s311 + $0xed0] sm:$0xff]
        %v2443 = vld [vmem:[%s311 + $0xed8] sm:$0xff]
        %v2444 = vld [vmem:[%s311 + $0xee0] sm:$0xff]
        %v2445 = vld [vmem:[%s311 + $0xee8] sm:$0xff]
        %v2446 = vld [vmem:[%s311 + $0xef0] sm:$0xff]
        %v2447 = vld [vmem:[%s311 + $0xef8] sm:$0xff]
        %v2448 = vld [vmem:[%s311 + $0xf00] sm:$0xff]
        %v2449 = vld [vmem:[%s311 + $0xf08] sm:$0xff]
        %v2450 = vld [vmem:[%s311 + $0xf10] sm:$0xff]
        %v2451 = vld [vmem:[%s311 + $0xf18] sm:$0xff]
        %v2452 = vld [vmem:[%s311 + $0xf20] sm:$0xff]
        %v2453 = vld [vmem:[%s311 + $0xf28] sm:$0xff]
        %v2454 = vld [vmem:[%s311 + $0xf30] sm:$0xff]
        %v2455 = vld [vmem:[%s311 + $0xf38] sm:$0xff]
        %v2456 = vld [vmem:[%s311 + $0xf40] sm:$0xff]
        %v2457 = vld [vmem:[%s311 + $0xf48] sm:$0xff]
        %v2458 = vld [vmem:[%s311 + $0xf50] sm:$0xff]
        %v2459 = vld [vmem:[%s311 + $0xf58] sm:$0xff]
        %v2460 = vld [vmem:[%s311 + $0xf60] sm:$0xff]
        %v2461 = vld [vmem:[%s311 + $0xf68] sm:$0xff]
        %v2462 = vld [vmem:[%s311 + $0xf70] sm:$0xff]
        %v2463 = vld [vmem:[%s311 + $0xf78] sm:$0xff]
        %v2464 = vld [vmem:[%s311 + $0xf80] sm:$0xff]
        %v2465 = vld [vmem:[%s311 + $0xf88] sm:$0xff]
        %v2466 = vld [vmem:[%s311 + $0xf90] sm:$0xff]
        %v2467 = vld [vmem:[%s311 + $0xf98] sm:$0xff]
        %v2468 = vld [vmem:[%s311 + $0xfa0] sm:$0xff]
        %v2469 = vld [vmem:[%s311 + $0xfa8] sm:$0xff]
        %v2470 = vld [vmem:[%s311 + $0xfb0] sm:$0xff]
        %v2471 = vld [vmem:[%s311 + $0xfb8] sm:$0xff]
        %v2472 = vld [vmem:[%s311 + $0xfc0] sm:$0xff]
        %v2473 = vld [vmem:[%s311 + $0xfc8] sm:$0xff]
        %v2474 = vld [vmem:[%s311 + $0xfd0] sm:$0xff]
        %v2475 = vld [vmem:[%s311 + $0xfd8] sm:$0xff]
        %v2476 = vld [vmem:[%s311 + $0xfe0] sm:$0xff]
        %v2477 = vld [vmem:[%s311 + $0xfe8] sm:$0xff]
        %v2478 = vld [vmem:[%s311 + $0xff0] sm:$0xff]
        %v2479 = vld [vmem:[%s311 + $0xff8] sm:$0xff]
        %v2480 = vld [vmem:[%s320] sm:$0xf]
        %v2482 = vlaneseq
        %v2483 = vshrl.u32 %v2482, 7
        %v2484 = vsub.s32 0, %v2483
        %v2485 = vrot.slane %v2480, %v2484
        %v2486 = vlaneseq
        %v2487 = vshrl.u32 %v2486, 7
        %v2488 = vsub.s32 1, %v2487
        %v2489 = vrot.slane %v2480, %v2488
        %v2490 = vlaneseq
        %v2491 = vshrl.u32 %v2490, 7
        %v2492 = vsub.s32 2, %v2491
        %v2493 = vrot.slane %v2480, %v2492
        %v2494 = vlaneseq
        %v2495 = vshrl.u32 %v2494, 7
        %v2496 = vsub.s32 3, %v2495
        %v2497 = vrot.slane %v2480, %v2496
        %v2504 = vcombine.high %v1966, %v1966
        %v2506 = vunpack.c.l.s4 1983009808
        %v2507 = vunpack.c.0.s8 %v2506
        %v2508 = vlaneseq
        %v2509 = vshrl.u32 %v2508, 7
        %v2510 = vsub.s32 %v2507, %v2509
        %v2511 = vrot.slane %v1966, %v2510
        %v2513 = vunpack.c.l.s4 1983009808
        %v2514 = vunpack.c.0.s8 %v2513
        %v2515 = vlaneseq
        %v2516 = vshrl.u32 %v2515, 7
        %v2517 = vsub.s32 %v2514, %v2516
        %v2518 = vrot.slane %v2504, %v2517
        %v2519 = vcombine.high %v2511, %v2511
        %v2520 = vcombine.high %v2518, %v2518
        %v2521 = vcombine.high %v1967, %v1967
        %v2523 = vunpack.c.l.s4 1983009808
        %v2524 = vunpack.c.0.s8 %v2523
        %v2525 = vlaneseq
        %v2526 = vshrl.u32 %v2525, 7
        %v2527 = vsub.s32 %v2524, %v2526
        %v2528 = vrot.slane %v1967, %v2527
        %v2530 = vunpack.c.l.s4 1983009808
        %v2531 = vunpack.c.0.s8 %v2530
        %v2532 = vlaneseq
        %v2533 = vshrl.u32 %v2532, 7
        %v2534 = vsub.s32 %v2531, %v2533
        %v2535 = vrot.slane %v2521, %v2534
        %v2536 = vcombine.high %v2528, %v2528
        %v2537 = vcombine.high %v2535, %v2535
        %2546 = vmatprep.subr.mxu0 %v1969
        %2547 = vmatpush1.msra.mxu0 %v1968
        %2548 = vmatprep.subr.mxu0 %v1973
        %2549 = vmatpush1.msra.mxu0 %v1972
        %2550 = vmatprep.subr.mxu0 %v1977
        %2551 = vmatpush1.msra.mxu0 %v1976
        %2552 = vmatprep.subr.mxu0 %v1981
        %2553 = vmatpush1.msra.mxu0 %v1980
        %2554 = vmatprep.subr.mxu0 %v1985
        %2555 = vmatpush1.msra.mxu0 %v1984
        %2556 = vmatprep.subr.mxu0 %v1989
        %2557 = vmatpush1.msra.mxu0 %v1988
        %2558 = vmatprep.subr.mxu0 %v1993
        %2559 = vmatpush1.msra.mxu0 %v1992
        %2560 = vmatprep.subr.mxu0 %v1997
        %2561 = vmatpush1.msra.mxu0 %v1996
        %2562 = vmatprep.subr.mxu0 %v2001
        %2563 = vmatpush1.msra.mxu0 %v2000
        %2564 = vmatprep.subr.mxu0 %v2005
        %2565 = vmatpush1.msra.mxu0 %v2004
        %2566 = vmatprep.subr.mxu0 %v2009
        %2567 = vmatpush1.msra.mxu0 %v2008
        %2568 = vmatprep.subr.mxu0 %v2013
        %2569 = vmatpush1.msra.mxu0 %v2012
        %2570 = vmatprep.subr.mxu0 %v2017
        %2571 = vmatpush1.msra.mxu0 %v2016
        %2572 = vmatprep.subr.mxu0 %v2021
        %2573 = vmatpush1.msra.mxu0 %v2020
        %2574 = vmatprep.subr.mxu0 %v2025
        %2575 = vmatpush1.msra.mxu0 %v2024
        %2576 = vmatprep.subr.mxu0 %v2029
        %2577 = vmatpush1.msra.mxu0 %v2028
        %2578 = vmatprep.subr.mxu0 %v2033
        %2579 = vmatpush1.msra.mxu0 %v2032
        %2580 = vmatprep.subr.mxu0 %v2037
        %2581 = vmatpush1.msra.mxu0 %v2036
        %2582 = vmatprep.subr.mxu0 %v2041
        %2583 = vmatpush1.msra.mxu0 %v2040
        %2584 = vmatprep.subr.mxu0 %v2045
        %2585 = vmatpush1.msra.mxu0 %v2044
        %2586 = vmatprep.subr.mxu0 %v2049
        %2587 = vmatpush1.msra.mxu0 %v2048
        %2588 = vmatprep.subr.mxu0 %v2053
        %2589 = vmatpush1.msra.mxu0 %v2052
        %2590 = vmatprep.subr.mxu0 %v2057
        %2591 = vmatpush1.msra.mxu0 %v2056
        %2592 = vmatprep.subr.mxu0 %v2061
        %2593 = vmatpush1.msra.mxu0 %v2060
        %2594 = vmatprep.subr.mxu0 %v2065
        %2595 = vmatpush1.msra.mxu0 %v2064
        %2596 = vmatprep.subr.mxu0 %v2069
        %2597 = vmatpush1.msra.mxu0 %v2068
        %2598 = vmatprep.subr.mxu0 %v2073
        %2599 = vmatpush1.msra.mxu0 %v2072
        %2600 = vmatprep.subr.mxu0 %v2077
        %2601 = vmatpush1.msra.mxu0 %v2076
        %2602 = vmatprep.subr.mxu0 %v2081
        %2603 = vmatpush1.msra.mxu0 %v2080
        %2604 = vmatprep.subr.mxu0 %v2085
        %2605 = vmatpush1.msra.mxu0 %v2084
        %2606 = vmatprep.subr.mxu0 %v2089
        %2607 = vmatpush1.msra.mxu0 %v2088
        %2608 = vmatprep.subr.mxu0 %v2093
        %2609 = vmatpush1.msra.mxu0 %v2092
        %2610 = vmatprep.mubr.f32.mxu0 %v2519
        %2611 = vmatmul.mubr.f32.gmra.mrb[0].mxu0 %v2511
        %v2612 = vpop.f32.mrb[0].mxu0
        %v2613 = vadd.f32 %v2485, %v2612
        %v2614 = vpop.f32.mrb[0].mxu0
        %v2615 = vadd.f32 %v2489, %v2614
        %2616 = vdwg.mxu0
        %2617 = vmatprep.subr.mxu0 %v2097
        %2618 = vmatpush1.msra.mxu0 %v2096
        %2619 = vmatprep.subr.mxu0 %v2101
        %2620 = vmatpush1.msra.mxu0 %v2100
        %2621 = vmatprep.subr.mxu0 %v2105
        %2622 = vmatpush1.msra.mxu0 %v2104
        %2623 = vmatprep.subr.mxu0 %v2109
        %2624 = vmatpush1.msra.mxu0 %v2108
        %2625 = vmatprep.subr.mxu0 %v2113
        %2626 = vmatpush1.msra.mxu0 %v2112
        %2627 = vmatprep.subr.mxu0 %v2117
        %2628 = vmatpush1.msra.mxu0 %v2116
        %2629 = vmatprep.subr.mxu0 %v2121
        %2630 = vmatpush1.msra.mxu0 %v2120
        %2631 = vmatprep.subr.mxu0 %v2125
        %2632 = vmatpush1.msra.mxu0 %v2124
        %2633 = vmatprep.subr.mxu0 %v2129
        %2634 = vmatpush1.msra.mxu0 %v2128
        %2635 = vmatprep.subr.mxu0 %v2133
        %2636 = vmatpush1.msra.mxu0 %v2132
        %2637 = vmatprep.subr.mxu0 %v2137
        %2638 = vmatpush1.msra.mxu0 %v2136
        %2639 = vmatprep.subr.mxu0 %v2141
        %2640 = vmatpush1.msra.mxu0 %v2140
        %2641 = vmatprep.subr.mxu0 %v2145
        %2642 = vmatpush1.msra.mxu0 %v2144
        %2643 = vmatprep.subr.mxu0 %v2149
        %2644 = vmatpush1.msra.mxu0 %v2148
        %2645 = vmatprep.subr.mxu0 %v2153
        %2646 = vmatpush1.msra.mxu0 %v2152
        %2647 = vmatprep.subr.mxu0 %v2157
        %2648 = vmatpush1.msra.mxu0 %v2156
        %2649 = vmatprep.subr.mxu0 %v2161
        %2650 = vmatpush1.msra.mxu0 %v2160
        %2651 = vmatprep.subr.mxu0 %v2165
        %2652 = vmatpush1.msra.mxu0 %v2164
        %2653 = vmatprep.subr.mxu0 %v2169
        %2654 = vmatpush1.msra.mxu0 %v2168
        %2655 = vmatprep.subr.mxu0 %v2173
        %2656 = vmatpush1.msra.mxu0 %v2172
        %2657 = vmatprep.subr.mxu0 %v2177
        %2658 = vmatpush1.msra.mxu0 %v2176
        %2659 = vmatprep.subr.mxu0 %v2181
        %2660 = vmatpush1.msra.mxu0 %v2180
        %2661 = vmatprep.subr.mxu0 %v2185
        %2662 = vmatpush1.msra.mxu0 %v2184
        %2663 = vmatprep.subr.mxu0 %v2189
        %2664 = vmatpush1.msra.mxu0 %v2188
        %2665 = vmatprep.subr.mxu0 %v2193
        %2666 = vmatpush1.msra.mxu0 %v2192
        %2667 = vmatprep.subr.mxu0 %v2197
        %2668 = vmatpush1.msra.mxu0 %v2196
        %2669 = vmatprep.subr.mxu0 %v2201
        %2670 = vmatpush1.msra.mxu0 %v2200
        %2671 = vmatprep.subr.mxu0 %v2205
        %2672 = vmatpush1.msra.mxu0 %v2204
        %2673 = vmatprep.subr.mxu0 %v2209
        %2674 = vmatpush1.msra.mxu0 %v2208
        %2675 = vmatprep.subr.mxu0 %v2213
        %2676 = vmatpush1.msra.mxu0 %v2212
        %2677 = vmatprep.subr.mxu0 %v2217
        %2678 = vmatpush1.msra.mxu0 %v2216
        %2679 = vmatprep.subr.mxu0 %v2221
        %2680 = vmatpush1.msra.mxu0 %v2220
        %2681 = vmatprep.mubr.f32.mxu0 %v2520
        %2682 = vmatmul.mubr.f32.gmra.mrb[0].mxu0 %v2518
        %v2683 = vpop.f32.mrb[0].mxu0
        %v2684 = vadd.f32 %v2613, %v2683
        %v2685 = vpop.f32.mrb[0].mxu0
        %v2686 = vadd.f32 %v2615, %v2685
        %2687 = vdwg.mxu0
        %2688 = vmatprep.subr.mxu0 %v2225
        %2689 = vmatpush1.msra.mxu0 %v2224
        %2690 = vmatprep.subr.mxu0 %v2229
        %2691 = vmatpush1.msra.mxu0 %v2228
        %2692 = vmatprep.subr.mxu0 %v2233
        %2693 = vmatpush1.msra.mxu0 %v2232
        %2694 = vmatprep.subr.mxu0 %v2237
        %2695 = vmatpush1.msra.mxu0 %v2236
        %2696 = vmatprep.subr.mxu0 %v2241
        %2697 = vmatpush1.msra.mxu0 %v2240
        %2698 = vmatprep.subr.mxu0 %v2245
        %2699 = vmatpush1.msra.mxu0 %v2244
        %2700 = vmatprep.subr.mxu0 %v2249
        %2701 = vmatpush1.msra.mxu0 %v2248
        %2702 = vmatprep.subr.mxu0 %v2253
        %2703 = vmatpush1.msra.mxu0 %v2252
        %2704 = vmatprep.subr.mxu0 %v2257
        %2705 = vmatpush1.msra.mxu0 %v2256
        %2706 = vmatprep.subr.mxu0 %v2261
        %2707 = vmatpush1.msra.mxu0 %v2260
        %2708 = vmatprep.subr.mxu0 %v2265
        %2709 = vmatpush1.msra.mxu0 %v2264
        %2710 = vmatprep.subr.mxu0 %v2269
        %2711 = vmatpush1.msra.mxu0 %v2268
        %2712 = vmatprep.subr.mxu0 %v2273
        %2713 = vmatpush1.msra.mxu0 %v2272
        %2714 = vmatprep.subr.mxu0 %v2277
        %2715 = vmatpush1.msra.mxu0 %v2276
        %2716 = vmatprep.subr.mxu0 %v2281
        %2717 = vmatpush1.msra.mxu0 %v2280
        %2718 = vmatprep.subr.mxu0 %v2285
        %2719 = vmatpush1.msra.mxu0 %v2284
        %2720 = vmatprep.subr.mxu0 %v2289
        %2721 = vmatpush1.msra.mxu0 %v2288
        %2722 = vmatprep.subr.mxu0 %v2293
        %2723 = vmatpush1.msra.mxu0 %v2292
        %2724 = vmatprep.subr.mxu0 %v2297
        %2725 = vmatpush1.msra.mxu0 %v2296
        %2726 = vmatprep.subr.mxu0 %v2301
        %2727 = vmatpush1.msra.mxu0 %v2300
        %2728 = vmatprep.subr.mxu0 %v2305
        %2729 = vmatpush1.msra.mxu0 %v2304
        %2730 = vmatprep.subr.mxu0 %v2309
        %2731 = vmatpush1.msra.mxu0 %v2308
        %2732 = vmatprep.subr.mxu0 %v2313
        %2733 = vmatpush1.msra.mxu0 %v2312
        %2734 = vmatprep.subr.mxu0 %v2317
        %2735 = vmatpush1.msra.mxu0 %v2316
        %2736 = vmatprep.subr.mxu0 %v2321
        %2737 = vmatpush1.msra.mxu0 %v2320
        %2738 = vmatprep.subr.mxu0 %v2325
        %2739 = vmatpush1.msra.mxu0 %v2324
        %2740 = vmatprep.subr.mxu0 %v2329
        %2741 = vmatpush1.msra.mxu0 %v2328
        %2742 = vmatprep.subr.mxu0 %v2333
        %2743 = vmatpush1.msra.mxu0 %v2332
        %2744 = vmatprep.subr.mxu0 %v2337
        %2745 = vmatpush1.msra.mxu0 %v2336
        %2746 = vmatprep.subr.mxu0 %v2341
        %2747 = vmatpush1.msra.mxu0 %v2340
        %2748 = vmatprep.subr.mxu0 %v2345
        %2749 = vmatpush1.msra.mxu0 %v2344
        %2750 = vmatprep.subr.mxu0 %v2349
        %2751 = vmatpush1.msra.mxu0 %v2348
        %2752 = vmatprep.mubr.f32.mxu0 %v2536
        %2753 = vmatmul.mubr.f32.gmra.mrb[0].mxu0 %v2528
        %v2754 = vpop.f32.mrb[0].mxu0
        %v2755 = vadd.f32 %v2684, %v2754
        %v2756 = vpop.f32.mrb[0].mxu0
        %v2757 = vadd.f32 %v2686, %v2756
        %2758 = vdwg.mxu0
        %2759 = vmatprep.subr.mxu0 %v2353
        %2760 = vmatpush1.msra.mxu0 %v2352
        %2761 = vmatprep.subr.mxu0 %v2357
        %2762 = vmatpush1.msra.mxu0 %v2356
        %2763 = vmatprep.subr.mxu0 %v2361
        %2764 = vmatpush1.msra.mxu0 %v2360
        %2765 = vmatprep.subr.mxu0 %v2365
        %2766 = vmatpush1.msra.mxu0 %v2364
        %2767 = vmatprep.subr.mxu0 %v2369
        %2768 = vmatpush1.msra.mxu0 %v2368
        %2769 = vmatprep.subr.mxu0 %v2373
        %2770 = vmatpush1.msra.mxu0 %v2372
        %2771 = vmatprep.subr.mxu0 %v2377
        %2772 = vmatpush1.msra.mxu0 %v2376
        %2773 = vmatprep.subr.mxu0 %v2381
        %2774 = vmatpush1.msra.mxu0 %v2380
        %2775 = vmatprep.subr.mxu0 %v2385
        %2776 = vmatpush1.msra.mxu0 %v2384
        %2777 = vmatprep.subr.mxu0 %v2389
        %2778 = vmatpush1.msra.mxu0 %v2388
        %2779 = vmatprep.subr.mxu0 %v2393
        %2780 = vmatpush1.msra.mxu0 %v2392
        %2781 = vmatprep.subr.mxu0 %v2397
        %2782 = vmatpush1.msra.mxu0 %v2396
        %2783 = vmatprep.subr.mxu0 %v2401
        %2784 = vmatpush1.msra.mxu0 %v2400
        %2785 = vmatprep.subr.mxu0 %v2405
        %2786 = vmatpush1.msra.mxu0 %v2404
        %2787 = vmatprep.subr.mxu0 %v2409
        %2788 = vmatpush1.msra.mxu0 %v2408
        %2789 = vmatprep.subr.mxu0 %v2413
        %2790 = vmatpush1.msra.mxu0 %v2412
        %2791 = vmatprep.subr.mxu0 %v2417
        %2792 = vmatpush1.msra.mxu0 %v2416
        %2793 = vmatprep.subr.mxu0 %v2421
        %2794 = vmatpush1.msra.mxu0 %v2420
        %2795 = vmatprep.subr.mxu0 %v2425
        %2796 = vmatpush1.msra.mxu0 %v2424
        %2797 = vmatprep.subr.mxu0 %v2429
        %2798 = vmatpush1.msra.mxu0 %v2428
        %2799 = vmatprep.subr.mxu0 %v2433
        %2800 = vmatpush1.msra.mxu0 %v2432
        %2801 = vmatprep.subr.mxu0 %v2437
        %2802 = vmatpush1.msra.mxu0 %v2436
        %2803 = vmatprep.subr.mxu0 %v2441
        %2804 = vmatpush1.msra.mxu0 %v2440
        %2805 = vmatprep.subr.mxu0 %v2445
        %2806 = vmatpush1.msra.mxu0 %v2444
        %2807 = vmatprep.subr.mxu0 %v2449
        %2808 = vmatpush1.msra.mxu0 %v2448
        %2809 = vmatprep.subr.mxu0 %v2453
        %2810 = vmatpush1.msra.mxu0 %v2452
        %2811 = vmatprep.subr.mxu0 %v2457
        %2812 = vmatpush1.msra.mxu0 %v2456
        %2813 = vmatprep.subr.mxu0 %v2461
        %2814 = vmatpush1.msra.mxu0 %v2460
        %2815 = vmatprep.subr.mxu0 %v2465
        %2816 = vmatpush1.msra.mxu0 %v2464
        %2817 = vmatprep.subr.mxu0 %v2469
        %2818 = vmatpush1.msra.mxu0 %v2468
        %2819 = vmatprep.subr.mxu0 %v2473
        %2820 = vmatpush1.msra.mxu0 %v2472
        %2821 = vmatprep.subr.mxu0 %v2477
        %2822 = vmatpush1.msra.mxu0 %v2476
        %2823 = vmatprep.mubr.f32.mxu0 %v2537
        %2824 = vmatmul.mubr.f32.gmra.mrb[0].mxu0 %v2535
        %v2825 = vpop.f32.mrb[0].mxu0
        %v2826 = vadd.f32 %v2755, %v2825
        %v2827 = vpop.f32.mrb[0].mxu0
        %v2828 = vadd.f32 %v2757, %v2827
        %2829 = vdwg.mxu0
        %2830 = vmatprep.subr.mxu0 %v1971
        %2831 = vmatpush1.msra.mxu0 %v1970
        %2832 = vmatprep.subr.mxu0 %v1975
        %2833 = vmatpush1.msra.mxu0 %v1974
        %2834 = vmatprep.subr.mxu0 %v1979
        %2835 = vmatpush1.msra.mxu0 %v1978
        %2836 = vmatprep.subr.mxu0 %v1983
        %2837 = vmatpush1.msra.mxu0 %v1982
        %2838 = vmatprep.subr.mxu0 %v1987
        %2839 = vmatpush1.msra.mxu0 %v1986
        %2840 = vmatprep.subr.mxu0 %v1991
        %2841 = vmatpush1.msra.mxu0 %v1990
        %2842 = vmatprep.subr.mxu0 %v1995
        %2843 = vmatpush1.msra.mxu0 %v1994
        %2844 = vmatprep.subr.mxu0 %v1999
        %2845 = vmatpush1.msra.mxu0 %v1998
        %2846 = vmatprep.subr.mxu0 %v2003
        %2847 = vmatpush1.msra.mxu0 %v2002
        %2848 = vmatprep.subr.mxu0 %v2007
        %2849 = vmatpush1.msra.mxu0 %v2006
        %2850 = vmatprep.subr.mxu0 %v2011
        %2851 = vmatpush1.msra.mxu0 %v2010
        %2852 = vmatprep.subr.mxu0 %v2015
        %2853 = vmatpush1.msra.mxu0 %v2014
        %2854 = vmatprep.subr.mxu0 %v2019
        %2855 = vmatpush1.msra.mxu0 %v2018
        %2856 = vmatprep.subr.mxu0 %v2023
        %2857 = vmatpush1.msra.mxu0 %v2022
        %2858 = vmatprep.subr.mxu0 %v2027
        %2859 = vmatpush1.msra.mxu0 %v2026
        %2860 = vmatprep.subr.mxu0 %v2031
        %2861 = vmatpush1.msra.mxu0 %v2030
        %2862 = vmatprep.subr.mxu0 %v2035
        %2863 = vmatpush1.msra.mxu0 %v2034
        %2864 = vmatprep.subr.mxu0 %v2039
        %2865 = vmatpush1.msra.mxu0 %v2038
        %2866 = vmatprep.subr.mxu0 %v2043
        %2867 = vmatpush1.msra.mxu0 %v2042
        %2868 = vmatprep.subr.mxu0 %v2047
        %2869 = vmatpush1.msra.mxu0 %v2046
        %2870 = vmatprep.subr.mxu0 %v2051
        %2871 = vmatpush1.msra.mxu0 %v2050
        %2872 = vmatprep.subr.mxu0 %v2055
        %2873 = vmatpush1.msra.mxu0 %v2054
        %2874 = vmatprep.subr.mxu0 %v2059
        %2875 = vmatpush1.msra.mxu0 %v2058
        %2876 = vmatprep.subr.mxu0 %v2063
        %2877 = vmatpush1.msra.mxu0 %v2062
        %2878 = vmatprep.subr.mxu0 %v2067
        %2879 = vmatpush1.msra.mxu0 %v2066
        %2880 = vmatprep.subr.mxu0 %v2071
        %2881 = vmatpush1.msra.mxu0 %v2070
        %2882 = vmatprep.subr.mxu0 %v2075
        %2883 = vmatpush1.msra.mxu0 %v2074
        %2884 = vmatprep.subr.mxu0 %v2079
        %2885 = vmatpush1.msra.mxu0 %v2078
        %2886 = vmatprep.subr.mxu0 %v2083
        %2887 = vmatpush1.msra.mxu0 %v2082
        %2888 = vmatprep.subr.mxu0 %v2087
        %2889 = vmatpush1.msra.mxu0 %v2086
        %2890 = vmatprep.subr.mxu0 %v2091
        %2891 = vmatpush1.msra.mxu0 %v2090
        %2892 = vmatprep.subr.mxu0 %v2095
        %2893 = vmatpush1.msra.mxu0 %v2094
        %2894 = vmatprep.mubr.f32.mxu0 %v2519
        %2895 = vmatmul.mubr.f32.gmra.mrb[0].mxu0 %v2511
        %v2896 = vpop.f32.mrb[0].mxu0
        %v2897 = vadd.f32 %v2493, %v2896
        %v2898 = vpop.f32.mrb[0].mxu0
        %v2899 = vadd.f32 %v2497, %v2898
        %2900 = vdwg.mxu0
        %2901 = vmatprep.subr.mxu0 %v2099
        %2902 = vmatpush1.msra.mxu0 %v2098
        %2903 = vmatprep.subr.mxu0 %v2103
        %2904 = vmatpush1.msra.mxu0 %v2102
        %2905 = vmatprep.subr.mxu0 %v2107
        %2906 = vmatpush1.msra.mxu0 %v2106
        %2907 = vmatprep.subr.mxu0 %v2111
        %2908 = vmatpush1.msra.mxu0 %v2110
        %2909 = vmatprep.subr.mxu0 %v2115
        %2910 = vmatpush1.msra.mxu0 %v2114
        %2911 = vmatprep.subr.mxu0 %v2119
        %2912 = vmatpush1.msra.mxu0 %v2118
        %2913 = vmatprep.subr.mxu0 %v2123
        %2914 = vmatpush1.msra.mxu0 %v2122
        %2915 = vmatprep.subr.mxu0 %v2127
        %2916 = vmatpush1.msra.mxu0 %v2126
        %2917 = vmatprep.subr.mxu0 %v2131
        %2918 = vmatpush1.msra.mxu0 %v2130
        %2919 = vmatprep.subr.mxu0 %v2135
        %2920 = vmatpush1.msra.mxu0 %v2134
        %2921 = vmatprep.subr.mxu0 %v2139
        %2922 = vmatpush1.msra.mxu0 %v2138
        %2923 = vmatprep.subr.mxu0 %v2143
        %2924 = vmatpush1.msra.mxu0 %v2142
        %2925 = vmatprep.subr.mxu0 %v2147
        %2926 = vmatpush1.msra.mxu0 %v2146
        %2927 = vmatprep.subr.mxu0 %v2151
        %2928 = vmatpush1.msra.mxu0 %v2150
        %2929 = vmatprep.subr.mxu0 %v2155
        %2930 = vmatpush1.msra.mxu0 %v2154
        %2931 = vmatprep.subr.mxu0 %v2159
        %2932 = vmatpush1.msra.mxu0 %v2158
        %2933 = vmatprep.subr.mxu0 %v2163
        %2934 = vmatpush1.msra.mxu0 %v2162
        %2935 = vmatprep.subr.mxu0 %v2167
        %2936 = vmatpush1.msra.mxu0 %v2166
        %2937 = vmatprep.subr.mxu0 %v2171
        %2938 = vmatpush1.msra.mxu0 %v2170
        %2939 = vmatprep.subr.mxu0 %v2175
        %2940 = vmatpush1.msra.mxu0 %v2174
        %2941 = vmatprep.subr.mxu0 %v2179
        %2942 = vmatpush1.msra.mxu0 %v2178
        %2943 = vmatprep.subr.mxu0 %v2183
        %2944 = vmatpush1.msra.mxu0 %v2182
        %2945 = vmatprep.subr.mxu0 %v2187
        %2946 = vmatpush1.msra.mxu0 %v2186
        %2947 = vmatprep.subr.mxu0 %v2191
        %2948 = vmatpush1.msra.mxu0 %v2190
        %2949 = vmatprep.subr.mxu0 %v2195
        %2950 = vmatpush1.msra.mxu0 %v2194
        %2951 = vmatprep.subr.mxu0 %v2199
        %2952 = vmatpush1.msra.mxu0 %v2198
        %2953 = vmatprep.subr.mxu0 %v2203
        %2954 = vmatpush1.msra.mxu0 %v2202
        %2955 = vmatprep.subr.mxu0 %v2207
        %2956 = vmatpush1.msra.mxu0 %v2206
        %2957 = vmatprep.subr.mxu0 %v2211
        %2958 = vmatpush1.msra.mxu0 %v2210
        %2959 = vmatprep.subr.mxu0 %v2215
        %2960 = vmatpush1.msra.mxu0 %v2214
        %2961 = vmatprep.subr.mxu0 %v2219
        %2962 = vmatpush1.msra.mxu0 %v2218
        %2963 = vmatprep.subr.mxu0 %v2223
        %2964 = vmatpush1.msra.mxu0 %v2222
        %2965 = vmatprep.mubr.f32.mxu0 %v2520
        %2966 = vmatmul.mubr.f32.gmra.mrb[0].mxu0 %v2518
        %v2967 = vpop.f32.mrb[0].mxu0
        %v2968 = vadd.f32 %v2897, %v2967
        %v2969 = vpop.f32.mrb[0].mxu0
        %v2970 = vadd.f32 %v2899, %v2969
        %2971 = vdwg.mxu0
        %2972 = vmatprep.subr.mxu0 %v2227
        %2973 = vmatpush1.msra.mxu0 %v2226
        %2974 = vmatprep.subr.mxu0 %v2231
        %2975 = vmatpush1.msra.mxu0 %v2230
        %2976 = vmatprep.subr.mxu0 %v2235
        %2977 = vmatpush1.msra.mxu0 %v2234
        %2978 = vmatprep.subr.mxu0 %v2239
        %2979 = vmatpush1.msra.mxu0 %v2238
        %2980 = vmatprep.subr.mxu0 %v2243
        %2981 = vmatpush1.msra.mxu0 %v2242
        %2982 = vmatprep.subr.mxu0 %v2247
        %2983 = vmatpush1.msra.mxu0 %v2246
        %2984 = vmatprep.subr.mxu0 %v2251
        %2985 = vmatpush1.msra.mxu0 %v2250
        %2986 = vmatprep.subr.mxu0 %v2255
        %2987 = vmatpush1.msra.mxu0 %v2254
        %2988 = vmatprep.subr.mxu0 %v2259
        %2989 = vmatpush1.msra.mxu0 %v2258
        %2990 = vmatprep.subr.mxu0 %v2263
        %2991 = vmatpush1.msra.mxu0 %v2262
        %2992 = vmatprep.subr.mxu0 %v2267
        %2993 = vmatpush1.msra.mxu0 %v2266
        %2994 = vmatprep.subr.mxu0 %v2271
        %2995 = vmatpush1.msra.mxu0 %v2270
        %2996 = vmatprep.subr.mxu0 %v2275
        %2997 = vmatpush1.msra.mxu0 %v2274
        %2998 = vmatprep.subr.mxu0 %v2279
        %2999 = vmatpush1.msra.mxu0 %v2278
        %3000 = vmatprep.subr.mxu0 %v2283
        %3001 = vmatpush1.msra.mxu0 %v2282
        %3002 = vmatprep.subr.mxu0 %v2287
        %3003 = vmatpush1.msra.mxu0 %v2286
        %3004 = vmatprep.subr.mxu0 %v2291
        %3005 = vmatpush1.msra.mxu0 %v2290
        %3006 = vmatprep.subr.mxu0 %v2295
        %3007 = vmatpush1.msra.mxu0 %v2294
        %3008 = vmatprep.subr.mxu0 %v2299
        %3009 = vmatpush1.msra.mxu0 %v2298
        %3010 = vmatprep.subr.mxu0 %v2303
        %3011 = vmatpush1.msra.mxu0 %v2302
        %3012 = vmatprep.subr.mxu0 %v2307
        %3013 = vmatpush1.msra.mxu0 %v2306
        %3014 = vmatprep.subr.mxu0 %v2311
        %3015 = vmatpush1.msra.mxu0 %v2310
        %3016 = vmatprep.subr.mxu0 %v2315
        %3017 = vmatpush1.msra.mxu0 %v2314
        %3018 = vmatprep.subr.mxu0 %v2319
        %3019 = vmatpush1.msra.mxu0 %v2318
        %3020 = vmatprep.subr.mxu0 %v2323
        %3021 = vmatpush1.msra.mxu0 %v2322
        %3022 = vmatprep.subr.mxu0 %v2327
        %3023 = vmatpush1.msra.mxu0 %v2326
        %3024 = vmatprep.subr.mxu0 %v2331
        %3025 = vmatpush1.msra.mxu0 %v2330
        %3026 = vmatprep.subr.mxu0 %v2335
        %3027 = vmatpush1.msra.mxu0 %v2334
        %3028 = vmatprep.subr.mxu0 %v2339
        %3029 = vmatpush1.msra.mxu0 %v2338
        %3030 = vmatprep.subr.mxu0 %v2343
        %3031 = vmatpush1.msra.mxu0 %v2342
        %3032 = vmatprep.subr.mxu0 %v2347
        %3033 = vmatpush1.msra.mxu0 %v2346
        %3034 = vmatprep.subr.mxu0 %v2351
        %3035 = vmatpush1.msra.mxu0 %v2350
        %3036 = vmatprep.mubr.f32.mxu0 %v2536
        %3037 = vmatmul.mubr.f32.gmra.mrb[0].mxu0 %v2528
        %v3038 = vpop.f32.mrb[0].mxu0
        %v3039 = vadd.f32 %v2968, %v3038
        %v3040 = vpop.f32.mrb[0].mxu0
        %v3041 = vadd.f32 %v2970, %v3040
        %3042 = vdwg.mxu0
        %3043 = vmatprep.subr.mxu0 %v2355
        %3044 = vmatpush1.msra.mxu0 %v2354
        %3045 = vmatprep.subr.mxu0 %v2359
        %3046 = vmatpush1.msra.mxu0 %v2358
        %3047 = vmatprep.subr.mxu0 %v2363
        %3048 = vmatpush1.msra.mxu0 %v2362
        %3049 = vmatprep.subr.mxu0 %v2367
        %3050 = vmatpush1.msra.mxu0 %v2366
        %3051 = vmatprep.subr.mxu0 %v2371
        %3052 = vmatpush1.msra.mxu0 %v2370
        %3053 = vmatprep.subr.mxu0 %v2375
        %3054 = vmatpush1.msra.mxu0 %v2374
        %3055 = vmatprep.subr.mxu0 %v2379
        %3056 = vmatpush1.msra.mxu0 %v2378
        %3057 = vmatprep.subr.mxu0 %v2383
        %3058 = vmatpush1.msra.mxu0 %v2382
        %3059 = vmatprep.subr.mxu0 %v2387
        %3060 = vmatpush1.msra.mxu0 %v2386
        %3061 = vmatprep.subr.mxu0 %v2391
        %3062 = vmatpush1.msra.mxu0 %v2390
        %3063 = vmatprep.subr.mxu0 %v2395
        %3064 = vmatpush1.msra.mxu0 %v2394
        %3065 = vmatprep.subr.mxu0 %v2399
        %3066 = vmatpush1.msra.mxu0 %v2398
        %3067 = vmatprep.subr.mxu0 %v2403
        %3068 = vmatpush1.msra.mxu0 %v2402
        %3069 = vmatprep.subr.mxu0 %v2407
        %3070 = vmatpush1.msra.mxu0 %v2406
        %3071 = vmatprep.subr.mxu0 %v2411
        %3072 = vmatpush1.msra.mxu0 %v2410
        %3073 = vmatprep.subr.mxu0 %v2415
        %3074 = vmatpush1.msra.mxu0 %v2414
        %3075 = vmatprep.subr.mxu0 %v2419
        %3076 = vmatpush1.msra.mxu0 %v2418
        %3077 = vmatprep.subr.mxu0 %v2423
        %3078 = vmatpush1.msra.mxu0 %v2422
        %3079 = vmatprep.subr.mxu0 %v2427
        %3080 = vmatpush1.msra.mxu0 %v2426
        %3081 = vmatprep.subr.mxu0 %v2431
        %3082 = vmatpush1.msra.mxu0 %v2430
        %3083 = vmatprep.subr.mxu0 %v2435
        %3084 = vmatpush1.msra.mxu0 %v2434
        %3085 = vmatprep.subr.mxu0 %v2439
        %3086 = vmatpush1.msra.mxu0 %v2438
        %3087 = vmatprep.subr.mxu0 %v2443
        %3088 = vmatpush1.msra.mxu0 %v2442
        %3089 = vmatprep.subr.mxu0 %v2447
        %3090 = vmatpush1.msra.mxu0 %v2446
        %3091 = vmatprep.subr.mxu0 %v2451
        %3092 = vmatpush1.msra.mxu0 %v2450
        %3093 = vmatprep.subr.mxu0 %v2455
        %3094 = vmatpush1.msra.mxu0 %v2454
        %3095 = vmatprep.subr.mxu0 %v2459
        %3096 = vmatpush1.msra.mxu0 %v2458
        %3097 = vmatprep.subr.mxu0 %v2463
        %3098 = vmatpush1.msra.mxu0 %v2462
        %3099 = vmatprep.subr.mxu0 %v2467
        %3100 = vmatpush1.msra.mxu0 %v2466
        %3101 = vmatprep.subr.mxu0 %v2471
        %3102 = vmatpush1.msra.mxu0 %v2470
        %3103 = vmatprep.subr.mxu0 %v2475
        %3104 = vmatpush1.msra.mxu0 %v2474
        %3105 = vmatprep.subr.mxu0 %v2479
        %3106 = vmatpush1.msra.mxu0 %v2478
        %3107 = vmatprep.mubr.f32.mxu0 %v2537
        %3108 = vmatmul.mubr.f32.gmra.mrb[0].mxu0 %v2535
        %v3109 = vpop.f32.mrb[0].mxu0
        %v3110 = vadd.f32 %v3039, %v3109
        %v3111 = vpop.f32.mrb[0].mxu0
        %v3112 = vadd.f32 %v3041, %v3111
        %3113 = vdwg.mxu0
        %v3114 = vtanh.pop %v2826
        %v3115 = vtanh.pop %v2828
        %v3116 = vtanh.pop %v3110
        %v3117 = vtanh.pop %v3112
        %v3122 = vcombine.low %v3114, %v3115
        %v3123 = vcombine.low %v3116, %v3117
        %v3125 = vunpack.c.l.s4 1983009808
        %v3126 = vunpack.c.0.s8 %v3125
        %v3127 = vlaneseq
        %v3128 = vshrl.u32 %v3127, 7
        %v3129 = vsub.s32 %v3126, %v3128
        %v3130 = vrot.slane %v3122, %v3129
        %v3132 = vunpack.c.l.s4 1983009808
        %v3133 = vunpack.c.0.s8 %v3132
        %v3134 = vlaneseq
        %v3135 = vshrl.u32 %v3134, 7
        %v3136 = vsub.s32 %v3133, %v3135
        %v3137 = vrot.slane %v3123, %v3136
        %v3138 = vcombine.low %v3130, %v3137
        %3140 = vst [vmem:[%s363] sm:$0xff] %v3138
        %s3141 = smul.u32 4, %s28
        %p3142 = scmp.lt.s32.totalorder %s3141, 7
        %s3143 = scalar_select %p3142, %s3141, 7
        %s3144 = smul.addr %s3143, 2
        %s3145 = scalar_lea.vmem %s7, %s3144
        // Predicated region
        $region65: #{game_of_life_forward.1} parent=47 // pred_check
          %p3146 = pneg %p203
        $region66: #{game_of_life_forward.1} parent=47 // pred_check_branch
          %3148 = sbr.rel (%p3146) target = $region68
        $region67: #{game_of_life_forward.1} parent=47 // pred_region
          %s3149 = smul.u32 4, %s28
        $region68: #{game_of_life_forward.1} parent=47 // pred_fallthru
          _
      $region48: #{game_of_life_forward.1} parent=5 // pred_fallthru
        _
      %p3150 = scmp.le.s32.totalorder 2, %s23
      // Predicated region
      $region69: #{game_of_life_forward.1} parent=5 // pred_check
        %p3151 = pneg %p3150
      $region70: #{game_of_life_forward.1} parent=5 // pred_check_branch
        %3153 = sbr.rel (%p3151) target = $region72
      $region71: #{game_of_life_forward.1} parent=5 // pred_region
        %s3154 = ssub.s32 %s23, 2
        // Predicated region
        $region73: #{game_of_life_forward.1} parent=71 // pred_check
          %p3155 = pneg %p209
        $region74: #{game_of_life_forward.1} parent=71 // pred_check_branch
          %3157 = sbr.rel (%p3155) target = $region76
        $region75: #{game_of_life_forward.1} parent=71 // pred_region
          %s3158 = smul.u32 4, %s29
          %p3159 = scmp.lt.s32.totalorder %s3158, 7
          %s3160 = scalar_select %p3159, %s3158, 7
          %s3161 = smul.addr %s3160, 2
          %s3162 = scalar_lea.vmem %s7, %s3161
        $region76: #{game_of_life_forward.1} parent=71 // pred_fallthru
          _
      $region72: #{game_of_life_forward.1} parent=5 // pred_fallthru
        _
    $region6: #{game_of_life_forward.1} parent=1 // loop_footer
      %s27 = sadd.s32 1, %s23
    $region7: #{game_of_life_forward.1} parent=1 // loop_footer_branch
      %22 = sbr.rel target = $region3
    $region8: #{game_of_life_forward.1} parent=1 // loop_exit
      _
    %3163 = vsyncpa [#allocation5], 1
    %s3164 = scalar_lea.sflag [#allocation5], 1
    %3165 = vsyncpa %s3164, 1
    %3166 = vsyncpa [#allocation11], 1
    %s3167 = scalar_lea.sflag [#allocation11], 1
    %3168 = vsyncpa %s3167, 1
    %3169 = vsyncpa [#allocation6], 1
    %s3170 = scalar_lea.sflag [#allocation6], 1
    %3171 = vsyncpa %s3170, 1
    %3172 = vsyncpa [#allocation8], 1

</llo_original>
